<compile_context>
chip_gen: v5e
topology: v5e:2x2
jax: 0.10.0
libtpu: 0.0.40
codegen_flags: <defaults>
</compile_context>

<pallas_src>
import functools

import jax
import jax.numpy as jnp
from jax.experimental import pallas as pl
from jax.experimental.pallas import tpu as pltpu

_EPS = 1e-5
_VMEM_LIMIT = 32 * 1024 * 1024        # safe on v5e/v6e/v7x
_TILE_BUDGET = 8 * 1024 * 1024        # double-buffered per-step tile budget

# Output-row (or col) parity -> ((kernel tap index, padded-slice start), ...)
# for ConvTranspose2d(kernel=4, stride=2, padding=1):  oh = 2*ih - 1 + kh.
_TAPS = {0: ((1, 1), (3, 0)), 1: ((0, 2), (2, 1))}


def _cparams(*sem):
    return pltpu.CompilerParams(dimension_semantics=sem,
                                vmem_limit_bytes=_VMEM_LIMIT)


def _pick_lane_tile(m, bytes_per_col, budget=_TILE_BUDGET):
    """Largest lane tile (multiple of 128) dividing m that fits the VMEM budget
    when double buffered; falls back to the full extent for small/odd m."""
    fallback = m
    for t in (2048, 1024, 512, 256, 128):
        if m % t == 0:
            fallback = t
            if 2 * t * bytes_per_col <= budget:
                return t
    return fallback


# ----------------------------- Pallas kernels ------------------------------

def _l1_fused_gemm_bn_relu_kernel(z_ref, w_ref, g_ref, gt_ref, gamma_ref,
                                  beta_ref, o_ref):
    # Layer 1, fully fused: y = z @ W1 for one lane-dense column tile, then
    # training-mode BatchNorm (biased variance over the N x 16 values of each
    # channel, which all live inside this tile because channels are 16-lane
    # groups) and ReLU.  g / gt are the 0/1 channel-grouping matrices:
    # column-sums @ g -> per-channel sums; per-channel vals @ gt -> columns.
    y = jnp.dot(z_ref[...], w_ref[...], preferred_element_type=jnp.float32)
    inv_cnt = 1.0 / float(y.shape[0] * 16)
    colsum = jnp.sum(y, axis=0, keepdims=True)
    colssq = jnp.sum(y * y, axis=0, keepdims=True)
    ch_mean = jnp.dot(colsum, g_ref[...],
                      preferred_element_type=jnp.float32) * inv_cnt
    ch_msq = jnp.dot(colssq, g_ref[...],
                     preferred_element_type=jnp.float32) * inv_cnt
    ch_inv = jax.lax.rsqrt(ch_msq - ch_mean * ch_mean + _EPS)
    mean_cols = jnp.dot(ch_mean, gt_ref[...],
                        preferred_element_type=jnp.float32)
    inv_cols = jnp.dot(ch_inv, gt_ref[...],
                       preferred_element_type=jnp.float32)
    scale = gamma_ref[...] * inv_cols
    o_ref[...] = jnp.maximum((y - mean_cols) * scale + beta_ref[...], 0.0)


def _convt_gemm_stats_kernel(w_ref, x_ref, y_ref, sum_ref, ssq_ref):
    # One output-parity phase of ConvTranspose2d as a channel-major GEMM:
    #   y[cout, tm] = W_phase[cout, 4*cin] @ xcols_T[4*cin, tm]
    # Per-channel sum / sumsq accumulate across the (arbitrary) lane-tile axis
    # so BatchNorm statistics come out of the same pass over the output.
    y = jnp.dot(w_ref[0], x_ref[0], preferred_element_type=jnp.float32)
    y_ref[0] = y

    @pl.when(pl.program_id(1) == 0)
    def _init():
        sum_ref[...] = jnp.zeros_like(sum_ref)
        ssq_ref[...] = jnp.zeros_like(ssq_ref)

    sum_ref[0] += jnp.sum(y, axis=1, keepdims=True)
    ssq_ref[0] += jnp.sum(y * y, axis=1, keepdims=True)


def _convt_gemm_bias_sigmoid_kernel(w_ref, b_ref, x_ref, o_ref):
    # Final layer: channel-major GEMM with fused bias + sigmoid epilogue.
    y = jnp.dot(w_ref[0], x_ref[0], preferred_element_type=jnp.float32)
    o_ref[0] = jax.nn.sigmoid(y + b_ref[...])


def _bn_relu_phase_kernel(y_ref, s_ref, t_ref, o_ref):
    # Fused BatchNorm-apply + ReLU directly on a per-phase GEMM output tile
    # (per-channel scale/shift commute with the later phase interleave).
    o_ref[0] = jnp.maximum(y_ref[0] * s_ref[...] + t_ref[...], 0.0)


# ----------------------------- kernel wrappers ------------------------------

def pallas_l1_fused(z, w_mat, gamma_cols, beta_cols):
    n, e = z.shape
    cols = w_mat.shape[1]
    tc = _pick_lane_tile(cols, 4 * (e + n + 4))
    assert tc % 16 == 0
    nch = tc // 16
    # 0/1 grouping matrix (every 16 consecutive lanes = one channel).
    g = (jnp.arange(tc)[:, None] // 16
         == jnp.arange(nch)[None, :]).astype(jnp.float32)
    gt = g.T
    return pl.pallas_call(
        _l1_fused_gemm_bn_relu_kernel,
        out_shape=jax.ShapeDtypeStruct((n, cols), jnp.float32),
        grid=(cols // tc,),
        in_specs=[pl.BlockSpec((n, e), lambda j: (0, 0)),
                  pl.BlockSpec((e, tc), lambda j: (0, j)),
                  pl.BlockSpec((tc, nch), lambda j: (0, 0)),
                  pl.BlockSpec((nch, tc), lambda j: (0, 0)),
                  pl.BlockSpec((1, tc), lambda j: (0, j)),
                  pl.BlockSpec((1, tc), lambda j: (0, j))],
        out_specs=pl.BlockSpec((n, tc), lambda j: (0, j)),
        compiler_params=_cparams("parallel"),
    )(z, w_mat, g, gt, gamma_cols, beta_cols)


def pallas_convt_gemm_stats(w_mats, xcols):
    nph, cout, k = w_mats.shape
    m = xcols.shape[2]
    tm = _pick_lane_tile(m, 4 * (k + cout))
    y, psum, pssq = pl.pallas_call(
        _convt_gemm_stats_kernel,
        out_shape=(jax.ShapeDtypeStruct((nph, cout, m), jnp.float32),
                   jax.ShapeDtypeStruct((nph, cout, 1), jnp.float32),
                   jax.ShapeDtypeStruct((nph, cout, 1), jnp.float32)),
        grid=(nph, m // tm),
        in_specs=[pl.BlockSpec((1, cout, k), lambda p, i: (p, 0, 0)),
                  pl.BlockSpec((1, k, tm), lambda p, i: (p, 0, i))],
        out_specs=[pl.BlockSpec((1, cout, tm), lambda p, i: (p, 0, i)),
                   pl.BlockSpec((1, cout, 1), lambda p, i: (p, 0, 0)),
                   pl.BlockSpec((1, cout, 1), lambda p, i: (p, 0, 0))],
        compiler_params=_cparams("parallel", "arbitrary"),
    )(w_mats, xcols)
    # Reduce the per-phase partials to per-channel totals (tiny).
    return y, psum.sum(axis=0), pssq.sum(axis=0)        # (cout, 1) each


def pallas_convt_gemm_bias_sigmoid(w_mats, bias, xcols):
    nph, cout, k = w_mats.shape
    m = xcols.shape[2]
    tm = _pick_lane_tile(m, 4 * (k + cout))
    return pl.pallas_call(
        _convt_gemm_bias_sigmoid_kernel,
        out_shape=jax.ShapeDtypeStruct((nph, cout, m), jnp.float32),
        grid=(nph, m // tm),
        in_specs=[pl.BlockSpec((1, cout, k), lambda p, i: (p, 0, 0)),
                  pl.BlockSpec((cout, 1), lambda p, i: (0, 0)),
                  pl.BlockSpec((1, k, tm), lambda p, i: (p, 0, i))],
        out_specs=pl.BlockSpec((1, cout, tm), lambda p, i: (p, 0, i)),
        compiler_params=_cparams("parallel", "parallel"),
    )(w_mats, bias, xcols)


def pallas_bn_relu_phases(y_all, scale, shift):
    nph, c, m = y_all.shape
    tm = _pick_lane_tile(m, 8 * c)
    return pl.pallas_call(
        _bn_relu_phase_kernel,
        out_shape=jax.ShapeDtypeStruct((nph, c, m), jnp.float32),
        grid=(nph, m // tm),
        in_specs=[pl.BlockSpec((1, c, tm), lambda p, i: (p, 0, i)),
                  pl.BlockSpec((c, 1), lambda p, i: (0, 0)),
                  pl.BlockSpec((c, 1), lambda p, i: (0, 0))],
        out_specs=pl.BlockSpec((1, c, tm), lambda p, i: (p, 0, i)),
        compiler_params=_cparams("parallel", "parallel"),
    )(y_all, scale, shift)


# ----------------------------- plain-JAX glue -------------------------------

def _convt_phase_operands(x_cm, w):
    """Per-output-parity GEMM operands for ConvTranspose2d(k=4, s=2, p=1).

    x_cm: (Cin, N, H, W) channel-major activations.
    w   : (Cin, Cout, 4, 4) PyTorch ConvTranspose2d weight.
    Returns xcols (4, 4*Cin, N*H*W) and w_mats (4, Cout, 4*Cin); phase index
    p = 2*row_parity + col_parity.  Only the 4 non-zero taps per output pixel
    are materialised (no zero-dilated intermediate).
    """
    cin, n, h, wd = x_cm.shape
    cout = w.shape[1]
    xp = jnp.pad(x_cm, ((0, 0), (0, 0), (1, 1), (1, 1)))
    xcols, wmats = [], []
    for ph in (0, 1):
        for pw in (0, 1):
            taps = [((kh, kw), (rs, cs))
                    for kh, rs in _TAPS[ph] for kw, cs in _TAPS[pw]]
            cols = jnp.stack([xp[:, :, rs:rs + h, cs:cs + wd]
                              for _, (rs, cs) in taps], axis=0)  # (4,Cin,N,H,W)
            xcols.append(cols.reshape(4 * cin, n * h * wd))
            wm = jnp.stack([w[:, :, kh, kw] for (kh, kw), _ in taps], axis=0)
            wmats.append(wm.transpose(2, 0, 1).reshape(cout, 4 * cin))
    return jnp.stack(xcols, axis=0), jnp.stack(wmats, axis=0)


def _interleave_phases(y_all, n, h, wd):
    """(4, Cout, N*H*W) phase outputs -> (Cout, N, 2H, 2W)."""
    cout = y_all.shape[1]
    y = y_all.reshape(2, 2, cout, n, h, wd)        # (ph, pw, C, N, H, W)
    y = y.transpose(2, 3, 4, 0, 5, 1)              # (C, N, H, ph, W, pw)
    return y.reshape(cout, n, 2 * h, 2 * wd)


def _bn_scale_shift(ch_sum, ch_ssq, count, gamma, beta):
    """Training-mode BatchNorm (biased variance) folded into per-channel
    scale/shift of shape (C, 1).  Tiny per-channel math -> plain JAX."""
    mean = ch_sum / count
    var = ch_ssq / count - mean * mean
    scale = gamma.reshape(-1, 1) * jax.lax.rsqrt(var + _EPS)
    shift = beta.reshape(-1, 1) - mean * scale
    return scale, shift


# ----------------------------- decoder forward ------------------------------

def lsun_decoder_forward(z, params):
    """z: (N, embedding_dim) -> (N, 3, 64, 64) NCHW, sigmoid output."""
    n, e = z.shape
    c1 = params["w1"].shape[1]

    # Layer 1: ConvTranspose2d(E, 8f, k=4, s=1, p=0, bias=False) on a 1x1 map
    # == z @ W1.reshape(E, 16*8f); columns ordered (co, oh, ow) -> lane-dense.
    # GEMM + BatchNorm(batch stats) + ReLU fully fused in one Pallas pass.
    w1m = params["w1"].reshape(e, c1 * 16)
    g1c = jnp.repeat(params["g1"], 16).reshape(1, -1)
    b1c = jnp.repeat(params["b1"], 16).reshape(1, -1)
    a1 = pallas_l1_fused(z, w1m, g1c, b1c)                     # (N, 16*C1)
    x_cm = a1.reshape(n, c1, 4, 4).transpose(1, 0, 2, 3)       # (C1, N, 4, 4)

    # Layers 2..4: ConvTranspose2d(k=4, s=2, p=1, bias=False) + BN + ReLU as
    # 4 output-parity phases, channel-major GEMMs with fused BN statistics;
    # BN-apply + ReLU runs on the per-phase output so the interleave / pad /
    # im2col feeding the next layer is a single XLA data-movement fusion.
    for i in (2, 3, 4):
        w = params[f"w{i}"]
        _, nn_, h, wd = x_cm.shape
        xcols, w_mats = _convt_phase_operands(x_cm, w)
        y_all, ch_sum, ch_ssq = pallas_convt_gemm_stats(w_mats, xcols)
        scale, shift = _bn_scale_shift(ch_sum, ch_ssq, float(4 * xcols.shape[2]),
                                       params[f"g{i}"], params[f"b{i}"])
        a_all = pallas_bn_relu_phases(y_all, scale, shift)     # (4, Cout, M)
        x_cm = _interleave_phases(a_all, nn_, h, wd)           # (Cout, N, 2H, 2W)

    # Layer 5: ConvTranspose2d(f, 3, k=4, s=2, p=1, bias=True) + sigmoid,
    # bias+sigmoid fused in the GEMM epilogue; result is channels-first.
    w5 = params["w5"]
    cout5 = w5.shape[1]
    _, nn_, h, wd = x_cm.shape
    xcols, w_mats = _convt_phase_operands(x_cm, w5)
    y_all = pallas_convt_gemm_bias_sigmoid(
        w_mats, params["bias5"].reshape(cout5, 1), xcols)
    out_cm = _interleave_phases(y_all, nn_, h, wd)             # (3, N, 64, 64)
    return out_cm.transpose(1, 0, 2, 3)                        # NCHW


# ----------------------------- parameter init -------------------------------

def init_params(key, init_num_filters=8, embedding_dim=16):
    f = init_num_filters
    ks = jax.random.split(key, 6)

    def w(k, shape):
        return jax.random.normal(k, shape, jnp.float32) * 0.05

    return {
        # ConvTranspose2d weights are (in_channels, out_channels, kH, kW)
        "w1": w(ks[0], (embedding_dim, f * 8, 4, 4)),
        "w2": w(ks[1], (f * 8, f * 4, 4, 4)),
        "w3": w(ks[2], (f * 4, f * 2, 4, 4)),
        "w4": w(ks[3], (f * 2, f, 4, 4)),
        "w5": w(ks[4], (f, 3, 4, 4)),
        "bias5": w(ks[5], (3,)),
        # BatchNorm2d affine params (PyTorch default init: gamma=1, beta=0)
        "g1": jnp.ones((f * 8,), jnp.float32), "b1": jnp.zeros((f * 8,), jnp.float32),
        "g2": jnp.ones((f * 4,), jnp.float32), "b2": jnp.zeros((f * 4,), jnp.float32),
        "g3": jnp.ones((f * 2,), jnp.float32), "b3": jnp.zeros((f * 2,), jnp.float32),
        "g4": jnp.ones((f,), jnp.float32),     "b4": jnp.zeros((f,), jnp.float32),
    }


# ---------------------------------- main -------------------------------------

if __name__ == "__main__":
    key = jax.random.PRNGKey(0)
    kz, kp = jax.random.split(key)

    BATCH, EMBED, FILTERS = 2, 16, 8   # small, consistent with the module
    params = init_params(kp, init_num_filters=FILTERS, embedding_dim=EMBED)
    z = jax.random.normal(kz, (BATCH, EMBED), jnp.float32)

    fwd = jax.jit(functools.partial(lsun_decoder_forward, params=params))
    out = jax.block_until_ready(fwd(z))

    assert out.shape == (BATCH, 3, 64, 64), out.shape
    assert bool(jnp.all(jnp.isfinite(out)))
    assert bool(jnp.all((out >= 0.0) & (out <= 1.0)))   # sigmoid range
    print("KERNEL_OK")
</pallas_src>

<mosaic_0001>
module attributes {stable_mosaic.version = 11 : i64} {
  func.func @_l1_fused_gemm_bn_relu_kernel(%arg0: i32, %arg1: memref<2x16xf32, #tpu.memory_space<vmem>>, %arg2: memref<16x1024xf32, #tpu.memory_space<vmem>>, %arg3: memref<1024x64xf32, #tpu.memory_space<vmem>>, %arg4: memref<64x1024xf32, #tpu.memory_space<vmem>>, %arg5: memref<1x1024xf32, #tpu.memory_space<vmem>>, %arg6: memref<1x1024xf32, #tpu.memory_space<vmem>>, %arg7: memref<2x1024xf32, #tpu.memory_space<vmem>>) attributes {dimension_semantics = [#tpu.dimension_semantics<parallel>], iteration_bounds = array<i64: 1>, scalar_prefetch = 0 : i64, scratch_operands = 0 : i64, tpu.core_type = #tpu.core_type<tc>, window_params = [{pipeline_mode = #tpu.pipeline_mode<synchronous>, transform_indices = @transform_0, window_bounds = array<i64: 2, 16>}, {transform_indices = @transform_1, window_bounds = array<i64: 16, 1024>}, {pipeline_mode = #tpu.pipeline_mode<synchronous>, transform_indices = @transform_2, window_bounds = array<i64: 1024, 64>}, {pipeline_mode = #tpu.pipeline_mode<synchronous>, transform_indices = @transform_3, window_bounds = array<i64: 64, 1024>}, {transform_indices = @transform_4, window_bounds = array<i64: 1, 1024>}, {transform_indices = @transform_5, window_bounds = array<i64: 1, 1024>}, {transform_indices = @transform_6, window_bounds = array<i64: 2, 1024>}]} {
    %c0 = arith.constant 0 : index
    %c0_0 = arith.constant 0 : index
    %0 = vector.load %arg1[%c0, %c0_0] : memref<2x16xf32, #tpu.memory_space<vmem>>, vector<2x16xf32>
    %c0_1 = arith.constant 0 : index
    %c0_2 = arith.constant 0 : index
    %1 = vector.load %arg2[%c0_1, %c0_2] : memref<16x1024xf32, #tpu.memory_space<vmem>>, vector<16x1024xf32>
    %cst = arith.constant dense<0.000000e+00> : vector<2x1024xf32>
    %2 = tpu.matmul %0, %1, %cst {dimension_numbers = #tpu.dot_dimension_numbers<[1], [0], [0], [1], [0, 0, 1, 1], [], []>} : vector<2x16xf32>, vector<16x1024xf32>, vector<2x1024xf32> -> vector<2x1024xf32>
    %cst_3 = arith.constant dense<0.000000e+00> : vector<1024xf32>
    %3 = vector.multi_reduction <add>, %2, %cst_3 [0] : vector<2x1024xf32> to vector<1024xf32>
    %4 = vector.shape_cast %3 : vector<1024xf32> to vector<1x1024xf32>
    %5 = arith.mulf %2, %2 : vector<2x1024xf32>
    %cst_4 = arith.constant dense<0.000000e+00> : vector<1024xf32>
    %6 = vector.multi_reduction <add>, %5, %cst_4 [0] : vector<2x1024xf32> to vector<1024xf32>
    %7 = vector.shape_cast %6 : vector<1024xf32> to vector<1x1024xf32>
    %c0_5 = arith.constant 0 : index
    %c0_6 = arith.constant 0 : index
    %8 = vector.load %arg3[%c0_5, %c0_6] : memref<1024x64xf32, #tpu.memory_space<vmem>>, vector<1024x64xf32>
    %cst_7 = arith.constant dense<0.000000e+00> : vector<1x64xf32>
    %9 = tpu.matmul %4, %8, %cst_7 {dimension_numbers = #tpu.dot_dimension_numbers<[1], [0], [0], [1], [0, 0, 1, 1], [], []>} : vector<1x1024xf32>, vector<1024x64xf32>, vector<1x64xf32> -> vector<1x64xf32>
    %cst_8 = arith.constant 3.125000e-02 : f32
    %10 = vector.broadcast %cst_8 : f32 to vector<1x64xf32>
    %11 = arith.mulf %9, %10 : vector<1x64xf32>
    %c0_9 = arith.constant 0 : index
    %c0_10 = arith.constant 0 : index
    %12 = vector.load %arg3[%c0_9, %c0_10] : memref<1024x64xf32, #tpu.memory_space<vmem>>, vector<1024x64xf32>
    %cst_11 = arith.constant dense<0.000000e+00> : vector<1x64xf32>
    %13 = tpu.matmul %7, %12, %cst_11 {dimension_numbers = #tpu.dot_dimension_numbers<[1], [0], [0], [1], [0, 0, 1, 1], [], []>} : vector<1x1024xf32>, vector<1024x64xf32>, vector<1x64xf32> -> vector<1x64xf32>
    %cst_12 = arith.constant 3.125000e-02 : f32
    %14 = vector.broadcast %cst_12 : f32 to vector<1x64xf32>
    %15 = arith.mulf %13, %14 : vector<1x64xf32>
    %16 = arith.mulf %11, %11 : vector<1x64xf32>
    %17 = arith.subf %15, %16 : vector<1x64xf32>
    %cst_13 = arith.constant 9.99999974E-6 : f32
    %18 = vector.broadcast %cst_13 : f32 to vector<1x64xf32>
    %19 = arith.addf %17, %18 : vector<1x64xf32>
    %20 = math.rsqrt %19 : vector<1x64xf32>
    %c0_14 = arith.constant 0 : index
    %c0_15 = arith.constant 0 : index
    %21 = vector.load %arg4[%c0_14, %c0_15] : memref<64x1024xf32, #tpu.memory_space<vmem>>, vector<64x1024xf32>
    %cst_16 = arith.constant dense<0.000000e+00> : vector<1x1024xf32>
    %22 = tpu.matmul %11, %21, %cst_16 {dimension_numbers = #tpu.dot_dimension_numbers<[1], [0], [0], [1], [0, 0, 1, 1], [], []>} : vector<1x64xf32>, vector<64x1024xf32>, vector<1x1024xf32> -> vector<1x1024xf32>
    %c0_17 = arith.constant 0 : index
    %c0_18 = arith.constant 0 : index
    %23 = vector.load %arg4[%c0_17, %c0_18] : memref<64x1024xf32, #tpu.memory_space<vmem>>, vector<64x1024xf32>
    %cst_19 = arith.constant dense<0.000000e+00> : vector<1x1024xf32>
    %24 = tpu.matmul %20, %23, %cst_19 {dimension_numbers = #tpu.dot_dimension_numbers<[1], [0], [0], [1], [0, 0, 1, 1], [], []>} : vector<1x64xf32>, vector<64x1024xf32>, vector<1x1024xf32> -> vector<1x1024xf32>
    %c0_20 = arith.constant 0 : index
    %c0_21 = arith.constant 0 : index
    %25 = vector.load %arg5[%c0_20, %c0_21] : memref<1x1024xf32, #tpu.memory_space<vmem>>, vector<1x1024xf32>
    %26 = arith.mulf %25, %24 : vector<1x1024xf32>
    %27 = vector.broadcast %22 : vector<1x1024xf32> to vector<2x1024xf32>
    %28 = arith.subf %2, %27 : vector<2x1024xf32>
    %29 = vector.broadcast %26 : vector<1x1024xf32> to vector<2x1024xf32>
    %30 = arith.mulf %28, %29 : vector<2x1024xf32>
    %c0_22 = arith.constant 0 : index
    %c0_23 = arith.constant 0 : index
    %31 = vector.load %arg6[%c0_22, %c0_23] : memref<1x1024xf32, #tpu.memory_space<vmem>>, vector<1x1024xf32>
    %32 = vector.broadcast %31 : vector<1x1024xf32> to vector<2x1024xf32>
    %33 = arith.addf %30, %32 : vector<2x1024xf32>
    %cst_24 = arith.constant 0.000000e+00 : f32
    %34 = vector.broadcast %cst_24 : f32 to vector<2x1024xf32>
    %35 = arith.maximumf %33, %34 : vector<2x1024xf32>
    %c0_25 = arith.constant 0 : index
    %c0_26 = arith.constant 0 : index
    %36 = vector.load %arg7[%c0_25, %c0_26] : memref<2x1024xf32, #tpu.memory_space<vmem>>, vector<2x1024xf32>
    tpu.vector_store %arg7[%c0_25, %c0_26], %35 {strides = array<i32>} : memref<2x1024xf32, #tpu.memory_space<vmem>>, vector<2x1024xf32>,
    return
  }
  func.func @transform_0(%arg0: i32) -> (i32, i32) {
    %c0_i32 = arith.constant 0 : i32
    %c0_i32_0 = arith.constant 0 : i32
    %c0_i32_1 = arith.constant 0 : i32
    return %c0_i32, %c0_i32_0 : i32, i32
  }
  func.func @transform_1(%arg0: i32) -> (i32, i32) {
    %c0_i32 = arith.constant 0 : i32
    %c0_i32_0 = arith.constant 0 : i32
    return %c0_i32, %arg0 : i32, i32
  }
  func.func @transform_2(%arg0: i32) -> (i32, i32) {
    %c0_i32 = arith.constant 0 : i32
    %c0_i32_0 = arith.constant 0 : i32
    %c0_i32_1 = arith.constant 0 : i32
    return %c0_i32, %c0_i32_0 : i32, i32
  }
  func.func @transform_3(%arg0: i32) -> (i32, i32) {
    %c0_i32 = arith.constant 0 : i32
    %c0_i32_0 = arith.constant 0 : i32
    %c0_i32_1 = arith.constant 0 : i32
    return %c0_i32, %c0_i32_0 : i32, i32
  }
  func.func @transform_4(%arg0: i32) -> (i32, i32) {
    %c0_i32 = arith.constant 0 : i32
    %c0_i32_0 = arith.constant 0 : i32
    return %c0_i32, %arg0 : i32, i32
  }
  func.func @transform_5(%arg0: i32) -> (i32, i32) {
    %c0_i32 = arith.constant 0 : i32
    %c0_i32_0 = arith.constant 0 : i32
    return %c0_i32, %arg0 : i32, i32
  }
  func.func @transform_6(%arg0: i32) -> (i32, i32) {
    %c0_i32 = arith.constant 0 : i32
    %c0_i32_0 = arith.constant 0 : i32
    return %c0_i32, %arg0 : i32, i32
  }
}

module attributes {stable_mosaic.version = 11 : i64} {
  func.func @_convt_gemm_stats_kernel(%arg0: i32, %arg1: i32, %arg2: memref<1x32x256xf32, #tpu.memory_space<vmem>>, %arg3: memref<1x256x32xf32, #tpu.memory_space<vmem>>, %arg4: memref<1x32x32xf32, #tpu.memory_space<vmem>>, %arg5: memref<1x32x1xf32, #tpu.memory_space<vmem>>, %arg6: memref<1x32x1xf32, #tpu.memory_space<vmem>>) attributes {dimension_semantics = [#tpu.dimension_semantics<parallel>, #tpu.dimension_semantics<arbitrary>], iteration_bounds = array<i64: 4, 1>, scalar_prefetch = 0 : i64, scratch_operands = 0 : i64, tpu.core_type = #tpu.core_type<tc>, window_params = [{transform_indices = @transform_0, window_bounds = array<i64: 1, 32, 256>}, {transform_indices = @transform_1, window_bounds = array<i64: 1, 256, 32>}, {transform_indices = @transform_2, window_bounds = array<i64: 1, 32, 32>}, {transform_indices = @transform_3, window_bounds = array<i64: 1, 32, 1>}, {transform_indices = @transform_4, window_bounds = array<i64: 1, 32, 1>}]} {
    %c0 = arith.constant 0 : index
    %c0_0 = arith.constant 0 : index
    %c0_1 = arith.constant 0 : index
    %0 = vector.load %arg2[%c0, %c0_0, %c0_1] : memref<1x32x256xf32, #tpu.memory_space<vmem>>, vector<1x32x256xf32>
    %1 = vector.shape_cast %0 : vector<1x32x256xf32> to vector<32x256xf32>
    %c0_2 = arith.constant 0 : index
    %c0_3 = arith.constant 0 : index
    %c0_4 = arith.constant 0 : index
    %2 = vector.load %arg3[%c0_2, %c0_3, %c0_4] : memref<1x256x32xf32, #tpu.memory_space<vmem>>, vector<1x256x32xf32>
    %3 = vector.shape_cast %2 : vector<1x256x32xf32> to vector<256x32xf32>
    %cst = arith.constant dense<0.000000e+00> : vector<32x32xf32>
    %4 = tpu.matmul %1, %3, %cst {dimension_numbers = #tpu.dot_dimension_numbers<[1], [0], [0], [1], [0, 0, 1, 1], [], []>} : vector<32x256xf32>, vector<256x32xf32>, vector<32x32xf32> -> vector<32x32xf32>
    %c0_5 = arith.constant 0 : index
    %c0_6 = arith.constant 0 : index
    %c0_7 = arith.constant 0 : index
    %5 = vector.load %arg4[%c0_5, %c0_6, %c0_7] : memref<1x32x32xf32, #tpu.memory_space<vmem>>, vector<1x32x32xf32>
    %6 = vector.shape_cast %5 : vector<1x32x32xf32> to vector<32x32xf32>
    %7 = vector.shape_cast %4 : vector<32x32xf32> to vector<1x32x32xf32>
    tpu.vector_store %arg4[%c0_5, %c0_6, %c0_7], %7 {strides = array<i32>} : memref<1x32x32xf32, #tpu.memory_space<vmem>>, vector<1x32x32xf32>,
    %c0_i32 = arith.constant 0 : i32
    %8 = arith.cmpi eq, %arg1, %c0_i32 : i32
    %9 = arith.extui %8 : i1 to i32
    %c0_i32_8 = arith.constant 0 : i32
    %10 = arith.cmpi ne, %9, %c0_i32_8 : i32
    scf.if %10 {
      %cst_23 = arith.constant 0.000000e+00 : f32
      %28 = vector.broadcast %cst_23 : f32 to vector<1x32x1xf32>
      %c0_24 = arith.constant 0 : index
      %c0_25 = arith.constant 0 : index
      %c0_26 = arith.constant 0 : index
      %29 = vector.load %arg5[%c0_24, %c0_25, %c0_26] : memref<1x32x1xf32, #tpu.memory_space<vmem>>, vector<1x32x1xf32>
      tpu.vector_store %arg5[%c0_24, %c0_25, %c0_26], %28 {strides = array<i32>} : memref<1x32x1xf32, #tpu.memory_space<vmem>>, vector<1x32x1xf32>,
      %cst_27 = arith.constant 0.000000e+00 : f32
      %30 = vector.broadcast %cst_27 : f32 to vector<1x32x1xf32>
      %c0_28 = arith.constant 0 : index
      %c0_29 = arith.constant 0 : index
      %c0_30 = arith.constant 0 : index
      %31 = vector.load %arg6[%c0_28, %c0_29, %c0_30] : memref<1x32x1xf32, #tpu.memory_space<vmem>>, vector<1x32x1xf32>
      tpu.vector_store %arg6[%c0_28, %c0_29, %c0_30], %30 {strides = array<i32>} : memref<1x32x1xf32, #tpu.memory_space<vmem>>, vector<1x32x1xf32>,
    } else {
    }
    %c0_9 = arith.constant 0 : index
    %c0_10 = arith.constant 0 : index
    %c0_11 = arith.constant 0 : index
    %11 = vector.load %arg5[%c0_9, %c0_10, %c0_11] : memref<1x32x1xf32, #tpu.memory_space<vmem>>, vector<1x32x1xf32>
    %12 = vector.shape_cast %11 : vector<1x32x1xf32> to vector<32x1xf32>
    %cst_12 = arith.constant dense<0.000000e+00> : vector<32xf32>
    %13 = vector.multi_reduction <add>, %4, %cst_12 [1] : vector<32x32xf32> to vector<32xf32>
    %14 = vector.shape_cast %13 : vector<32xf32> to vector<32x1xf32>
    %15 = arith.addf %12, %14 : vector<32x1xf32>
    %c0_13 = arith.constant 0 : index
    %c0_14 = arith.constant 0 : index
    %c0_15 = arith.constant 0 : index
    %16 = vector.load %arg5[%c0_13, %c0_14, %c0_15] : memref<1x32x1xf32, #tpu.memory_space<vmem>>, vector<1x32x1xf32>
    %17 = vector.shape_cast %16 : vector<1x32x1xf32> to vector<32x1xf32>
    %18 = vector.shape_cast %15 : vector<32x1xf32> to vector<1x32x1xf32>
    tpu.vector_store %arg5[%c0_13, %c0_14, %c0_15], %18 {strides = array<i32>} : memref<1x32x1xf32, #tpu.memory_space<vmem>>, vector<1x32x1xf32>,
    %c0_16 = arith.constant 0 : index
    %c0_17 = arith.constant 0 : index
    %c0_18 = arith.constant 0 : index
    %19 = vector.load %arg6[%c0_16, %c0_17, %c0_18] : memref<1x32x1xf32, #tpu.memory_space<vmem>>, vector<1x32x1xf32>
    %20 = vector.shape_cast %19 : vector<1x32x1xf32> to vector<32x1xf32>
    %21 = arith.mulf %4, %4 : vector<32x32xf32>
    %cst_19 = arith.constant dense<0.000000e+00> : vector<32xf32>
    %22 = vector.multi_reduction <add>, %21, %cst_19 [1] : vector<32x32xf32> to vector<32xf32>
    %23 = vector.shape_cast %22 : vector<32xf32> to vector<32x1xf32>
    %24 = arith.addf %20, %23 : vector<32x1xf32>
    %c0_20 = arith.constant 0 : index
    %c0_21 = arith.constant 0 : index
    %c0_22 = arith.constant 0 : index
    %25 = vector.load %arg6[%c0_20, %c0_21, %c0_22] : memref<1x32x1xf32, #tpu.memory_space<vmem>>, vector<1x32x1xf32>
    %26 = vector.shape_cast %25 : vector<1x32x1xf32> to vector<32x1xf32>
    %27 = vector.shape_cast %24 : vector<32x1xf32> to vector<1x32x1xf32>
    tpu.vector_store %arg6[%c0_20, %c0_21, %c0_22], %27 {strides = array<i32>} : memref<1x32x1xf32, #tpu.memory_space<vmem>>, vector<1x32x1xf32>,
    return
  }
  func.func @transform_0(%arg0: i32, %arg1: i32) -> (i32, i32, i32) {
    %c0_i32 = arith.constant 0 : i32
    %c0_i32_0 = arith.constant 0 : i32
    %c0_i32_1 = arith.constant 0 : i32
    return %arg0, %c0_i32, %c0_i32_0 : i32, i32, i32
  }
  func.func @transform_1(%arg0: i32, %arg1: i32) -> (i32, i32, i32) {
    %c0_i32 = arith.constant 0 : i32
    %c0_i32_0 = arith.constant 0 : i32
    return %arg0, %c0_i32, %arg1 : i32, i32, i32
  }
  func.func @transform_2(%arg0: i32, %arg1: i32) -> (i32, i32, i32) {
    %c0_i32 = arith.constant 0 : i32
    %c0_i32_0 = arith.constant 0 : i32
    return %arg0, %c0_i32, %arg1 : i32, i32, i32
  }
  func.func @transform_3(%arg0: i32, %arg1: i32) -> (i32, i32, i32) {
    %c0_i32 = arith.constant 0 : i32
    %c0_i32_0 = arith.constant 0 : i32
    %c0_i32_1 = arith.constant 0 : i32
    return %arg0, %c0_i32, %c0_i32_0 : i32, i32, i32
  }
  func.func @transform_4(%arg0: i32, %arg1: i32) -> (i32, i32, i32) {
    %c0_i32 = arith.constant 0 : i32
    %c0_i32_0 = arith.constant 0 : i32
    %c0_i32_1 = arith.constant 0 : i32
    return %arg0, %c0_i32, %c0_i32_0 : i32, i32, i32
  }
}

module attributes {stable_mosaic.version = 11 : i64} {
  func.func @_bn_relu_phase_kernel(%arg0: i32, %arg1: i32, %arg2: memref<1x32x32xf32, #tpu.memory_space<vmem>>, %arg3: memref<32x1xf32, #tpu.memory_space<vmem>>, %arg4: memref<32x1xf32, #tpu.memory_space<vmem>>, %arg5: memref<1x32x32xf32, #tpu.memory_space<vmem>>) attributes {dimension_semantics = [#tpu.dimension_semantics<parallel>, #tpu.dimension_semantics<parallel>], iteration_bounds = array<i64: 4, 1>, scalar_prefetch = 0 : i64, scratch_operands = 0 : i64, tpu.core_type = #tpu.core_type<tc>, window_params = [{transform_indices = @transform_0, window_bounds = array<i64: 1, 32, 32>}, {pipeline_mode = #tpu.pipeline_mode<synchronous>, transform_indices = @transform_1, window_bounds = array<i64: 32, 1>}, {pipeline_mode = #tpu.pipeline_mode<synchronous>, transform_indices = @transform_2, window_bounds = array<i64: 32, 1>}, {transform_indices = @transform_3, window_bounds = array<i64: 1, 32, 32>}]} {
    %c0 = arith.constant 0 : index
    %c0_0 = arith.constant 0 : index
    %c0_1 = arith.constant 0 : index
    %0 = vector.load %arg2[%c0, %c0_0, %c0_1] : memref<1x32x32xf32, #tpu.memory_space<vmem>>, vector<1x32x32xf32>
    %1 = vector.shape_cast %0 : vector<1x32x32xf32> to vector<32x32xf32>
    %c0_2 = arith.constant 0 : index
    %c0_3 = arith.constant 0 : index
    %2 = vector.load %arg3[%c0_2, %c0_3] : memref<32x1xf32, #tpu.memory_space<vmem>>, vector<32x1xf32>
    %3 = vector.broadcast %2 : vector<32x1xf32> to vector<32x32xf32>
    %4 = arith.mulf %1, %3 : vector<32x32xf32>
    %c0_4 = arith.constant 0 : index
    %c0_5 = arith.constant 0 : index
    %5 = vector.load %arg4[%c0_4, %c0_5] : memref<32x1xf32, #tpu.memory_space<vmem>>, vector<32x1xf32>
    %6 = vector.broadcast %5 : vector<32x1xf32> to vector<32x32xf32>
    %7 = arith.addf %4, %6 : vector<32x32xf32>
    %cst = arith.constant 0.000000e+00 : f32
    %8 = vector.broadcast %cst : f32 to vector<32x32xf32>
    %9 = arith.maximumf %7, %8 : vector<32x32xf32>
    %c0_6 = arith.constant 0 : index
    %c0_7 = arith.constant 0 : index
    %c0_8 = arith.constant 0 : index
    %10 = vector.load %arg5[%c0_6, %c0_7, %c0_8] : memref<1x32x32xf32, #tpu.memory_space<vmem>>, vector<1x32x32xf32>
    %11 = vector.shape_cast %10 : vector<1x32x32xf32> to vector<32x32xf32>
    %12 = vector.shape_cast %9 : vector<32x32xf32> to vector<1x32x32xf32>
    tpu.vector_store %arg5[%c0_6, %c0_7, %c0_8], %12 {strides = array<i32>} : memref<1x32x32xf32, #tpu.memory_space<vmem>>, vector<1x32x32xf32>,
    return
  }
  func.func @transform_0(%arg0: i32, %arg1: i32) -> (i32, i32, i32) {
    %c0_i32 = arith.constant 0 : i32
    %c0_i32_0 = arith.constant 0 : i32
    return %arg0, %c0_i32, %arg1 : i32, i32, i32
  }
  func.func @transform_1(%arg0: i32, %arg1: i32) -> (i32, i32) {
    %c0_i32 = arith.constant 0 : i32
    %c0_i32_0 = arith.constant 0 : i32
    %c0_i32_1 = arith.constant 0 : i32
    return %c0_i32, %c0_i32_0 : i32, i32
  }
  func.func @transform_2(%arg0: i32, %arg1: i32) -> (i32, i32) {
    %c0_i32 = arith.constant 0 : i32
    %c0_i32_0 = arith.constant 0 : i32
    %c0_i32_1 = arith.constant 0 : i32
    return %c0_i32, %c0_i32_0 : i32, i32
  }
  func.func @transform_3(%arg0: i32, %arg1: i32) -> (i32, i32, i32) {
    %c0_i32 = arith.constant 0 : i32
    %c0_i32_0 = arith.constant 0 : i32
    return %arg0, %c0_i32, %arg1 : i32, i32, i32
  }
}

module attributes {stable_mosaic.version = 11 : i64} {
  func.func @_convt_gemm_stats_kernel(%arg0: i32, %arg1: i32, %arg2: memref<1x16x128xf32, #tpu.memory_space<vmem>>, %arg3: memref<1x128x128xf32, #tpu.memory_space<vmem>>, %arg4: memref<1x16x128xf32, #tpu.memory_space<vmem>>, %arg5: memref<1x16x1xf32, #tpu.memory_space<vmem>>, %arg6: memref<1x16x1xf32, #tpu.memory_space<vmem>>) attributes {dimension_semantics = [#tpu.dimension_semantics<parallel>, #tpu.dimension_semantics<arbitrary>], iteration_bounds = array<i64: 4, 1>, scalar_prefetch = 0 : i64, scratch_operands = 0 : i64, tpu.core_type = #tpu.core_type<tc>, window_params = [{transform_indices = @transform_0, window_bounds = array<i64: 1, 16, 128>}, {transform_indices = @transform_1, window_bounds = array<i64: 1, 128, 128>}, {transform_indices = @transform_2, window_bounds = array<i64: 1, 16, 128>}, {transform_indices = @transform_3, window_bounds = array<i64: 1, 16, 1>}, {transform_indices = @transform_4, window_bounds = array<i64: 1, 16, 1>}]} {
    %c0 = arith.constant 0 : index
    %c0_0 = arith.constant 0 : index
    %c0_1 = arith.constant 0 : index
    %0 = vector.load %arg2[%c0, %c0_0, %c0_1] : memref<1x16x128xf32, #tpu.memory_space<vmem>>, vector<1x16x128xf32>
    %1 = vector.shape_cast %0 : vector<1x16x128xf32> to vector<16x128xf32>
    %c0_2 = arith.constant 0 : index
    %c0_3 = arith.constant 0 : index
    %c0_4 = arith.constant 0 : index
    %2 = vector.load %arg3[%c0_2, %c0_3, %c0_4] : memref<1x128x128xf32, #tpu.memory_space<vmem>>, vector<1x128x128xf32>
    %3 = vector.shape_cast %2 : vector<1x128x128xf32> to vector<128x128xf32>
    %cst = arith.constant dense<0.000000e+00> : vector<16x128xf32>
    %4 = tpu.matmul %1, %3, %cst {dimension_numbers = #tpu.dot_dimension_numbers<[1], [0], [0], [1], [0, 0, 1, 1], [], []>} : vector<16x128xf32>, vector<128x128xf32>, vector<16x128xf32> -> vector<16x128xf32>
    %c0_5 = arith.constant 0 : index
    %c0_6 = arith.constant 0 : index
    %c0_7 = arith.constant 0 : index
    %5 = vector.load %arg4[%c0_5, %c0_6, %c0_7] : memref<1x16x128xf32, #tpu.memory_space<vmem>>, vector<1x16x128xf32>
    %6 = vector.shape_cast %5 : vector<1x16x128xf32> to vector<16x128xf32>
    %7 = vector.shape_cast %4 : vector<16x128xf32> to vector<1x16x128xf32>
    tpu.vector_store %arg4[%c0_5, %c0_6, %c0_7], %7 {strides = array<i32>} : memref<1x16x128xf32, #tpu.memory_space<vmem>>, vector<1x16x128xf32>,
    %c0_i32 = arith.constant 0 : i32
    %8 = arith.cmpi eq, %arg1, %c0_i32 : i32
    %9 = arith.extui %8 : i1 to i32
    %c0_i32_8 = arith.constant 0 : i32
    %10 = arith.cmpi ne, %9, %c0_i32_8 : i32
    scf.if %10 {
      %cst_23 = arith.constant 0.000000e+00 : f32
      %28 = vector.broadcast %cst_23 : f32 to vector<1x16x1xf32>
      %c0_24 = arith.constant 0 : index
      %c0_25 = arith.constant 0 : index
      %c0_26 = arith.constant 0 : index
      %29 = vector.load %arg5[%c0_24, %c0_25, %c0_26] : memref<1x16x1xf32, #tpu.memory_space<vmem>>, vector<1x16x1xf32>
      tpu.vector_store %arg5[%c0_24, %c0_25, %c0_26], %28 {strides = array<i32>} : memref<1x16x1xf32, #tpu.memory_space<vmem>>, vector<1x16x1xf32>,
      %cst_27 = arith.constant 0.000000e+00 : f32
      %30 = vector.broadcast %cst_27 : f32 to vector<1x16x1xf32>
      %c0_28 = arith.constant 0 : index
      %c0_29 = arith.constant 0 : index
      %c0_30 = arith.constant 0 : index
      %31 = vector.load %arg6[%c0_28, %c0_29, %c0_30] : memref<1x16x1xf32, #tpu.memory_space<vmem>>, vector<1x16x1xf32>
      tpu.vector_store %arg6[%c0_28, %c0_29, %c0_30], %30 {strides = array<i32>} : memref<1x16x1xf32, #tpu.memory_space<vmem>>, vector<1x16x1xf32>,
    } else {
    }
    %c0_9 = arith.constant 0 : index
    %c0_10 = arith.constant 0 : index
    %c0_11 = arith.constant 0 : index
    %11 = vector.load %arg5[%c0_9, %c0_10, %c0_11] : memref<1x16x1xf32, #tpu.memory_space<vmem>>, vector<1x16x1xf32>
    %12 = vector.shape_cast %11 : vector<1x16x1xf32> to vector<16x1xf32>
    %cst_12 = arith.constant dense<0.000000e+00> : vector<16xf32>
    %13 = vector.multi_reduction <add>, %4, %cst_12 [1] : vector<16x128xf32> to vector<16xf32>
    %14 = vector.shape_cast %13 : vector<16xf32> to vector<16x1xf32>
    %15 = arith.addf %12, %14 : vector<16x1xf32>
    %c0_13 = arith.constant 0 : index
    %c0_14 = arith.constant 0 : index
    %c0_15 = arith.constant 0 : index
    %16 = vector.load %arg5[%c0_13, %c0_14, %c0_15] : memref<1x16x1xf32, #tpu.memory_space<vmem>>, vector<1x16x1xf32>
    %17 = vector.shape_cast %16 : vector<1x16x1xf32> to vector<16x1xf32>
    %18 = vector.shape_cast %15 : vector<16x1xf32> to vector<1x16x1xf32>
    tpu.vector_store %arg5[%c0_13, %c0_14, %c0_15], %18 {strides = array<i32>} : memref<1x16x1xf32, #tpu.memory_space<vmem>>, vector<1x16x1xf32>,
    %c0_16 = arith.constant 0 : index
    %c0_17 = arith.constant 0 : index
    %c0_18 = arith.constant 0 : index
    %19 = vector.load %arg6[%c0_16, %c0_17, %c0_18] : memref<1x16x1xf32, #tpu.memory_space<vmem>>, vector<1x16x1xf32>
    %20 = vector.shape_cast %19 : vector<1x16x1xf32> to vector<16x1xf32>
    %21 = arith.mulf %4, %4 : vector<16x128xf32>
    %cst_19 = arith.constant dense<0.000000e+00> : vector<16xf32>
    %22 = vector.multi_reduction <add>, %21, %cst_19 [1] : vector<16x128xf32> to vector<16xf32>
    %23 = vector.shape_cast %22 : vector<16xf32> to vector<16x1xf32>
    %24 = arith.addf %20, %23 : vector<16x1xf32>
    %c0_20 = arith.constant 0 : index
    %c0_21 = arith.constant 0 : index
    %c0_22 = arith.constant 0 : index
    %25 = vector.load %arg6[%c0_20, %c0_21, %c0_22] : memref<1x16x1xf32, #tpu.memory_space<vmem>>, vector<1x16x1xf32>
    %26 = vector.shape_cast %25 : vector<1x16x1xf32> to vector<16x1xf32>
    %27 = vector.shape_cast %24 : vector<16x1xf32> to vector<1x16x1xf32>
    tpu.vector_store %arg6[%c0_20, %c0_21, %c0_22], %27 {strides = array<i32>} : memref<1x16x1xf32, #tpu.memory_space<vmem>>, vector<1x16x1xf32>,
    return
  }
  func.func @transform_0(%arg0: i32, %arg1: i32) -> (i32, i32, i32) {
    %c0_i32 = arith.constant 0 : i32
    %c0_i32_0 = arith.constant 0 : i32
    %c0_i32_1 = arith.constant 0 : i32
    return %arg0, %c0_i32, %c0_i32_0 : i32, i32, i32
  }
  func.func @transform_1(%arg0: i32, %arg1: i32) -> (i32, i32, i32) {
    %c0_i32 = arith.constant 0 : i32
    %c0_i32_0 = arith.constant 0 : i32
    return %arg0, %c0_i32, %arg1 : i32, i32, i32
  }
  func.func @transform_2(%arg0: i32, %arg1: i32) -> (i32, i32, i32) {
    %c0_i32 = arith.constant 0 : i32
    %c0_i32_0 = arith.constant 0 : i32
    return %arg0, %c0_i32, %arg1 : i32, i32, i32
  }
  func.func @transform_3(%arg0: i32, %arg1: i32) -> (i32, i32, i32) {
    %c0_i32 = arith.constant 0 : i32
    %c0_i32_0 = arith.constant 0 : i32
    %c0_i32_1 = arith.constant 0 : i32
    return %arg0, %c0_i32, %c0_i32_0 : i32, i32, i32
  }
  func.func @transform_4(%arg0: i32, %arg1: i32) -> (i32, i32, i32) {
    %c0_i32 = arith.constant 0 : i32
    %c0_i32_0 = arith.constant 0 : i32
    %c0_i32_1 = arith.constant 0 : i32
    return %arg0, %c0_i32, %c0_i32_0 : i32, i32, i32
  }
}

module attributes {stable_mosaic.version = 11 : i64} {
  func.func @_bn_relu_phase_kernel(%arg0: i32, %arg1: i32, %arg2: memref<1x16x128xf32, #tpu.memory_space<vmem>>, %arg3: memref<16x1xf32, #tpu.memory_space<vmem>>, %arg4: memref<16x1xf32, #tpu.memory_space<vmem>>, %arg5: memref<1x16x128xf32, #tpu.memory_space<vmem>>) attributes {dimension_semantics = [#tpu.dimension_semantics<parallel>, #tpu.dimension_semantics<parallel>], iteration_bounds = array<i64: 4, 1>, scalar_prefetch = 0 : i64, scratch_operands = 0 : i64, tpu.core_type = #tpu.core_type<tc>, window_params = [{transform_indices = @transform_0, window_bounds = array<i64: 1, 16, 128>}, {pipeline_mode = #tpu.pipeline_mode<synchronous>, transform_indices = @transform_1, window_bounds = array<i64: 16, 1>}, {pipeline_mode = #tpu.pipeline_mode<synchronous>, transform_indices = @transform_2, window_bounds = array<i64: 16, 1>}, {transform_indices = @transform_3, window_bounds = array<i64: 1, 16, 128>}]} {
    %c0 = arith.constant 0 : index
    %c0_0 = arith.constant 0 : index
    %c0_1 = arith.constant 0 : index
    %0 = vector.load %arg2[%c0, %c0_0, %c0_1] : memref<1x16x128xf32, #tpu.memory_space<vmem>>, vector<1x16x128xf32>
    %1 = vector.shape_cast %0 : vector<1x16x128xf32> to vector<16x128xf32>
    %c0_2 = arith.constant 0 : index
    %c0_3 = arith.constant 0 : index
    %2 = vector.load %arg3[%c0_2, %c0_3] : memref<16x1xf32, #tpu.memory_space<vmem>>, vector<16x1xf32>
    %3 = vector.broadcast %2 : vector<16x1xf32> to vector<16x128xf32>
    %4 = arith.mulf %1, %3 : vector<16x128xf32>
    %c0_4 = arith.constant 0 : index
    %c0_5 = arith.constant 0 : index
    %5 = vector.load %arg4[%c0_4, %c0_5] : memref<16x1xf32, #tpu.memory_space<vmem>>, vector<16x1xf32>
    %6 = vector.broadcast %5 : vector<16x1xf32> to vector<16x128xf32>
    %7 = arith.addf %4, %6 : vector<16x128xf32>
    %cst = arith.constant 0.000000e+00 : f32
    %8 = vector.broadcast %cst : f32 to vector<16x128xf32>
    %9 = arith.maximumf %7, %8 : vector<16x128xf32>
    %c0_6 = arith.constant 0 : index
    %c0_7 = arith.constant 0 : index
    %c0_8 = arith.constant 0 : index
    %10 = vector.load %arg5[%c0_6, %c0_7, %c0_8] : memref<1x16x128xf32, #tpu.memory_space<vmem>>, vector<1x16x128xf32>
    %11 = vector.shape_cast %10 : vector<1x16x128xf32> to vector<16x128xf32>
    %12 = vector.shape_cast %9 : vector<16x128xf32> to vector<1x16x128xf32>
    tpu.vector_store %arg5[%c0_6, %c0_7, %c0_8], %12 {strides = array<i32>} : memref<1x16x128xf32, #tpu.memory_space<vmem>>, vector<1x16x128xf32>,
    return
  }
  func.func @transform_0(%arg0: i32, %arg1: i32) -> (i32, i32, i32) {
    %c0_i32 = arith.constant 0 : i32
    %c0_i32_0 = arith.constant 0 : i32
    return %arg0, %c0_i32, %arg1 : i32, i32, i32
  }
  func.func @transform_1(%arg0: i32, %arg1: i32) -> (i32, i32) {
    %c0_i32 = arith.constant 0 : i32
    %c0_i32_0 = arith.constant 0 : i32
    %c0_i32_1 = arith.constant 0 : i32
    return %c0_i32, %c0_i32_0 : i32, i32
  }
  func.func @transform_2(%arg0: i32, %arg1: i32) -> (i32, i32) {
    %c0_i32 = arith.constant 0 : i32
    %c0_i32_0 = arith.constant 0 : i32
    %c0_i32_1 = arith.constant 0 : i32
    return %c0_i32, %c0_i32_0 : i32, i32
  }
  func.func @transform_3(%arg0: i32, %arg1: i32) -> (i32, i32, i32) {
    %c0_i32 = arith.constant 0 : i32
    %c0_i32_0 = arith.constant 0 : i32
    return %arg0, %c0_i32, %arg1 : i32, i32, i32
  }
}

module attributes {stable_mosaic.version = 11 : i64} {
  func.func @_convt_gemm_stats_kernel(%arg0: i32, %arg1: i32, %arg2: memref<1x8x64xf32, #tpu.memory_space<vmem>>, %arg3: memref<1x64x512xf32, #tpu.memory_space<vmem>>, %arg4: memref<1x8x512xf32, #tpu.memory_space<vmem>>, %arg5: memref<1x8x1xf32, #tpu.memory_space<vmem>>, %arg6: memref<1x8x1xf32, #tpu.memory_space<vmem>>) attributes {dimension_semantics = [#tpu.dimension_semantics<parallel>, #tpu.dimension_semantics<arbitrary>], iteration_bounds = array<i64: 4, 1>, scalar_prefetch = 0 : i64, scratch_operands = 0 : i64, tpu.core_type = #tpu.core_type<tc>, window_params = [{transform_indices = @transform_0, window_bounds = array<i64: 1, 8, 64>}, {transform_indices = @transform_1, window_bounds = array<i64: 1, 64, 512>}, {transform_indices = @transform_2, window_bounds = array<i64: 1, 8, 512>}, {transform_indices = @transform_3, window_bounds = array<i64: 1, 8, 1>}, {transform_indices = @transform_4, window_bounds = array<i64: 1, 8, 1>}]} {
    %c0 = arith.constant 0 : index
    %c0_0 = arith.constant 0 : index
    %c0_1 = arith.constant 0 : index
    %0 = vector.load %arg2[%c0, %c0_0, %c0_1] : memref<1x8x64xf32, #tpu.memory_space<vmem>>, vector<1x8x64xf32>
    %1 = vector.shape_cast %0 : vector<1x8x64xf32> to vector<8x64xf32>
    %c0_2 = arith.constant 0 : index
    %c0_3 = arith.constant 0 : index
    %c0_4 = arith.constant 0 : index
    %2 = vector.load %arg3[%c0_2, %c0_3, %c0_4] : memref<1x64x512xf32, #tpu.memory_space<vmem>>, vector<1x64x512xf32>
    %3 = vector.shape_cast %2 : vector<1x64x512xf32> to vector<64x512xf32>
    %cst = arith.constant dense<0.000000e+00> : vector<8x512xf32>
    %4 = tpu.matmul %1, %3, %cst {dimension_numbers = #tpu.dot_dimension_numbers<[1], [0], [0], [1], [0, 0, 1, 1], [], []>} : vector<8x64xf32>, vector<64x512xf32>, vector<8x512xf32> -> vector<8x512xf32>
    %c0_5 = arith.constant 0 : index
    %c0_6 = arith.constant 0 : index
    %c0_7 = arith.constant 0 : index
    %5 = vector.load %arg4[%c0_5, %c0_6, %c0_7] : memref<1x8x512xf32, #tpu.memory_space<vmem>>, vector<1x8x512xf32>
    %6 = vector.shape_cast %5 : vector<1x8x512xf32> to vector<8x512xf32>
    %7 = vector.shape_cast %4 : vector<8x512xf32> to vector<1x8x512xf32>
    tpu.vector_store %arg4[%c0_5, %c0_6, %c0_7], %7 {strides = array<i32>} : memref<1x8x512xf32, #tpu.memory_space<vmem>>, vector<1x8x512xf32>,
    %c0_i32 = arith.constant 0 : i32
    %8 = arith.cmpi eq, %arg1, %c0_i32 : i32
    %9 = arith.extui %8 : i1 to i32
    %c0_i32_8 = arith.constant 0 : i32
    %10 = arith.cmpi ne, %9, %c0_i32_8 : i32
    scf.if %10 {
      %cst_23 = arith.constant 0.000000e+00 : f32
      %28 = vector.broadcast %cst_23 : f32 to vector<1x8x1xf32>
      %c0_24 = arith.constant 0 : index
      %c0_25 = arith.constant 0 : index
      %c0_26 = arith.constant 0 : index
      %29 = vector.load %arg5[%c0_24, %c0_25, %c0_26] : memref<1x8x1xf32, #tpu.memory_space<vmem>>, vector<1x8x1xf32>
      tpu.vector_store %arg5[%c0_24, %c0_25, %c0_26], %28 {strides = array<i32>} : memref<1x8x1xf32, #tpu.memory_space<vmem>>, vector<1x8x1xf32>,
      %cst_27 = arith.constant 0.000000e+00 : f32
      %30 = vector.broadcast %cst_27 : f32 to vector<1x8x1xf32>
      %c0_28 = arith.constant 0 : index
      %c0_29 = arith.constant 0 : index
      %c0_30 = arith.constant 0 : index
      %31 = vector.load %arg6[%c0_28, %c0_29, %c0_30] : memref<1x8x1xf32, #tpu.memory_space<vmem>>, vector<1x8x1xf32>
      tpu.vector_store %arg6[%c0_28, %c0_29, %c0_30], %30 {strides = array<i32>} : memref<1x8x1xf32, #tpu.memory_space<vmem>>, vector<1x8x1xf32>,
    } else {
    }
    %c0_9 = arith.constant 0 : index
    %c0_10 = arith.constant 0 : index
    %c0_11 = arith.constant 0 : index
    %11 = vector.load %arg5[%c0_9, %c0_10, %c0_11] : memref<1x8x1xf32, #tpu.memory_space<vmem>>, vector<1x8x1xf32>
    %12 = vector.shape_cast %11 : vector<1x8x1xf32> to vector<8x1xf32>
    %cst_12 = arith.constant dense<0.000000e+00> : vector<8xf32>
    %13 = vector.multi_reduction <add>, %4, %cst_12 [1] : vector<8x512xf32> to vector<8xf32>
    %14 = vector.shape_cast %13 : vector<8xf32> to vector<8x1xf32>
    %15 = arith.addf %12, %14 : vector<8x1xf32>
    %c0_13 = arith.constant 0 : index
    %c0_14 = arith.constant 0 : index
    %c0_15 = arith.constant 0 : index
    %16 = vector.load %arg5[%c0_13, %c0_14, %c0_15] : memref<1x8x1xf32, #tpu.memory_space<vmem>>, vector<1x8x1xf32>
    %17 = vector.shape_cast %16 : vector<1x8x1xf32> to vector<8x1xf32>
    %18 = vector.shape_cast %15 : vector<8x1xf32> to vector<1x8x1xf32>
    tpu.vector_store %arg5[%c0_13, %c0_14, %c0_15], %18 {strides = array<i32>} : memref<1x8x1xf32, #tpu.memory_space<vmem>>, vector<1x8x1xf32>,
    %c0_16 = arith.constant 0 : index
    %c0_17 = arith.constant 0 : index
    %c0_18 = arith.constant 0 : index
    %19 = vector.load %arg6[%c0_16, %c0_17, %c0_18] : memref<1x8x1xf32, #tpu.memory_space<vmem>>, vector<1x8x1xf32>
    %20 = vector.shape_cast %19 : vector<1x8x1xf32> to vector<8x1xf32>
    %21 = arith.mulf %4, %4 : vector<8x512xf32>
    %cst_19 = arith.constant dense<0.000000e+00> : vector<8xf32>
    %22 = vector.multi_reduction <add>, %21, %cst_19 [1] : vector<8x512xf32> to vector<8xf32>
    %23 = vector.shape_cast %22 : vector<8xf32> to vector<8x1xf32>
    %24 = arith.addf %20, %23 : vector<8x1xf32>
    %c0_20 = arith.constant 0 : index
    %c0_21 = arith.constant 0 : index
    %c0_22 = arith.constant 0 : index
    %25 = vector.load %arg6[%c0_20, %c0_21, %c0_22] : memref<1x8x1xf32, #tpu.memory_space<vmem>>, vector<1x8x1xf32>
    %26 = vector.shape_cast %25 : vector<1x8x1xf32> to vector<8x1xf32>
    %27 = vector.shape_cast %24 : vector<8x1xf32> to vector<1x8x1xf32>
    tpu.vector_store %arg6[%c0_20, %c0_21, %c0_22], %27 {strides = array<i32>} : memref<1x8x1xf32, #tpu.memory_space<vmem>>, vector<1x8x1xf32>,
    return
  }
  func.func @transform_0(%arg0: i32, %arg1: i32) -> (i32, i32, i32) {
    %c0_i32 = arith.constant 0 : i32
    %c0_i32_0 = arith.constant 0 : i32
    %c0_i32_1 = arith.constant 0 : i32
    return %arg0, %c0_i32, %c0_i32_0 : i32, i32, i32
  }
  func.func @transform_1(%arg0: i32, %arg1: i32) -> (i32, i32, i32) {
    %c0_i32 = arith.constant 0 : i32
    %c0_i32_0 = arith.constant 0 : i32
    return %arg0, %c0_i32, %arg1 : i32, i32, i32
  }
  func.func @transform_2(%arg0: i32, %arg1: i32) -> (i32, i32, i32) {
    %c0_i32 = arith.constant 0 : i32
    %c0_i32_0 = arith.constant 0 : i32
    return %arg0, %c0_i32, %arg1 : i32, i32, i32
  }
  func.func @transform_3(%arg0: i32, %arg1: i32) -> (i32, i32, i32) {
    %c0_i32 = arith.constant 0 : i32
    %c0_i32_0 = arith.constant 0 : i32
    %c0_i32_1 = arith.constant 0 : i32
    return %arg0, %c0_i32, %c0_i32_0 : i32, i32, i32
  }
  func.func @transform_4(%arg0: i32, %arg1: i32) -> (i32, i32, i32) {
    %c0_i32 = arith.constant 0 : i32
    %c0_i32_0 = arith.constant 0 : i32
    %c0_i32_1 = arith.constant 0 : i32
    return %arg0, %c0_i32, %c0_i32_0 : i32, i32, i32
  }
}

module attributes {stable_mosaic.version = 11 : i64} {
  func.func @_bn_relu_phase_kernel(%arg0: i32, %arg1: i32, %arg2: memref<1x8x512xf32, #tpu.memory_space<vmem>>, %arg3: memref<8x1xf32, #tpu.memory_space<vmem>>, %arg4: memref<8x1xf32, #tpu.memory_space<vmem>>, %arg5: memref<1x8x512xf32, #tpu.memory_space<vmem>>) attributes {dimension_semantics = [#tpu.dimension_semantics<parallel>, #tpu.dimension_semantics<parallel>], iteration_bounds = array<i64: 4, 1>, scalar_prefetch = 0 : i64, scratch_operands = 0 : i64, tpu.core_type = #tpu.core_type<tc>, window_params = [{transform_indices = @transform_0, window_bounds = array<i64: 1, 8, 512>}, {pipeline_mode = #tpu.pipeline_mode<synchronous>, transform_indices = @transform_1, window_bounds = array<i64: 8, 1>}, {pipeline_mode = #tpu.pipeline_mode<synchronous>, transform_indices = @transform_2, window_bounds = array<i64: 8, 1>}, {transform_indices = @transform_3, window_bounds = array<i64: 1, 8, 512>}]} {
    %c0 = arith.constant 0 : index
    %c0_0 = arith.constant 0 : index
    %c0_1 = arith.constant 0 : index
    %0 = vector.load %arg2[%c0, %c0_0, %c0_1] : memref<1x8x512xf32, #tpu.memory_space<vmem>>, vector<1x8x512xf32>
    %1 = vector.shape_cast %0 : vector<1x8x512xf32> to vector<8x512xf32>
    %c0_2 = arith.constant 0 : index
    %c0_3 = arith.constant 0 : index
    %2 = vector.load %arg3[%c0_2, %c0_3] : memref<8x1xf32, #tpu.memory_space<vmem>>, vector<8x1xf32>
    %3 = vector.broadcast %2 : vector<8x1xf32> to vector<8x512xf32>
    %4 = arith.mulf %1, %3 : vector<8x512xf32>
    %c0_4 = arith.constant 0 : index
    %c0_5 = arith.constant 0 : index
    %5 = vector.load %arg4[%c0_4, %c0_5] : memref<8x1xf32, #tpu.memory_space<vmem>>, vector<8x1xf32>
    %6 = vector.broadcast %5 : vector<8x1xf32> to vector<8x512xf32>
    %7 = arith.addf %4, %6 : vector<8x512xf32>
    %cst = arith.constant 0.000000e+00 : f32
    %8 = vector.broadcast %cst : f32 to vector<8x512xf32>
    %9 = arith.maximumf %7, %8 : vector<8x512xf32>
    %c0_6 = arith.constant 0 : index
    %c0_7 = arith.constant 0 : index
    %c0_8 = arith.constant 0 : index
    %10 = vector.load %arg5[%c0_6, %c0_7, %c0_8] : memref<1x8x512xf32, #tpu.memory_space<vmem>>, vector<1x8x512xf32>
    %11 = vector.shape_cast %10 : vector<1x8x512xf32> to vector<8x512xf32>
    %12 = vector.shape_cast %9 : vector<8x512xf32> to vector<1x8x512xf32>
    tpu.vector_store %arg5[%c0_6, %c0_7, %c0_8], %12 {strides = array<i32>} : memref<1x8x512xf32, #tpu.memory_space<vmem>>, vector<1x8x512xf32>,
    return
  }
  func.func @transform_0(%arg0: i32, %arg1: i32) -> (i32, i32, i32) {
    %c0_i32 = arith.constant 0 : i32
    %c0_i32_0 = arith.constant 0 : i32
    return %arg0, %c0_i32, %arg1 : i32, i32, i32
  }
  func.func @transform_1(%arg0: i32, %arg1: i32) -> (i32, i32) {
    %c0_i32 = arith.constant 0 : i32
    %c0_i32_0 = arith.constant 0 : i32
    %c0_i32_1 = arith.constant 0 : i32
    return %c0_i32, %c0_i32_0 : i32, i32
  }
  func.func @transform_2(%arg0: i32, %arg1: i32) -> (i32, i32) {
    %c0_i32 = arith.constant 0 : i32
    %c0_i32_0 = arith.constant 0 : i32
    %c0_i32_1 = arith.constant 0 : i32
    return %c0_i32, %c0_i32_0 : i32, i32
  }
  func.func @transform_3(%arg0: i32, %arg1: i32) -> (i32, i32, i32) {
    %c0_i32 = arith.constant 0 : i32
    %c0_i32_0 = arith.constant 0 : i32
    return %arg0, %c0_i32, %arg1 : i32, i32, i32
  }
}

module attributes {stable_mosaic.version = 11 : i64} {
  func.func @_convt_gemm_bias_sigmoid_kernel(%arg0: i32, %arg1: i32, %arg2: memref<1x3x32xf32, #tpu.memory_space<vmem>>, %arg3: memref<3x1xf32, #tpu.memory_space<vmem>>, %arg4: memref<1x32x2048xf32, #tpu.memory_space<vmem>>, %arg5: memref<1x3x2048xf32, #tpu.memory_space<vmem>>) attributes {dimension_semantics = [#tpu.dimension_semantics<parallel>, #tpu.dimension_semantics<parallel>], iteration_bounds = array<i64: 4, 1>, scalar_prefetch = 0 : i64, scratch_operands = 0 : i64, tpu.core_type = #tpu.core_type<tc>, window_params = [{transform_indices = @transform_0, window_bounds = array<i64: 1, 3, 32>}, {pipeline_mode = #tpu.pipeline_mode<synchronous>, transform_indices = @transform_1, window_bounds = array<i64: 3, 1>}, {transform_indices = @transform_2, window_bounds = array<i64: 1, 32, 2048>}, {transform_indices = @transform_3, window_bounds = array<i64: 1, 3, 2048>}]} {
    %c0 = arith.constant 0 : index
    %c0_0 = arith.constant 0 : index
    %c0_1 = arith.constant 0 : index
    %0 = vector.load %arg2[%c0, %c0_0, %c0_1] : memref<1x3x32xf32, #tpu.memory_space<vmem>>, vector<1x3x32xf32>
    %1 = vector.shape_cast %0 : vector<1x3x32xf32> to vector<3x32xf32>
    %c0_2 = arith.constant 0 : index
    %c0_3 = arith.constant 0 : index
    %c0_4 = arith.constant 0 : index
    %2 = vector.load %arg4[%c0_2, %c0_3, %c0_4] : memref<1x32x2048xf32, #tpu.memory_space<vmem>>, vector<1x32x2048xf32>
    %3 = vector.shape_cast %2 : vector<1x32x2048xf32> to vector<32x2048xf32>
    %cst = arith.constant dense<0.000000e+00> : vector<3x2048xf32>
    %4 = tpu.matmul %1, %3, %cst {dimension_numbers = #tpu.dot_dimension_numbers<[1], [0], [0], [1], [0, 0, 1, 1], [], []>} : vector<3x32xf32>, vector<32x2048xf32>, vector<3x2048xf32> -> vector<3x2048xf32>
    %c0_5 = arith.constant 0 : index
    %c0_6 = arith.constant 0 : index
    %5 = vector.load %arg3[%c0_5, %c0_6] : memref<3x1xf32, #tpu.memory_space<vmem>>, vector<3x1xf32>
    %6 = vector.broadcast %5 : vector<3x1xf32> to vector<3x2048xf32>
    %7 = arith.addf %4, %6 : vector<3x2048xf32>
    %8 = arith.negf %7 : vector<3x2048xf32>
    %9 = math.exp %8 : vector<3x2048xf32>
    %cst_7 = arith.constant 1.000000e+00 : f32
    %10 = vector.broadcast %cst_7 : f32 to vector<3x2048xf32>
    %11 = arith.addf %10, %9 : vector<3x2048xf32>
    %12 = arith.divf %10, %11 : vector<3x2048xf32>
    %c0_8 = arith.constant 0 : index
    %c0_9 = arith.constant 0 : index
    %c0_10 = arith.constant 0 : index
    %13 = vector.load %arg5[%c0_8, %c0_9, %c0_10] : memref<1x3x2048xf32, #tpu.memory_space<vmem>>, vector<1x3x2048xf32>
    %14 = vector.shape_cast %13 : vector<1x3x2048xf32> to vector<3x2048xf32>
    %15 = vector.shape_cast %12 : vector<3x2048xf32> to vector<1x3x2048xf32>
    tpu.vector_store %arg5[%c0_8, %c0_9, %c0_10], %15 {strides = array<i32>} : memref<1x3x2048xf32, #tpu.memory_space<vmem>>, vector<1x3x2048xf32>,
    return
  }
  func.func @transform_0(%arg0: i32, %arg1: i32) -> (i32, i32, i32) {
    %c0_i32 = arith.constant 0 : i32
    %c0_i32_0 = arith.constant 0 : i32
    %c0_i32_1 = arith.constant 0 : i32
    return %arg0, %c0_i32, %c0_i32_0 : i32, i32, i32
  }
  func.func @transform_1(%arg0: i32, %arg1: i32) -> (i32, i32) {
    %c0_i32 = arith.constant 0 : i32
    %c0_i32_0 = arith.constant 0 : i32
    %c0_i32_1 = arith.constant 0 : i32
    return %c0_i32, %c0_i32_0 : i32, i32
  }
  func.func @transform_2(%arg0: i32, %arg1: i32) -> (i32, i32, i32) {
    %c0_i32 = arith.constant 0 : i32
    %c0_i32_0 = arith.constant 0 : i32
    return %arg0, %c0_i32, %arg1 : i32, i32, i32
  }
  func.func @transform_3(%arg0: i32, %arg1: i32) -> (i32, i32, i32) {
    %c0_i32 = arith.constant 0 : i32
    %c0_i32_0 = arith.constant 0 : i32
    return %arg0, %c0_i32, %arg1 : i32, i32, i32
  }
}

</mosaic_0001>

<llo_original>
// kernel: lsun_decoder_forward.8
$region0: #{lsun_decoder_forward.8}
  #allocation0 [shape = 'u32[]', space=smem, size = 0x4, offset = 0x4, fixed_abs, tag = 'smem constant byte address 0x4 - core index']
  #allocation1 [shape = 'u32[72,128]{1,0:T(1,128)}', space=vmem, size = 0x9000, scoped, tag = 'internal scratch']
  %s0 = inlined_call_operand.hbm [shape: f32[2,16], index: 0, kind: input, shape index: {}]
  %s1 = inlined_call_operand.hbm [shape: f32[16,1024], index: 1, kind: input, shape index: {}]
  %s2 = inlined_call_operand.vmem [shape: f32[1024,64], index: 2, kind: input, shape index: {}]
  %s3 = inlined_call_operand.vmem [shape: f32[64,1024], index: 3, kind: input, shape index: {}]
  %s4 = inlined_call_operand.vmem [shape: f32[1,1024], index: 4, kind: input, shape index: {}]
  %s5 = inlined_call_operand.vmem [shape: f32[1,1024], index: 5, kind: input, shape index: {}]
  %s6 = inlined_call_operand.vmem [shape: f32[2,1024], index: 6, kind: output, shape index: {}]
  %s7 = sld [smem:[#allocation0]]
  $region42: #{lsun_decoder_forward.8} parent=0
    _
  %s9 = ssub.s32 1, %s7
  %s10 = scalar_select 0, %s9, %s7
  $region1: #{lsun_decoder_forward.8} parent=0
    #allocation2 [shape = 'u8[1024]{0}', space=vmem, size = 0x400, scoped, tag = 'input window, operand 0, single buffered']
    #allocation3 [shape = 's32[1]{0}', space=sflag, size = 0x4, scoped, tag = 'scoped memory for lsun_decoder_forward.8']
    #allocation4 [shape = 'u8[65536]{0}', space=vmem, size = 0x10000, scoped, tag = 'input window, operand 1, single buffered']
    #allocation5 [shape = 's32[1]{0}', space=sflag, size = 0x4, scoped, tag = 'scoped memory for lsun_decoder_forward.8']
    %11 = vsyncpa [#allocation3], 0
    %12 = vsyncpa [#allocation5], 0
    // Predicated region
    $region2: #{lsun_decoder_forward.8} parent=1 // pred_check
      _
    $region3: #{lsun_decoder_forward.8} parent=1 // pred_check_branch
      %14 = sbr.rel (0) target = $region5
    $region4: #{lsun_decoder_forward.8} parent=1 // pred_region
      %16 = vsyncadd [#allocation3], 0
      %s18 = sshll.u32 %s0, 4
      %s19 = int_to_ptr.hbm [resolvable:$true] %s18
      %s20 = sshll.u32 [#allocation2], 4
      %s21 = int_to_ptr.vmem [resolvable:$true] %s20
      %23 = dma.hbm_to_vmem [thread:$0]  %s19, 32, %s21, [#allocation3]
    $region5: #{lsun_decoder_forward.8} parent=1 // pred_fallthru
      _
    // Predicated region
    $region6: #{lsun_decoder_forward.8} parent=1 // pred_check
      _
    $region7: #{lsun_decoder_forward.8} parent=1 // pred_check_branch
      %25 = sbr.rel (0) target = $region9
    $region8: #{lsun_decoder_forward.8} parent=1 // pred_region
      %27 = vsyncadd [#allocation5], 0
      %s28 = sshll.u32 %s1, 4
      %s29 = int_to_ptr.hbm [resolvable:$true] %s28
      %s30 = sshll.u32 [#allocation4], 4
      %s31 = int_to_ptr.vmem [resolvable:$true] %s30
      %36 = dma.hbm_to_vmem [thread:$0]  %s29, 2048, %s31, [#allocation5], 1024, 1024, 64
    $region9: #{lsun_decoder_forward.8} parent=1 // pred_fallthru
      _
    // Predicated region
    $region10: #{lsun_decoder_forward.8} parent=1 // pred_check
      _
    $region11: #{lsun_decoder_forward.8} parent=1 // pred_check_branch
      %38 = sbr.rel (0) target = $region13
    $region12: #{lsun_decoder_forward.8} parent=1 // pred_region
      _
    $region13: #{lsun_decoder_forward.8} parent=1 // pred_fallthru
      _
    // Predicated region
    $region14: #{lsun_decoder_forward.8} parent=1 // pred_check
      _
    $region15: #{lsun_decoder_forward.8} parent=1 // pred_check_branch
      %40 = sbr.rel (0) target = $region17
    $region16: #{lsun_decoder_forward.8} parent=1 // pred_region
      _
    $region17: #{lsun_decoder_forward.8} parent=1 // pred_fallthru
      _
    // Predicated region
    $region18: #{lsun_decoder_forward.8} parent=1 // pred_check
      _
    $region19: #{lsun_decoder_forward.8} parent=1 // pred_check_branch
      %42 = sbr.rel (0) target = $region21
    $region20: #{lsun_decoder_forward.8} parent=1 // pred_region
      _
    $region21: #{lsun_decoder_forward.8} parent=1 // pred_fallthru
      _
    // Predicated region
    $region22: #{lsun_decoder_forward.8} parent=1 // pred_check
      _
    $region23: #{lsun_decoder_forward.8} parent=1 // pred_check_branch
      %44 = sbr.rel (0) target = $region25
    $region24: #{lsun_decoder_forward.8} parent=1 // pred_region
      _
    $region25: #{lsun_decoder_forward.8} parent=1 // pred_fallthru
      _
    // Predicated region
    $region26: #{lsun_decoder_forward.8} parent=1 // pred_check
      _
    $region27: #{lsun_decoder_forward.8} parent=1 // pred_check_branch
      %46 = sbr.rel (0) target = $region29
    $region28: #{lsun_decoder_forward.8} parent=1 // pred_region
      %48 = dma.done [#allocation3], 32
    $region29: #{lsun_decoder_forward.8} parent=1 // pred_fallthru
      _
    // Predicated region
    $region30: #{lsun_decoder_forward.8} parent=1 // pred_check
      _
    $region31: #{lsun_decoder_forward.8} parent=1 // pred_check_branch
      %50 = sbr.rel (0) target = $region33
    $region32: #{lsun_decoder_forward.8} parent=1 // pred_region
      %52 = dma.done [#allocation5], 2048
    $region33: #{lsun_decoder_forward.8} parent=1 // pred_fallthru
      _
    %v53 = vld [vmem:[#allocation2] sm:$0x3]
    %v54 = vld [vmem:[#allocation4] sm:$0xff]
    %v55 = vld [vmem:[#allocation4 + $0x8] sm:$0xff]
    %v56 = vld [vmem:[#allocation4 + $0x10] sm:$0xff]
    %v57 = vld [vmem:[#allocation4 + $0x18] sm:$0xff]
    %v58 = vld [vmem:[#allocation4 + $0x20] sm:$0xff]
    %v59 = vld [vmem:[#allocation4 + $0x28] sm:$0xff]
    %v60 = vld [vmem:[#allocation4 + $0x30] sm:$0xff]
    %v61 = vld [vmem:[#allocation4 + $0x38] sm:$0xff]
    %v62 = vld [vmem:[#allocation4 + $0x40] sm:$0xff]
    %v63 = vld [vmem:[#allocation4 + $0x48] sm:$0xff]
    %v64 = vld [vmem:[#allocation4 + $0x50] sm:$0xff]
    %v65 = vld [vmem:[#allocation4 + $0x58] sm:$0xff]
    %v66 = vld [vmem:[#allocation4 + $0x60] sm:$0xff]
    %v67 = vld [vmem:[#allocation4 + $0x68] sm:$0xff]
    %v68 = vld [vmem:[#allocation4 + $0x70] sm:$0xff]
    %v69 = vld [vmem:[#allocation4 + $0x78] sm:$0xff]
    %vm70 = vcmask 130048
    %v72 = vsel %vm70, %v53, 0
    %74 = vmatpush.msra.mxu0 0.0
    %75 = vmatpush.msra.mxu0 0.0
    %76 = vmatpush.msra.mxu0 0.0
    %77 = vmatpush.msra.mxu0 0.0
    %78 = vmatpush.msra.mxu0 0.0
    %79 = vmatpush.msra.mxu0 0.0
    %80 = vmatpush.msra.mxu0 0.0
    %81 = vmatpush.msra.mxu0 0.0
    %82 = vmatpush.msra.mxu0 0.0
    %83 = vmatpush.msra.mxu0 0.0
    %84 = vmatpush.msra.mxu0 0.0
    %85 = vmatpush.msra.mxu0 0.0
    %86 = vmatpush.msra.mxu0 0.0
    %87 = vmatpush.msra.mxu0 0.0
    %88 = vmatpush.msra.mxu0 %v62
    %89 = vmatpush.msra.mxu0 %v54
    %90 = vmatmul.f32.gmra.mxu0 %v72
    %v91 = vpop.f32.mrf.mxu0
    %v92 = vadd.f32 0.0, %v91
    %93 = vdwg.mxu0
    %94 = vmatpush.msra.mxu0 0.0
    %95 = vmatpush.msra.mxu0 0.0
    %96 = vmatpush.msra.mxu0 0.0
    %97 = vmatpush.msra.mxu0 0.0
    %98 = vmatpush.msra.mxu0 0.0
    %99 = vmatpush.msra.mxu0 0.0
    %100 = vmatpush.msra.mxu0 0.0
    %101 = vmatpush.msra.mxu0 0.0
    %102 = vmatpush.msra.mxu0 0.0
    %103 = vmatpush.msra.mxu0 0.0
    %104 = vmatpush.msra.mxu0 0.0
    %105 = vmatpush.msra.mxu0 0.0
    %106 = vmatpush.msra.mxu0 0.0
    %107 = vmatpush.msra.mxu0 0.0
    %108 = vmatpush.msra.mxu0 %v63
    %109 = vmatpush.msra.mxu0 %v55
    %110 = vmatmul.f32.gmra.mxu0 %v72
    %v111 = vpop.f32.mrf.mxu0
    %v112 = vadd.f32 0.0, %v111
    %113 = vdwg.mxu0
    %114 = vmatpush.msra.mxu0 0.0
    %115 = vmatpush.msra.mxu0 0.0
    %116 = vmatpush.msra.mxu0 0.0
    %117 = vmatpush.msra.mxu0 0.0
    %118 = vmatpush.msra.mxu0 0.0
    %119 = vmatpush.msra.mxu0 0.0
    %120 = vmatpush.msra.mxu0 0.0
    %121 = vmatpush.msra.mxu0 0.0
    %122 = vmatpush.msra.mxu0 0.0
    %123 = vmatpush.msra.mxu0 0.0
    %124 = vmatpush.msra.mxu0 0.0
    %125 = vmatpush.msra.mxu0 0.0
    %126 = vmatpush.msra.mxu0 0.0
    %127 = vmatpush.msra.mxu0 0.0
    %128 = vmatpush.msra.mxu0 %v64
    %129 = vmatpush.msra.mxu0 %v56
    %130 = vmatmul.f32.gmra.mxu0 %v72
    %v131 = vpop.f32.mrf.mxu0
    %v132 = vadd.f32 0.0, %v131
    %133 = vdwg.mxu0
    %134 = vmatpush.msra.mxu0 0.0
    %135 = vmatpush.msra.mxu0 0.0
    %136 = vmatpush.msra.mxu0 0.0
    %137 = vmatpush.msra.mxu0 0.0
    %138 = vmatpush.msra.mxu0 0.0
    %139 = vmatpush.msra.mxu0 0.0
    %140 = vmatpush.msra.mxu0 0.0
    %141 = vmatpush.msra.mxu0 0.0
    %142 = vmatpush.msra.mxu0 0.0
    %143 = vmatpush.msra.mxu0 0.0
    %144 = vmatpush.msra.mxu0 0.0
    %145 = vmatpush.msra.mxu0 0.0
    %146 = vmatpush.msra.mxu0 0.0
    %147 = vmatpush.msra.mxu0 0.0
    %148 = vmatpush.msra.mxu0 %v65
    %149 = vmatpush.msra.mxu0 %v57
    %150 = vmatmul.f32.gmra.mxu0 %v72
    %v151 = vpop.f32.mrf.mxu0
    %v152 = vadd.f32 0.0, %v151
    %153 = vdwg.mxu0
    %154 = vmatpush.msra.mxu0 0.0
    %155 = vmatpush.msra.mxu0 0.0
    %156 = vmatpush.msra.mxu0 0.0
    %157 = vmatpush.msra.mxu0 0.0
    %158 = vmatpush.msra.mxu0 0.0
    %159 = vmatpush.msra.mxu0 0.0
    %160 = vmatpush.msra.mxu0 0.0
    %161 = vmatpush.msra.mxu0 0.0
    %162 = vmatpush.msra.mxu0 0.0
    %163 = vmatpush.msra.mxu0 0.0
    %164 = vmatpush.msra.mxu0 0.0
    %165 = vmatpush.msra.mxu0 0.0
    %166 = vmatpush.msra.mxu0 0.0
    %167 = vmatpush.msra.mxu0 0.0
    %168 = vmatpush.msra.mxu0 %v66
    %169 = vmatpush.msra.mxu0 %v58
    %170 = vmatmul.f32.gmra.mxu0 %v72
    %v171 = vpop.f32.mrf.mxu0
    %v172 = vadd.f32 0.0, %v171
    %173 = vdwg.mxu0
    %174 = vmatpush.msra.mxu0 0.0
    %175 = vmatpush.msra.mxu0 0.0
    %176 = vmatpush.msra.mxu0 0.0
    %177 = vmatpush.msra.mxu0 0.0
    %178 = vmatpush.msra.mxu0 0.0
    %179 = vmatpush.msra.mxu0 0.0
    %180 = vmatpush.msra.mxu0 0.0
    %181 = vmatpush.msra.mxu0 0.0
    %182 = vmatpush.msra.mxu0 0.0
    %183 = vmatpush.msra.mxu0 0.0
    %184 = vmatpush.msra.mxu0 0.0
    %185 = vmatpush.msra.mxu0 0.0
    %186 = vmatpush.msra.mxu0 0.0
    %187 = vmatpush.msra.mxu0 0.0
    %188 = vmatpush.msra.mxu0 %v67
    %189 = vmatpush.msra.mxu0 %v59
    %190 = vmatmul.f32.gmra.mxu0 %v72
    %v191 = vpop.f32.mrf.mxu0
    %v192 = vadd.f32 0.0, %v191
    %193 = vdwg.mxu0
    %194 = vmatpush.msra.mxu0 0.0
    %195 = vmatpush.msra.mxu0 0.0
    %196 = vmatpush.msra.mxu0 0.0
    %197 = vmatpush.msra.mxu0 0.0
    %198 = vmatpush.msra.mxu0 0.0
    %199 = vmatpush.msra.mxu0 0.0
    %200 = vmatpush.msra.mxu0 0.0
    %201 = vmatpush.msra.mxu0 0.0
    %202 = vmatpush.msra.mxu0 0.0
    %203 = vmatpush.msra.mxu0 0.0
    %204 = vmatpush.msra.mxu0 0.0
    %205 = vmatpush.msra.mxu0 0.0
    %206 = vmatpush.msra.mxu0 0.0
    %207 = vmatpush.msra.mxu0 0.0
    %208 = vmatpush.msra.mxu0 %v68
    %209 = vmatpush.msra.mxu0 %v60
    %210 = vmatmul.f32.gmra.mxu0 %v72
    %v211 = vpop.f32.mrf.mxu0
    %v212 = vadd.f32 0.0, %v211
    %213 = vdwg.mxu0
    %214 = vmatpush.msra.mxu0 0.0
    %215 = vmatpush.msra.mxu0 0.0
    %216 = vmatpush.msra.mxu0 0.0
    %217 = vmatpush.msra.mxu0 0.0
    %218 = vmatpush.msra.mxu0 0.0
    %219 = vmatpush.msra.mxu0 0.0
    %220 = vmatpush.msra.mxu0 0.0
    %221 = vmatpush.msra.mxu0 0.0
    %222 = vmatpush.msra.mxu0 0.0
    %223 = vmatpush.msra.mxu0 0.0
    %224 = vmatpush.msra.mxu0 0.0
    %225 = vmatpush.msra.mxu0 0.0
    %226 = vmatpush.msra.mxu0 0.0
    %227 = vmatpush.msra.mxu0 0.0
    %228 = vmatpush.msra.mxu0 %v69
    %229 = vmatpush.msra.mxu0 %v61
    %230 = vmatmul.f32.gmra.mxu0 %v72
    %v231 = vpop.f32.mrf.mxu0
    %v232 = vadd.f32 0.0, %v231
    %233 = vdwg.mxu0
    %vm234 = vcmask 1041408
    %v235 = vsel %vm234, %v92, 0.0
    %v236 = vrot.slane %v235, 4
    %v237 = vadd.f32 %v235, %v236
    %v238 = vrot.slane %v237, 2
    %v239 = vadd.f32 %v237, %v238
    %v240 = vrot.slane %v239, 1
    %v241 = vadd.f32 %v239, %v240
    %v242 = vsel %vm234, %v112, 0.0
    %v243 = vrot.slane %v242, 4
    %v244 = vadd.f32 %v242, %v243
    %v245 = vrot.slane %v244, 2
    %v246 = vadd.f32 %v244, %v245
    %v247 = vrot.slane %v246, 1
    %v248 = vadd.f32 %v246, %v247
    %v249 = vsel %vm234, %v132, 0.0
    %v250 = vrot.slane %v249, 4
    %v251 = vadd.f32 %v249, %v250
    %v252 = vrot.slane %v251, 2
    %v253 = vadd.f32 %v251, %v252
    %v254 = vrot.slane %v253, 1
    %v255 = vadd.f32 %v253, %v254
    %v256 = vsel %vm234, %v152, 0.0
    %v257 = vrot.slane %v256, 4
    %v258 = vadd.f32 %v256, %v257
    %v259 = vrot.slane %v258, 2
    %v260 = vadd.f32 %v258, %v259
    %v261 = vrot.slane %v260, 1
    %v262 = vadd.f32 %v260, %v261
    %v263 = vsel %vm234, %v172, 0.0
    %v264 = vrot.slane %v263, 4
    %v265 = vadd.f32 %v263, %v264
    %v266 = vrot.slane %v265, 2
    %v267 = vadd.f32 %v265, %v266
    %v268 = vrot.slane %v267, 1
    %v269 = vadd.f32 %v267, %v268
    %v270 = vsel %vm234, %v192, 0.0
    %v271 = vrot.slane %v270, 4
    %v272 = vadd.f32 %v270, %v271
    %v273 = vrot.slane %v272, 2
    %v274 = vadd.f32 %v272, %v273
    %v275 = vrot.slane %v274, 1
    %v276 = vadd.f32 %v274, %v275
    %v277 = vsel %vm234, %v212, 0.0
    %v278 = vrot.slane %v277, 4
    %v279 = vadd.f32 %v277, %v278
    %v280 = vrot.slane %v279, 2
    %v281 = vadd.f32 %v279, %v280
    %v282 = vrot.slane %v281, 1
    %v283 = vadd.f32 %v281, %v282
    %v284 = vsel %vm234, %v232, 0.0
    %v285 = vrot.slane %v284, 4
    %v286 = vadd.f32 %v284, %v285
    %v287 = vrot.slane %v286, 2
    %v288 = vadd.f32 %v286, %v287
    %v289 = vrot.slane %v288, 1
    %v290 = vadd.f32 %v288, %v289
    %v291 = vmul.f32 %v92, %v92
    %v292 = vmul.f32 %v112, %v112
    %v293 = vmul.f32 %v132, %v132
    %v294 = vmul.f32 %v152, %v152
    %v295 = vmul.f32 %v172, %v172
    %v296 = vmul.f32 %v192, %v192
    %v297 = vmul.f32 %v212, %v212
    %v298 = vmul.f32 %v232, %v232
    %v299 = vsel %vm234, %v291, 0.0
    %v300 = vrot.slane %v299, 4
    %v301 = vadd.f32 %v299, %v300
    %v302 = vrot.slane %v301, 2
    %v303 = vadd.f32 %v301, %v302
    %v304 = vrot.slane %v303, 1
    %v305 = vadd.f32 %v303, %v304
    %v306 = vsel %vm234, %v292, 0.0
    %v307 = vrot.slane %v306, 4
    %v308 = vadd.f32 %v306, %v307
    %v309 = vrot.slane %v308, 2
    %v310 = vadd.f32 %v308, %v309
    %v311 = vrot.slane %v310, 1
    %v312 = vadd.f32 %v310, %v311
    %v313 = vsel %vm234, %v293, 0.0
    %v314 = vrot.slane %v313, 4
    %v315 = vadd.f32 %v313, %v314
    %v316 = vrot.slane %v315, 2
    %v317 = vadd.f32 %v315, %v316
    %v318 = vrot.slane %v317, 1
    %v319 = vadd.f32 %v317, %v318
    %v320 = vsel %vm234, %v294, 0.0
    %v321 = vrot.slane %v320, 4
    %v322 = vadd.f32 %v320, %v321
    %v323 = vrot.slane %v322, 2
    %v324 = vadd.f32 %v322, %v323
    %v325 = vrot.slane %v324, 1
    %v326 = vadd.f32 %v324, %v325
    %v327 = vsel %vm234, %v295, 0.0
    %v328 = vrot.slane %v327, 4
    %v329 = vadd.f32 %v327, %v328
    %v330 = vrot.slane %v329, 2
    %v331 = vadd.f32 %v329, %v330
    %v332 = vrot.slane %v331, 1
    %v333 = vadd.f32 %v331, %v332
    %v334 = vsel %vm234, %v296, 0.0
    %v335 = vrot.slane %v334, 4
    %v336 = vadd.f32 %v334, %v335
    %v337 = vrot.slane %v336, 2
    %v338 = vadd.f32 %v336, %v337
    %v339 = vrot.slane %v338, 1
    %v340 = vadd.f32 %v338, %v339
    %v341 = vsel %vm234, %v297, 0.0
    %v342 = vrot.slane %v341, 4
    %v343 = vadd.f32 %v341, %v342
    %v344 = vrot.slane %v343, 2
    %v345 = vadd.f32 %v343, %v344
    %v346 = vrot.slane %v345, 1
    %v347 = vadd.f32 %v345, %v346
    %v348 = vsel %vm234, %v298, 0.0
    %v349 = vrot.slane %v348, 4
    %v350 = vadd.f32 %v348, %v349
    %v351 = vrot.slane %v350, 2
    %v352 = vadd.f32 %v350, %v351
    %v353 = vrot.slane %v352, 1
    %v354 = vadd.f32 %v352, %v353
    %v355 = vld [vmem:[%s2] sm:$0xff]
    %v356 = vld [vmem:[%s2 + $0x8] sm:$0xff]
    %v357 = vld [vmem:[%s2 + $0x10] sm:$0xff]
    %v358 = vld [vmem:[%s2 + $0x18] sm:$0xff]
    %v359 = vld [vmem:[%s2 + $0x20] sm:$0xff]
    %v360 = vld [vmem:[%s2 + $0x28] sm:$0xff]
    %v361 = vld [vmem:[%s2 + $0x30] sm:$0xff]
    %v362 = vld [vmem:[%s2 + $0x38] sm:$0xff]
    %v363 = vld [vmem:[%s2 + $0x40] sm:$0xff]
    %v364 = vld [vmem:[%s2 + $0x48] sm:$0xff]
    %v365 = vld [vmem:[%s2 + $0x50] sm:$0xff]
    %v366 = vld [vmem:[%s2 + $0x58] sm:$0xff]
    %v367 = vld [vmem:[%s2 + $0x60] sm:$0xff]
    %v368 = vld [vmem:[%s2 + $0x68] sm:$0xff]
    %v369 = vld [vmem:[%s2 + $0x70] sm:$0xff]
    %v370 = vld [vmem:[%s2 + $0x78] sm:$0xff]
    %v371 = vld [vmem:[%s2 + $0x80] sm:$0xff]
    %v372 = vld [vmem:[%s2 + $0x88] sm:$0xff]
    %v373 = vld [vmem:[%s2 + $0x90] sm:$0xff]
    %v374 = vld [vmem:[%s2 + $0x98] sm:$0xff]
    %v375 = vld [vmem:[%s2 + $0xa0] sm:$0xff]
    %v376 = vld [vmem:[%s2 + $0xa8] sm:$0xff]
    %v377 = vld [vmem:[%s2 + $0xb0] sm:$0xff]
    %v378 = vld [vmem:[%s2 + $0xb8] sm:$0xff]
    %v379 = vld [vmem:[%s2 + $0xc0] sm:$0xff]
    %v380 = vld [vmem:[%s2 + $0xc8] sm:$0xff]
    %v381 = vld [vmem:[%s2 + $0xd0] sm:$0xff]
    %v382 = vld [vmem:[%s2 + $0xd8] sm:$0xff]
    %v383 = vld [vmem:[%s2 + $0xe0] sm:$0xff]
    %v384 = vld [vmem:[%s2 + $0xe8] sm:$0xff]
    %v385 = vld [vmem:[%s2 + $0xf0] sm:$0xff]
    %v386 = vld [vmem:[%s2 + $0xf8] sm:$0xff]
    %v387 = vld [vmem:[%s2 + $0x100] sm:$0xff]
    %v388 = vld [vmem:[%s2 + $0x108] sm:$0xff]
    %v389 = vld [vmem:[%s2 + $0x110] sm:$0xff]
    %v390 = vld [vmem:[%s2 + $0x118] sm:$0xff]
    %v391 = vld [vmem:[%s2 + $0x120] sm:$0xff]
    %v392 = vld [vmem:[%s2 + $0x128] sm:$0xff]
    %v393 = vld [vmem:[%s2 + $0x130] sm:$0xff]
    %v394 = vld [vmem:[%s2 + $0x138] sm:$0xff]
    %v395 = vld [vmem:[%s2 + $0x140] sm:$0xff]
    %v396 = vld [vmem:[%s2 + $0x148] sm:$0xff]
    %v397 = vld [vmem:[%s2 + $0x150] sm:$0xff]
    %v398 = vld [vmem:[%s2 + $0x158] sm:$0xff]
    %v399 = vld [vmem:[%s2 + $0x160] sm:$0xff]
    %v400 = vld [vmem:[%s2 + $0x168] sm:$0xff]
    %v401 = vld [vmem:[%s2 + $0x170] sm:$0xff]
    %v402 = vld [vmem:[%s2 + $0x178] sm:$0xff]
    %v403 = vld [vmem:[%s2 + $0x180] sm:$0xff]
    %v404 = vld [vmem:[%s2 + $0x188] sm:$0xff]
    %v405 = vld [vmem:[%s2 + $0x190] sm:$0xff]
    %v406 = vld [vmem:[%s2 + $0x198] sm:$0xff]
    %v407 = vld [vmem:[%s2 + $0x1a0] sm:$0xff]
    %v408 = vld [vmem:[%s2 + $0x1a8] sm:$0xff]
    %v409 = vld [vmem:[%s2 + $0x1b0] sm:$0xff]
    %v410 = vld [vmem:[%s2 + $0x1b8] sm:$0xff]
    %v411 = vld [vmem:[%s2 + $0x1c0] sm:$0xff]
    %v412 = vld [vmem:[%s2 + $0x1c8] sm:$0xff]
    %v413 = vld [vmem:[%s2 + $0x1d0] sm:$0xff]
    %v414 = vld [vmem:[%s2 + $0x1d8] sm:$0xff]
    %v415 = vld [vmem:[%s2 + $0x1e0] sm:$0xff]
    %v416 = vld [vmem:[%s2 + $0x1e8] sm:$0xff]
    %v417 = vld [vmem:[%s2 + $0x1f0] sm:$0xff]
    %v418 = vld [vmem:[%s2 + $0x1f8] sm:$0xff]
    %v419 = vld [vmem:[%s2 + $0x200] sm:$0xff]
    %v420 = vld [vmem:[%s2 + $0x208] sm:$0xff]
    %v421 = vld [vmem:[%s2 + $0x210] sm:$0xff]
    %v422 = vld [vmem:[%s2 + $0x218] sm:$0xff]
    %v423 = vld [vmem:[%s2 + $0x220] sm:$0xff]
    %v424 = vld [vmem:[%s2 + $0x228] sm:$0xff]
    %v425 = vld [vmem:[%s2 + $0x230] sm:$0xff]
    %v426 = vld [vmem:[%s2 + $0x238] sm:$0xff]
    %v427 = vld [vmem:[%s2 + $0x240] sm:$0xff]
    %v428 = vld [vmem:[%s2 + $0x248] sm:$0xff]
    %v429 = vld [vmem:[%s2 + $0x250] sm:$0xff]
    %v430 = vld [vmem:[%s2 + $0x258] sm:$0xff]
    %v431 = vld [vmem:[%s2 + $0x260] sm:$0xff]
    %v432 = vld [vmem:[%s2 + $0x268] sm:$0xff]
    %v433 = vld [vmem:[%s2 + $0x270] sm:$0xff]
    %v434 = vld [vmem:[%s2 + $0x278] sm:$0xff]
    %v435 = vld [vmem:[%s2 + $0x280] sm:$0xff]
    %v436 = vld [vmem:[%s2 + $0x288] sm:$0xff]
    %v437 = vld [vmem:[%s2 + $0x290] sm:$0xff]
    %v438 = vld [vmem:[%s2 + $0x298] sm:$0xff]
    %v439 = vld [vmem:[%s2 + $0x2a0] sm:$0xff]
    %v440 = vld [vmem:[%s2 + $0x2a8] sm:$0xff]
    %v441 = vld [vmem:[%s2 + $0x2b0] sm:$0xff]
    %v442 = vld [vmem:[%s2 + $0x2b8] sm:$0xff]
    %v443 = vld [vmem:[%s2 + $0x2c0] sm:$0xff]
    %v444 = vld [vmem:[%s2 + $0x2c8] sm:$0xff]
    %v445 = vld [vmem:[%s2 + $0x2d0] sm:$0xff]
    %v446 = vld [vmem:[%s2 + $0x2d8] sm:$0xff]
    %v447 = vld [vmem:[%s2 + $0x2e0] sm:$0xff]
    %v448 = vld [vmem:[%s2 + $0x2e8] sm:$0xff]
    %v449 = vld [vmem:[%s2 + $0x2f0] sm:$0xff]
    %v450 = vld [vmem:[%s2 + $0x2f8] sm:$0xff]
    %v451 = vld [vmem:[%s2 + $0x300] sm:$0xff]
    %v452 = vld [vmem:[%s2 + $0x308] sm:$0xff]
    %v453 = vld [vmem:[%s2 + $0x310] sm:$0xff]
    %v454 = vld [vmem:[%s2 + $0x318] sm:$0xff]
    %v455 = vld [vmem:[%s2 + $0x320] sm:$0xff]
    %v456 = vld [vmem:[%s2 + $0x328] sm:$0xff]
    %v457 = vld [vmem:[%s2 + $0x330] sm:$0xff]
    %v458 = vld [vmem:[%s2 + $0x338] sm:$0xff]
    %v459 = vld [vmem:[%s2 + $0x340] sm:$0xff]
    %v460 = vld [vmem:[%s2 + $0x348] sm:$0xff]
    %v461 = vld [vmem:[%s2 + $0x350] sm:$0xff]
    %v462 = vld [vmem:[%s2 + $0x358] sm:$0xff]
    %v463 = vld [vmem:[%s2 + $0x360] sm:$0xff]
    %v464 = vld [vmem:[%s2 + $0x368] sm:$0xff]
    %v465 = vld [vmem:[%s2 + $0x370] sm:$0xff]
    %v466 = vld [vmem:[%s2 + $0x378] sm:$0xff]
    %v467 = vld [vmem:[%s2 + $0x380] sm:$0xff]
    %v468 = vld [vmem:[%s2 + $0x388] sm:$0xff]
    %v469 = vld [vmem:[%s2 + $0x390] sm:$0xff]
    %v470 = vld [vmem:[%s2 + $0x398] sm:$0xff]
    %v471 = vld [vmem:[%s2 + $0x3a0] sm:$0xff]
    %v472 = vld [vmem:[%s2 + $0x3a8] sm:$0xff]
    %v473 = vld [vmem:[%s2 + $0x3b0] sm:$0xff]
    %v474 = vld [vmem:[%s2 + $0x3b8] sm:$0xff]
    %v475 = vld [vmem:[%s2 + $0x3c0] sm:$0xff]
    %v476 = vld [vmem:[%s2 + $0x3c8] sm:$0xff]
    %v477 = vld [vmem:[%s2 + $0x3d0] sm:$0xff]
    %v478 = vld [vmem:[%s2 + $0x3d8] sm:$0xff]
    %v479 = vld [vmem:[%s2 + $0x3e0] sm:$0xff]
    %v480 = vld [vmem:[%s2 + $0x3e8] sm:$0xff]
    %v481 = vld [vmem:[%s2 + $0x3f0] sm:$0xff]
    %v482 = vld [vmem:[%s2 + $0x3f8] sm:$0xff]
    %483 = vmatpush.msra.mxu0 %v370
    %484 = vmatpush.msra.mxu0 %v369
    %485 = vmatpush.msra.mxu0 %v368
    %486 = vmatpush.msra.mxu0 %v367
    %487 = vmatpush.msra.mxu0 %v366
    %488 = vmatpush.msra.mxu0 %v365
    %489 = vmatpush.msra.mxu0 %v364
    %490 = vmatpush.msra.mxu0 %v363
    %491 = vmatpush.msra.mxu0 %v362
    %492 = vmatpush.msra.mxu0 %v361
    %493 = vmatpush.msra.mxu0 %v360
    %494 = vmatpush.msra.mxu0 %v359
    %495 = vmatpush.msra.mxu0 %v358
    %496 = vmatpush.msra.mxu0 %v357
    %497 = vmatpush.msra.mxu0 %v356
    %498 = vmatpush.msra.mxu0 %v355
    %499 = vmatmul.f32.gmra.mxu0 %v241
    %v500 = vpop.f32.mrf.mxu0
    %v501 = vadd.f32 0.0, %v500
    %502 = vdwg.mxu0
    %503 = vmatpush.msra.mxu0 %v386
    %504 = vmatpush.msra.mxu0 %v385
    %505 = vmatpush.msra.mxu0 %v384
    %506 = vmatpush.msra.mxu0 %v383
    %507 = vmatpush.msra.mxu0 %v382
    %508 = vmatpush.msra.mxu0 %v381
    %509 = vmatpush.msra.mxu0 %v380
    %510 = vmatpush.msra.mxu0 %v379
    %511 = vmatpush.msra.mxu0 %v378
    %512 = vmatpush.msra.mxu0 %v377
    %513 = vmatpush.msra.mxu0 %v376
    %514 = vmatpush.msra.mxu0 %v375
    %515 = vmatpush.msra.mxu0 %v374
    %516 = vmatpush.msra.mxu0 %v373
    %517 = vmatpush.msra.mxu0 %v372
    %518 = vmatpush.msra.mxu0 %v371
    %519 = vmatmul.f32.gmra.mxu0 %v248
    %v520 = vpop.f32.mrf.mxu0
    %v521 = vadd.f32 %v501, %v520
    %522 = vdwg.mxu0
    %523 = vmatpush.msra.mxu0 %v402
    %524 = vmatpush.msra.mxu0 %v401
    %525 = vmatpush.msra.mxu0 %v400
    %526 = vmatpush.msra.mxu0 %v399
    %527 = vmatpush.msra.mxu0 %v398
    %528 = vmatpush.msra.mxu0 %v397
    %529 = vmatpush.msra.mxu0 %v396
    %530 = vmatpush.msra.mxu0 %v395
    %531 = vmatpush.msra.mxu0 %v394
    %532 = vmatpush.msra.mxu0 %v393
    %533 = vmatpush.msra.mxu0 %v392
    %534 = vmatpush.msra.mxu0 %v391
    %535 = vmatpush.msra.mxu0 %v390
    %536 = vmatpush.msra.mxu0 %v389
    %537 = vmatpush.msra.mxu0 %v388
    %538 = vmatpush.msra.mxu0 %v387
    %539 = vmatmul.f32.gmra.mxu0 %v255
    %v540 = vpop.f32.mrf.mxu0
    %v541 = vadd.f32 %v521, %v540
    %542 = vdwg.mxu0
    %543 = vmatpush.msra.mxu0 %v418
    %544 = vmatpush.msra.mxu0 %v417
    %545 = vmatpush.msra.mxu0 %v416
    %546 = vmatpush.msra.mxu0 %v415
    %547 = vmatpush.msra.mxu0 %v414
    %548 = vmatpush.msra.mxu0 %v413
    %549 = vmatpush.msra.mxu0 %v412
    %550 = vmatpush.msra.mxu0 %v411
    %551 = vmatpush.msra.mxu0 %v410
    %552 = vmatpush.msra.mxu0 %v409
    %553 = vmatpush.msra.mxu0 %v408
    %554 = vmatpush.msra.mxu0 %v407
    %555 = vmatpush.msra.mxu0 %v406
    %556 = vmatpush.msra.mxu0 %v405
    %557 = vmatpush.msra.mxu0 %v404
    %558 = vmatpush.msra.mxu0 %v403
    %559 = vmatmul.f32.gmra.mxu0 %v262
    %v560 = vpop.f32.mrf.mxu0
    %v561 = vadd.f32 %v541, %v560
    %562 = vdwg.mxu0
    %563 = vmatpush.msra.mxu0 %v434
    %564 = vmatpush.msra.mxu0 %v433
    %565 = vmatpush.msra.mxu0 %v432
    %566 = vmatpush.msra.mxu0 %v431
    %567 = vmatpush.msra.mxu0 %v430
    %568 = vmatpush.msra.mxu0 %v429
    %569 = vmatpush.msra.mxu0 %v428
    %570 = vmatpush.msra.mxu0 %v427
    %571 = vmatpush.msra.mxu0 %v426
    %572 = vmatpush.msra.mxu0 %v425
    %573 = vmatpush.msra.mxu0 %v424
    %574 = vmatpush.msra.mxu0 %v423
    %575 = vmatpush.msra.mxu0 %v422
    %576 = vmatpush.msra.mxu0 %v421
    %577 = vmatpush.msra.mxu0 %v420
    %578 = vmatpush.msra.mxu0 %v419
    %579 = vmatmul.f32.gmra.mxu0 %v269
    %v580 = vpop.f32.mrf.mxu0
    %v581 = vadd.f32 %v561, %v580
    %582 = vdwg.mxu0
    %583 = vmatpush.msra.mxu0 %v450
    %584 = vmatpush.msra.mxu0 %v449
    %585 = vmatpush.msra.mxu0 %v448
    %586 = vmatpush.msra.mxu0 %v447
    %587 = vmatpush.msra.mxu0 %v446
    %588 = vmatpush.msra.mxu0 %v445
    %589 = vmatpush.msra.mxu0 %v444
    %590 = vmatpush.msra.mxu0 %v443
    %591 = vmatpush.msra.mxu0 %v442
    %592 = vmatpush.msra.mxu0 %v441
    %593 = vmatpush.msra.mxu0 %v440
    %594 = vmatpush.msra.mxu0 %v439
    %595 = vmatpush.msra.mxu0 %v438
    %596 = vmatpush.msra.mxu0 %v437
    %597 = vmatpush.msra.mxu0 %v436
    %598 = vmatpush.msra.mxu0 %v435
    %599 = vmatmul.f32.gmra.mxu0 %v276
    %v600 = vpop.f32.mrf.mxu0
    %v601 = vadd.f32 %v581, %v600
    %602 = vdwg.mxu0
    %603 = vmatpush.msra.mxu0 %v466
    %604 = vmatpush.msra.mxu0 %v465
    %605 = vmatpush.msra.mxu0 %v464
    %606 = vmatpush.msra.mxu0 %v463
    %607 = vmatpush.msra.mxu0 %v462
    %608 = vmatpush.msra.mxu0 %v461
    %609 = vmatpush.msra.mxu0 %v460
    %610 = vmatpush.msra.mxu0 %v459
    %611 = vmatpush.msra.mxu0 %v458
    %612 = vmatpush.msra.mxu0 %v457
    %613 = vmatpush.msra.mxu0 %v456
    %614 = vmatpush.msra.mxu0 %v455
    %615 = vmatpush.msra.mxu0 %v454
    %616 = vmatpush.msra.mxu0 %v453
    %617 = vmatpush.msra.mxu0 %v452
    %618 = vmatpush.msra.mxu0 %v451
    %619 = vmatmul.f32.gmra.mxu0 %v283
    %v620 = vpop.f32.mrf.mxu0
    %v621 = vadd.f32 %v601, %v620
    %622 = vdwg.mxu0
    %623 = vmatpush.msra.mxu0 %v482
    %624 = vmatpush.msra.mxu0 %v481
    %625 = vmatpush.msra.mxu0 %v480
    %626 = vmatpush.msra.mxu0 %v479
    %627 = vmatpush.msra.mxu0 %v478
    %628 = vmatpush.msra.mxu0 %v477
    %629 = vmatpush.msra.mxu0 %v476
    %630 = vmatpush.msra.mxu0 %v475
    %631 = vmatpush.msra.mxu0 %v474
    %632 = vmatpush.msra.mxu0 %v473
    %633 = vmatpush.msra.mxu0 %v472
    %634 = vmatpush.msra.mxu0 %v471
    %635 = vmatpush.msra.mxu0 %v470
    %636 = vmatpush.msra.mxu0 %v469
    %637 = vmatpush.msra.mxu0 %v468
    %638 = vmatpush.msra.mxu0 %v467
    %639 = vmatmul.f32.gmra.mxu0 %v290
    %v640 = vpop.f32.mrf.mxu0
    %v641 = vadd.f32 %v621, %v640
    %642 = vdwg.mxu0
    %v643 = vmul.f32 %v641, 0.03125
    %644 = vmatpush.msra.mxu0 %v370
    %645 = vmatpush.msra.mxu0 %v369
    %646 = vmatpush.msra.mxu0 %v368
    %647 = vmatpush.msra.mxu0 %v367
    %648 = vmatpush.msra.mxu0 %v366
    %649 = vmatpush.msra.mxu0 %v365
    %650 = vmatpush.msra.mxu0 %v364
    %651 = vmatpush.msra.mxu0 %v363
    %652 = vmatpush.msra.mxu0 %v362
    %653 = vmatpush.msra.mxu0 %v361
    %654 = vmatpush.msra.mxu0 %v360
    %655 = vmatpush.msra.mxu0 %v359
    %656 = vmatpush.msra.mxu0 %v358
    %657 = vmatpush.msra.mxu0 %v357
    %658 = vmatpush.msra.mxu0 %v356
    %659 = vmatpush.msra.mxu0 %v355
    %660 = vmatmul.f32.gmra.mxu0 %v305
    %v661 = vpop.f32.mrf.mxu0
    %v662 = vadd.f32 0.0, %v661
    %663 = vdwg.mxu0
    %664 = vmatpush.msra.mxu0 %v386
    %665 = vmatpush.msra.mxu0 %v385
    %666 = vmatpush.msra.mxu0 %v384
    %667 = vmatpush.msra.mxu0 %v383
    %668 = vmatpush.msra.mxu0 %v382
    %669 = vmatpush.msra.mxu0 %v381
    %670 = vmatpush.msra.mxu0 %v380
    %671 = vmatpush.msra.mxu0 %v379
    %672 = vmatpush.msra.mxu0 %v378
    %673 = vmatpush.msra.mxu0 %v377
    %674 = vmatpush.msra.mxu0 %v376
    %675 = vmatpush.msra.mxu0 %v375
    %676 = vmatpush.msra.mxu0 %v374
    %677 = vmatpush.msra.mxu0 %v373
    %678 = vmatpush.msra.mxu0 %v372
    %679 = vmatpush.msra.mxu0 %v371
    %680 = vmatmul.f32.gmra.mxu0 %v312
    %v681 = vpop.f32.mrf.mxu0
    %v682 = vadd.f32 %v662, %v681
    %683 = vdwg.mxu0
    %684 = vmatpush.msra.mxu0 %v402
    %685 = vmatpush.msra.mxu0 %v401
    %686 = vmatpush.msra.mxu0 %v400
    %687 = vmatpush.msra.mxu0 %v399
    %688 = vmatpush.msra.mxu0 %v398
    %689 = vmatpush.msra.mxu0 %v397
    %690 = vmatpush.msra.mxu0 %v396
    %691 = vmatpush.msra.mxu0 %v395
    %692 = vmatpush.msra.mxu0 %v394
    %693 = vmatpush.msra.mxu0 %v393
    %694 = vmatpush.msra.mxu0 %v392
    %695 = vmatpush.msra.mxu0 %v391
    %696 = vmatpush.msra.mxu0 %v390
    %697 = vmatpush.msra.mxu0 %v389
    %698 = vmatpush.msra.mxu0 %v388
    %699 = vmatpush.msra.mxu0 %v387
    %700 = vmatmul.f32.gmra.mxu0 %v319
    %v701 = vpop.f32.mrf.mxu0
    %v702 = vadd.f32 %v682, %v701
    %703 = vdwg.mxu0
    %704 = vmatpush.msra.mxu0 %v418
    %705 = vmatpush.msra.mxu0 %v417
    %706 = vmatpush.msra.mxu0 %v416
    %707 = vmatpush.msra.mxu0 %v415
    %708 = vmatpush.msra.mxu0 %v414
    %709 = vmatpush.msra.mxu0 %v413
    %710 = vmatpush.msra.mxu0 %v412
    %711 = vmatpush.msra.mxu0 %v411
    %712 = vmatpush.msra.mxu0 %v410
    %713 = vmatpush.msra.mxu0 %v409
    %714 = vmatpush.msra.mxu0 %v408
    %715 = vmatpush.msra.mxu0 %v407
    %716 = vmatpush.msra.mxu0 %v406
    %717 = vmatpush.msra.mxu0 %v405
    %718 = vmatpush.msra.mxu0 %v404
    %719 = vmatpush.msra.mxu0 %v403
    %720 = vmatmul.f32.gmra.mxu0 %v326
    %v721 = vpop.f32.mrf.mxu0
    %v722 = vadd.f32 %v702, %v721
    %723 = vdwg.mxu0
    %724 = vmatpush.msra.mxu0 %v434
    %725 = vmatpush.msra.mxu0 %v433
    %726 = vmatpush.msra.mxu0 %v432
    %727 = vmatpush.msra.mxu0 %v431
    %728 = vmatpush.msra.mxu0 %v430
    %729 = vmatpush.msra.mxu0 %v429
    %730 = vmatpush.msra.mxu0 %v428
    %731 = vmatpush.msra.mxu0 %v427
    %732 = vmatpush.msra.mxu0 %v426
    %733 = vmatpush.msra.mxu0 %v425
    %734 = vmatpush.msra.mxu0 %v424
    %735 = vmatpush.msra.mxu0 %v423
    %736 = vmatpush.msra.mxu0 %v422
    %737 = vmatpush.msra.mxu0 %v421
    %738 = vmatpush.msra.mxu0 %v420
    %739 = vmatpush.msra.mxu0 %v419
    %740 = vmatmul.f32.gmra.mxu0 %v333
    %v741 = vpop.f32.mrf.mxu0
    %v742 = vadd.f32 %v722, %v741
    %743 = vdwg.mxu0
    %744 = vmatpush.msra.mxu0 %v450
    %745 = vmatpush.msra.mxu0 %v449
    %746 = vmatpush.msra.mxu0 %v448
    %747 = vmatpush.msra.mxu0 %v447
    %748 = vmatpush.msra.mxu0 %v446
    %749 = vmatpush.msra.mxu0 %v445
    %750 = vmatpush.msra.mxu0 %v444
    %751 = vmatpush.msra.mxu0 %v443
    %752 = vmatpush.msra.mxu0 %v442
    %753 = vmatpush.msra.mxu0 %v441
    %754 = vmatpush.msra.mxu0 %v440
    %755 = vmatpush.msra.mxu0 %v439
    %756 = vmatpush.msra.mxu0 %v438
    %757 = vmatpush.msra.mxu0 %v437
    %758 = vmatpush.msra.mxu0 %v436
    %759 = vmatpush.msra.mxu0 %v435
    %760 = vmatmul.f32.gmra.mxu0 %v340
    %v761 = vpop.f32.mrf.mxu0
    %v762 = vadd.f32 %v742, %v761
    %763 = vdwg.mxu0
    %764 = vmatpush.msra.mxu0 %v466
    %765 = vmatpush.msra.mxu0 %v465
    %766 = vmatpush.msra.mxu0 %v464
    %767 = vmatpush.msra.mxu0 %v463
    %768 = vmatpush.msra.mxu0 %v462
    %769 = vmatpush.msra.mxu0 %v461
    %770 = vmatpush.msra.mxu0 %v460
    %771 = vmatpush.msra.mxu0 %v459
    %772 = vmatpush.msra.mxu0 %v458
    %773 = vmatpush.msra.mxu0 %v457
    %774 = vmatpush.msra.mxu0 %v456
    %775 = vmatpush.msra.mxu0 %v455
    %776 = vmatpush.msra.mxu0 %v454
    %777 = vmatpush.msra.mxu0 %v453
    %778 = vmatpush.msra.mxu0 %v452
    %779 = vmatpush.msra.mxu0 %v451
    %780 = vmatmul.f32.gmra.mxu0 %v347
    %v781 = vpop.f32.mrf.mxu0
    %v782 = vadd.f32 %v762, %v781
    %783 = vdwg.mxu0
    %784 = vmatpush.msra.mxu0 %v482
    %785 = vmatpush.msra.mxu0 %v481
    %786 = vmatpush.msra.mxu0 %v480
    %787 = vmatpush.msra.mxu0 %v479
    %788 = vmatpush.msra.mxu0 %v478
    %789 = vmatpush.msra.mxu0 %v477
    %790 = vmatpush.msra.mxu0 %v476
    %791 = vmatpush.msra.mxu0 %v475
    %792 = vmatpush.msra.mxu0 %v474
    %793 = vmatpush.msra.mxu0 %v473
    %794 = vmatpush.msra.mxu0 %v472
    %795 = vmatpush.msra.mxu0 %v471
    %796 = vmatpush.msra.mxu0 %v470
    %797 = vmatpush.msra.mxu0 %v469
    %798 = vmatpush.msra.mxu0 %v468
    %799 = vmatpush.msra.mxu0 %v467
    %800 = vmatmul.f32.gmra.mxu0 %v354
    %v801 = vpop.f32.mrf.mxu0
    %v802 = vadd.f32 %v782, %v801
    %803 = vdwg.mxu0
    %v804 = vmul.f32 %v802, 0.03125
    %v805 = vmul.f32 %v643, %v643
    %v806 = vsub.f32 %v804, %v805
    %v807 = vadd.f32 %v806, 1e-05
    %v808 = vrsqrt.pop %v807
    %v809 = vmul.f32 %v808, %v807
    %v810 = vmul.f32 %v809, %v808
    %v811 = vmul.f32 0.5, %v810
    %v812 = vsub.f32 1.5, %v811
    %v813 = vmul.f32 %v808, %v812
    %vm814 = vweird.f32 %v807
    %vm815 = vweird.f32 %v808
    %vm816 = vmor %vm814, %vm815
    %v817 = vsel %vm816, %v808, %v813
    %v818 = vld [vmem:[%s3] sm:$0xff]
    %v819 = vld [vmem:[%s3 + $0x8] sm:$0xff]
    %v820 = vld [vmem:[%s3 + $0x10] sm:$0xff]
    %v821 = vld [vmem:[%s3 + $0x18] sm:$0xff]
    %v822 = vld [vmem:[%s3 + $0x20] sm:$0xff]
    %v823 = vld [vmem:[%s3 + $0x28] sm:$0xff]
    %v824 = vld [vmem:[%s3 + $0x30] sm:$0xff]
    %v825 = vld [vmem:[%s3 + $0x38] sm:$0xff]
    %v826 = vld [vmem:[%s3 + $0x40] sm:$0xff]
    %v827 = vld [vmem:[%s3 + $0x48] sm:$0xff]
    %v828 = vld [vmem:[%s3 + $0x50] sm:$0xff]
    %v829 = vld [vmem:[%s3 + $0x58] sm:$0xff]
    %v830 = vld [vmem:[%s3 + $0x60] sm:$0xff]
    %v831 = vld [vmem:[%s3 + $0x68] sm:$0xff]
    %v832 = vld [vmem:[%s3 + $0x70] sm:$0xff]
    %v833 = vld [vmem:[%s3 + $0x78] sm:$0xff]
    %v834 = vld [vmem:[%s3 + $0x80] sm:$0xff]
    %v835 = vld [vmem:[%s3 + $0x88] sm:$0xff]
    %v836 = vld [vmem:[%s3 + $0x90] sm:$0xff]
    %v837 = vld [vmem:[%s3 + $0x98] sm:$0xff]
    %v838 = vld [vmem:[%s3 + $0xa0] sm:$0xff]
    %v839 = vld [vmem:[%s3 + $0xa8] sm:$0xff]
    %v840 = vld [vmem:[%s3 + $0xb0] sm:$0xff]
    %v841 = vld [vmem:[%s3 + $0xb8] sm:$0xff]
    %v842 = vld [vmem:[%s3 + $0xc0] sm:$0xff]
    %v843 = vld [vmem:[%s3 + $0xc8] sm:$0xff]
    %v844 = vld [vmem:[%s3 + $0xd0] sm:$0xff]
    %v845 = vld [vmem:[%s3 + $0xd8] sm:$0xff]
    %v846 = vld [vmem:[%s3 + $0xe0] sm:$0xff]
    %v847 = vld [vmem:[%s3 + $0xe8] sm:$0xff]
    %v848 = vld [vmem:[%s3 + $0xf0] sm:$0xff]
    %v849 = vld [vmem:[%s3 + $0xf8] sm:$0xff]
    %v850 = vld [vmem:[%s3 + $0x100] sm:$0xff]
    %v851 = vld [vmem:[%s3 + $0x108] sm:$0xff]
    %v852 = vld [vmem:[%s3 + $0x110] sm:$0xff]
    %v853 = vld [vmem:[%s3 + $0x118] sm:$0xff]
    %v854 = vld [vmem:[%s3 + $0x120] sm:$0xff]
    %v855 = vld [vmem:[%s3 + $0x128] sm:$0xff]
    %v856 = vld [vmem:[%s3 + $0x130] sm:$0xff]
    %v857 = vld [vmem:[%s3 + $0x138] sm:$0xff]
    %v858 = vld [vmem:[%s3 + $0x140] sm:$0xff]
    %v859 = vld [vmem:[%s3 + $0x148] sm:$0xff]
    %v860 = vld [vmem:[%s3 + $0x150] sm:$0xff]
    %v861 = vld [vmem:[%s3 + $0x158] sm:$0xff]
    %v862 = vld [vmem:[%s3 + $0x160] sm:$0xff]
    %v863 = vld [vmem:[%s3 + $0x168] sm:$0xff]
    %v864 = vld [vmem:[%s3 + $0x170] sm:$0xff]
    %v865 = vld [vmem:[%s3 + $0x178] sm:$0xff]
    %v866 = vld [vmem:[%s3 + $0x180] sm:$0xff]
    %v867 = vld [vmem:[%s3 + $0x188] sm:$0xff]
    %v868 = vld [vmem:[%s3 + $0x190] sm:$0xff]
    %v869 = vld [vmem:[%s3 + $0x198] sm:$0xff]
    %v870 = vld [vmem:[%s3 + $0x1a0] sm:$0xff]
    %v871 = vld [vmem:[%s3 + $0x1a8] sm:$0xff]
    %v872 = vld [vmem:[%s3 + $0x1b0] sm:$0xff]
    %v873 = vld [vmem:[%s3 + $0x1b8] sm:$0xff]
    %v874 = vld [vmem:[%s3 + $0x1c0] sm:$0xff]
    %v875 = vld [vmem:[%s3 + $0x1c8] sm:$0xff]
    %v876 = vld [vmem:[%s3 + $0x1d0] sm:$0xff]
    %v877 = vld [vmem:[%s3 + $0x1d8] sm:$0xff]
    %v878 = vld [vmem:[%s3 + $0x1e0] sm:$0xff]
    %v879 = vld [vmem:[%s3 + $0x1e8] sm:$0xff]
    %v880 = vld [vmem:[%s3 + $0x1f0] sm:$0xff]
    %v881 = vld [vmem:[%s3 + $0x1f8] sm:$0xff]
    %vm882 = vcmask 523264
    %v884 = vsel %vm882, %v643, 0
    %886 = vmatpush.msra.mxu0 0.0
    %887 = vmatpush.msra.mxu0 0.0
    %888 = vmatpush.msra.mxu0 0.0
    %889 = vmatpush.msra.mxu0 0.0
    %890 = vmatpush.msra.mxu0 0.0
    %891 = vmatpush.msra.mxu0 0.0
    %892 = vmatpush.msra.mxu0 0.0
    %893 = vmatpush.msra.mxu0 0.0
    %894 = vmatpush.msra.mxu0 %v874
    %895 = vmatpush.msra.mxu0 %v866
    %896 = vmatpush.msra.mxu0 %v858
    %897 = vmatpush.msra.mxu0 %v850
    %898 = vmatpush.msra.mxu0 %v842
    %899 = vmatpush.msra.mxu0 %v834
    %900 = vmatpush.msra.mxu0 %v826
    %901 = vmatpush.msra.mxu0 %v818
    %902 = vmatmul.f32.gmra.mxu0 %v884
    %v903 = vpop.f32.mrf.mxu0
    %v904 = vadd.f32 0.0, %v903
    %905 = vdwg.mxu0
    %906 = vmatpush.msra.mxu0 0.0
    %907 = vmatpush.msra.mxu0 0.0
    %908 = vmatpush.msra.mxu0 0.0
    %909 = vmatpush.msra.mxu0 0.0
    %910 = vmatpush.msra.mxu0 0.0
    %911 = vmatpush.msra.mxu0 0.0
    %912 = vmatpush.msra.mxu0 0.0
    %913 = vmatpush.msra.mxu0 0.0
    %914 = vmatpush.msra.mxu0 %v875
    %915 = vmatpush.msra.mxu0 %v867
    %916 = vmatpush.msra.mxu0 %v859
    %917 = vmatpush.msra.mxu0 %v851
    %918 = vmatpush.msra.mxu0 %v843
    %919 = vmatpush.msra.mxu0 %v835
    %920 = vmatpush.msra.mxu0 %v827
    %921 = vmatpush.msra.mxu0 %v819
    %922 = vmatmul.f32.gmra.mxu0 %v884
    %v923 = vpop.f32.mrf.mxu0
    %v924 = vadd.f32 0.0, %v923
    %925 = vdwg.mxu0
    %926 = vmatpush.msra.mxu0 0.0
    %927 = vmatpush.msra.mxu0 0.0
    %928 = vmatpush.msra.mxu0 0.0
    %929 = vmatpush.msra.mxu0 0.0
    %930 = vmatpush.msra.mxu0 0.0
    %931 = vmatpush.msra.mxu0 0.0
    %932 = vmatpush.msra.mxu0 0.0
    %933 = vmatpush.msra.mxu0 0.0
    %934 = vmatpush.msra.mxu0 %v876
    %935 = vmatpush.msra.mxu0 %v868
    %936 = vmatpush.msra.mxu0 %v860
    %937 = vmatpush.msra.mxu0 %v852
    %938 = vmatpush.msra.mxu0 %v844
    %939 = vmatpush.msra.mxu0 %v836
    %940 = vmatpush.msra.mxu0 %v828
    %941 = vmatpush.msra.mxu0 %v820
    %942 = vmatmul.f32.gmra.mxu0 %v884
    %v943 = vpop.f32.mrf.mxu0
    %v944 = vadd.f32 0.0, %v943
    %945 = vdwg.mxu0
    %946 = vmatpush.msra.mxu0 0.0
    %947 = vmatpush.msra.mxu0 0.0
    %948 = vmatpush.msra.mxu0 0.0
    %949 = vmatpush.msra.mxu0 0.0
    %950 = vmatpush.msra.mxu0 0.0
    %951 = vmatpush.msra.mxu0 0.0
    %952 = vmatpush.msra.mxu0 0.0
    %953 = vmatpush.msra.mxu0 0.0
    %954 = vmatpush.msra.mxu0 %v877
    %955 = vmatpush.msra.mxu0 %v869
    %956 = vmatpush.msra.mxu0 %v861
    %957 = vmatpush.msra.mxu0 %v853
    %958 = vmatpush.msra.mxu0 %v845
    %959 = vmatpush.msra.mxu0 %v837
    %960 = vmatpush.msra.mxu0 %v829
    %961 = vmatpush.msra.mxu0 %v821
    %962 = vmatmul.f32.gmra.mxu0 %v884
    %v963 = vpop.f32.mrf.mxu0
    %v964 = vadd.f32 0.0, %v963
    %965 = vdwg.mxu0
    %966 = vmatpush.msra.mxu0 0.0
    %967 = vmatpush.msra.mxu0 0.0
    %968 = vmatpush.msra.mxu0 0.0
    %969 = vmatpush.msra.mxu0 0.0
    %970 = vmatpush.msra.mxu0 0.0
    %971 = vmatpush.msra.mxu0 0.0
    %972 = vmatpush.msra.mxu0 0.0
    %973 = vmatpush.msra.mxu0 0.0
    %974 = vmatpush.msra.mxu0 %v878
    %975 = vmatpush.msra.mxu0 %v870
    %976 = vmatpush.msra.mxu0 %v862
    %977 = vmatpush.msra.mxu0 %v854
    %978 = vmatpush.msra.mxu0 %v846
    %979 = vmatpush.msra.mxu0 %v838
    %980 = vmatpush.msra.mxu0 %v830
    %981 = vmatpush.msra.mxu0 %v822
    %982 = vmatmul.f32.gmra.mxu0 %v884
    %v983 = vpop.f32.mrf.mxu0
    %v984 = vadd.f32 0.0, %v983
    %985 = vdwg.mxu0
    %986 = vmatpush.msra.mxu0 0.0
    %987 = vmatpush.msra.mxu0 0.0
    %988 = vmatpush.msra.mxu0 0.0
    %989 = vmatpush.msra.mxu0 0.0
    %990 = vmatpush.msra.mxu0 0.0
    %991 = vmatpush.msra.mxu0 0.0
    %992 = vmatpush.msra.mxu0 0.0
    %993 = vmatpush.msra.mxu0 0.0
    %994 = vmatpush.msra.mxu0 %v879
    %995 = vmatpush.msra.mxu0 %v871
    %996 = vmatpush.msra.mxu0 %v863
    %997 = vmatpush.msra.mxu0 %v855
    %998 = vmatpush.msra.mxu0 %v847
    %999 = vmatpush.msra.mxu0 %v839
    %1000 = vmatpush.msra.mxu0 %v831
    %1001 = vmatpush.msra.mxu0 %v823
    %1002 = vmatmul.f32.gmra.mxu0 %v884
    %v1003 = vpop.f32.mrf.mxu0
    %v1004 = vadd.f32 0.0, %v1003
    %1005 = vdwg.mxu0
    %1006 = vmatpush.msra.mxu0 0.0
    %1007 = vmatpush.msra.mxu0 0.0
    %1008 = vmatpush.msra.mxu0 0.0
    %1009 = vmatpush.msra.mxu0 0.0
    %1010 = vmatpush.msra.mxu0 0.0
    %1011 = vmatpush.msra.mxu0 0.0
    %1012 = vmatpush.msra.mxu0 0.0
    %1013 = vmatpush.msra.mxu0 0.0
    %1014 = vmatpush.msra.mxu0 %v880
    %1015 = vmatpush.msra.mxu0 %v872
    %1016 = vmatpush.msra.mxu0 %v864
    %1017 = vmatpush.msra.mxu0 %v856
    %1018 = vmatpush.msra.mxu0 %v848
    %1019 = vmatpush.msra.mxu0 %v840
    %1020 = vmatpush.msra.mxu0 %v832
    %1021 = vmatpush.msra.mxu0 %v824
    %1022 = vmatmul.f32.gmra.mxu0 %v884
    %v1023 = vpop.f32.mrf.mxu0
    %v1024 = vadd.f32 0.0, %v1023
    %1025 = vdwg.mxu0
    %1026 = vmatpush.msra.mxu0 0.0
    %1027 = vmatpush.msra.mxu0 0.0
    %1028 = vmatpush.msra.mxu0 0.0
    %1029 = vmatpush.msra.mxu0 0.0
    %1030 = vmatpush.msra.mxu0 0.0
    %1031 = vmatpush.msra.mxu0 0.0
    %1032 = vmatpush.msra.mxu0 0.0
    %1033 = vmatpush.msra.mxu0 0.0
    %1034 = vmatpush.msra.mxu0 %v881
    %1035 = vmatpush.msra.mxu0 %v873
    %1036 = vmatpush.msra.mxu0 %v865
    %1037 = vmatpush.msra.mxu0 %v857
    %1038 = vmatpush.msra.mxu0 %v849
    %1039 = vmatpush.msra.mxu0 %v841
    %1040 = vmatpush.msra.mxu0 %v833
    %1041 = vmatpush.msra.mxu0 %v825
    %1042 = vmatmul.f32.gmra.mxu0 %v884
    %v1043 = vpop.f32.mrf.mxu0
    %v1044 = vadd.f32 0.0, %v1043
    %1045 = vdwg.mxu0
    %v1047 = vsel %vm882, %v817, 0
    %1049 = vmatpush.msra.mxu0 0.0
    %1050 = vmatpush.msra.mxu0 0.0
    %1051 = vmatpush.msra.mxu0 0.0
    %1052 = vmatpush.msra.mxu0 0.0
    %1053 = vmatpush.msra.mxu0 0.0
    %1054 = vmatpush.msra.mxu0 0.0
    %1055 = vmatpush.msra.mxu0 0.0
    %1056 = vmatpush.msra.mxu0 0.0
    %1057 = vmatpush.msra.mxu0 %v874
    %1058 = vmatpush.msra.mxu0 %v866
    %1059 = vmatpush.msra.mxu0 %v858
    %1060 = vmatpush.msra.mxu0 %v850
    %1061 = vmatpush.msra.mxu0 %v842
    %1062 = vmatpush.msra.mxu0 %v834
    %1063 = vmatpush.msra.mxu0 %v826
    %1064 = vmatpush.msra.mxu0 %v818
    %1065 = vmatmul.f32.gmra.mxu0 %v1047
    %v1066 = vpop.f32.mrf.mxu0
    %v1067 = vadd.f32 0.0, %v1066
    %1068 = vdwg.mxu0
    %1069 = vmatpush.msra.mxu0 0.0
    %1070 = vmatpush.msra.mxu0 0.0
    %1071 = vmatpush.msra.mxu0 0.0
    %1072 = vmatpush.msra.mxu0 0.0
    %1073 = vmatpush.msra.mxu0 0.0
    %1074 = vmatpush.msra.mxu0 0.0
    %1075 = vmatpush.msra.mxu0 0.0
    %1076 = vmatpush.msra.mxu0 0.0
    %1077 = vmatpush.msra.mxu0 %v875
    %1078 = vmatpush.msra.mxu0 %v867
    %1079 = vmatpush.msra.mxu0 %v859
    %1080 = vmatpush.msra.mxu0 %v851
    %1081 = vmatpush.msra.mxu0 %v843
    %1082 = vmatpush.msra.mxu0 %v835
    %1083 = vmatpush.msra.mxu0 %v827
    %1084 = vmatpush.msra.mxu0 %v819
    %1085 = vmatmul.f32.gmra.mxu0 %v1047
    %v1086 = vpop.f32.mrf.mxu0
    %v1087 = vadd.f32 0.0, %v1086
    %1088 = vdwg.mxu0
    %1089 = vmatpush.msra.mxu0 0.0
    %1090 = vmatpush.msra.mxu0 0.0
    %1091 = vmatpush.msra.mxu0 0.0
    %1092 = vmatpush.msra.mxu0 0.0
    %1093 = vmatpush.msra.mxu0 0.0
    %1094 = vmatpush.msra.mxu0 0.0
    %1095 = vmatpush.msra.mxu0 0.0
    %1096 = vmatpush.msra.mxu0 0.0
    %1097 = vmatpush.msra.mxu0 %v876
    %1098 = vmatpush.msra.mxu0 %v868
    %1099 = vmatpush.msra.mxu0 %v860
    %1100 = vmatpush.msra.mxu0 %v852
    %1101 = vmatpush.msra.mxu0 %v844
    %1102 = vmatpush.msra.mxu0 %v836
    %1103 = vmatpush.msra.mxu0 %v828
    %1104 = vmatpush.msra.mxu0 %v820
    %1105 = vmatmul.f32.gmra.mxu0 %v1047
    %v1106 = vpop.f32.mrf.mxu0
    %v1107 = vadd.f32 0.0, %v1106
    %1108 = vdwg.mxu0
    %1109 = vmatpush.msra.mxu0 0.0
    %1110 = vmatpush.msra.mxu0 0.0
    %1111 = vmatpush.msra.mxu0 0.0
    %1112 = vmatpush.msra.mxu0 0.0
    %1113 = vmatpush.msra.mxu0 0.0
    %1114 = vmatpush.msra.mxu0 0.0
    %1115 = vmatpush.msra.mxu0 0.0
    %1116 = vmatpush.msra.mxu0 0.0
    %1117 = vmatpush.msra.mxu0 %v877
    %1118 = vmatpush.msra.mxu0 %v869
    %1119 = vmatpush.msra.mxu0 %v861
    %1120 = vmatpush.msra.mxu0 %v853
    %1121 = vmatpush.msra.mxu0 %v845
    %1122 = vmatpush.msra.mxu0 %v837
    %1123 = vmatpush.msra.mxu0 %v829
    %1124 = vmatpush.msra.mxu0 %v821
    %1125 = vmatmul.f32.gmra.mxu0 %v1047
    %v1126 = vpop.f32.mrf.mxu0
    %v1127 = vadd.f32 0.0, %v1126
    %1128 = vdwg.mxu0
    %1129 = vmatpush.msra.mxu0 0.0
    %1130 = vmatpush.msra.mxu0 0.0
    %1131 = vmatpush.msra.mxu0 0.0
    %1132 = vmatpush.msra.mxu0 0.0
    %1133 = vmatpush.msra.mxu0 0.0
    %1134 = vmatpush.msra.mxu0 0.0
    %1135 = vmatpush.msra.mxu0 0.0
    %1136 = vmatpush.msra.mxu0 0.0
    %1137 = vmatpush.msra.mxu0 %v878
    %1138 = vmatpush.msra.mxu0 %v870
    %1139 = vmatpush.msra.mxu0 %v862
    %1140 = vmatpush.msra.mxu0 %v854
    %1141 = vmatpush.msra.mxu0 %v846
    %1142 = vmatpush.msra.mxu0 %v838
    %1143 = vmatpush.msra.mxu0 %v830
    %1144 = vmatpush.msra.mxu0 %v822
    %1145 = vmatmul.f32.gmra.mxu0 %v1047
    %v1146 = vpop.f32.mrf.mxu0
    %v1147 = vadd.f32 0.0, %v1146
    %1148 = vdwg.mxu0
    %1149 = vmatpush.msra.mxu0 0.0
    %1150 = vmatpush.msra.mxu0 0.0
    %1151 = vmatpush.msra.mxu0 0.0
    %1152 = vmatpush.msra.mxu0 0.0
    %1153 = vmatpush.msra.mxu0 0.0
    %1154 = vmatpush.msra.mxu0 0.0
    %1155 = vmatpush.msra.mxu0 0.0
    %1156 = vmatpush.msra.mxu0 0.0
    %1157 = vmatpush.msra.mxu0 %v879
    %1158 = vmatpush.msra.mxu0 %v871
    %1159 = vmatpush.msra.mxu0 %v863
    %1160 = vmatpush.msra.mxu0 %v855
    %1161 = vmatpush.msra.mxu0 %v847
    %1162 = vmatpush.msra.mxu0 %v839
    %1163 = vmatpush.msra.mxu0 %v831
    %1164 = vmatpush.msra.mxu0 %v823
    %1165 = vmatmul.f32.gmra.mxu0 %v1047
    %v1166 = vpop.f32.mrf.mxu0
    %v1167 = vadd.f32 0.0, %v1166
    %1168 = vdwg.mxu0
    %1169 = vmatpush.msra.mxu0 0.0
    %1170 = vmatpush.msra.mxu0 0.0
    %1171 = vmatpush.msra.mxu0 0.0
    %1172 = vmatpush.msra.mxu0 0.0
    %1173 = vmatpush.msra.mxu0 0.0
    %1174 = vmatpush.msra.mxu0 0.0
    %1175 = vmatpush.msra.mxu0 0.0
    %1176 = vmatpush.msra.mxu0 0.0
    %1177 = vmatpush.msra.mxu0 %v880
    %1178 = vmatpush.msra.mxu0 %v872
    %1179 = vmatpush.msra.mxu0 %v864
    %1180 = vmatpush.msra.mxu0 %v856
    %1181 = vmatpush.msra.mxu0 %v848
    %1182 = vmatpush.msra.mxu0 %v840
    %1183 = vmatpush.msra.mxu0 %v832
    %1184 = vmatpush.msra.mxu0 %v824
    %1185 = vmatmul.f32.gmra.mxu0 %v1047
    %v1186 = vpop.f32.mrf.mxu0
    %v1187 = vadd.f32 0.0, %v1186
    %1188 = vdwg.mxu0
    %1189 = vmatpush.msra.mxu0 0.0
    %1190 = vmatpush.msra.mxu0 0.0
    %1191 = vmatpush.msra.mxu0 0.0
    %1192 = vmatpush.msra.mxu0 0.0
    %1193 = vmatpush.msra.mxu0 0.0
    %1194 = vmatpush.msra.mxu0 0.0
    %1195 = vmatpush.msra.mxu0 0.0
    %1196 = vmatpush.msra.mxu0 0.0
    %1197 = vmatpush.msra.mxu0 %v881
    %1198 = vmatpush.msra.mxu0 %v873
    %1199 = vmatpush.msra.mxu0 %v865
    %1200 = vmatpush.msra.mxu0 %v857
    %1201 = vmatpush.msra.mxu0 %v849
    %1202 = vmatpush.msra.mxu0 %v841
    %1203 = vmatpush.msra.mxu0 %v833
    %1204 = vmatpush.msra.mxu0 %v825
    %1205 = vmatmul.f32.gmra.mxu0 %v1047
    %v1206 = vpop.f32.mrf.mxu0
    %v1207 = vadd.f32 0.0, %v1206
    %1208 = vdwg.mxu0
    %v1209 = vld [vmem:[%s4] sm:$0xff]
    %v1218 = vrot.slane %v1087, 7
    %v1219 = vrot.slane %v1107, 6
    %v1220 = vrot.slane %v1127, 5
    %v1221 = vrot.slane %v1147, 4
    %v1222 = vrot.slane %v1167, 3
    %v1223 = vrot.slane %v1187, 2
    %v1224 = vrot.slane %v1207, 1
    %vm1225 = vcmask 1040384
    %v1226 = vsel %vm1225, %v1067, %v1218
    %vm1227 = vcmask 1042434
    %v1228 = vsel %vm1227, %v1219, %v1220
    %v1229 = vsel %vm234, %v1226, %v1228
    %vm1230 = vcmask 1044484
    %v1231 = vsel %vm1230, %v1221, %v1222
    %vm1232 = vcmask 1046534
    %v1233 = vsel %vm1232, %v1223, %v1224
    %vm1234 = vcmask 1045508
    %v1235 = vsel %vm1234, %v1231, %v1233
    %vm1236 = vcmask 1043456
    %v1237 = vsel %vm1236, %v1229, %v1235
    %v1239 = vmul.f32 %v1209, %v1237
    %v1240 = vperm.slane %v904, 0
    %v1241 = vperm.slane %v924, 0
    %v1242 = vperm.slane %v944, 0
    %v1243 = vperm.slane %v964, 0
    %v1244 = vperm.slane %v984, 0
    %v1245 = vperm.slane %v1004, 0
    %v1246 = vperm.slane %v1024, 0
    %v1247 = vperm.slane %v1044, 0
    %v1248 = vsub.f32 %v92, %v1240
    %v1249 = vsub.f32 %v112, %v1241
    %v1250 = vsub.f32 %v132, %v1242
    %v1251 = vsub.f32 %v152, %v1243
    %v1252 = vsub.f32 %v172, %v1244
    %v1253 = vsub.f32 %v192, %v1245
    %v1254 = vsub.f32 %v212, %v1246
    %v1255 = vsub.f32 %v232, %v1247
    %v1257 = vperm.slane %v1239, 0
    %v1258 = vperm.slane %v1239, 1
    %v1259 = vperm.slane %v1239, 2
    %v1260 = vperm.slane %v1239, 3
    %v1261 = vperm.slane %v1239, 4
    %v1262 = vperm.slane %v1239, 5
    %v1263 = vperm.slane %v1239, 6
    %v1264 = vperm.slane %v1239, 7
    %v1273 = vmul.f32 %v1248, %v1257
    %v1274 = vmul.f32 %v1249, %v1258
    %v1275 = vmul.f32 %v1250, %v1259
    %v1276 = vmul.f32 %v1251, %v1260
    %v1277 = vmul.f32 %v1252, %v1261
    %v1278 = vmul.f32 %v1253, %v1262
    %v1279 = vmul.f32 %v1254, %v1263
    %v1280 = vmul.f32 %v1255, %v1264
    %v1281 = vld [vmem:[%s5] sm:$0xff]
    %v1283 = vperm.slane %v1281, 0
    %v1284 = vperm.slane %v1281, 1
    %v1285 = vperm.slane %v1281, 2
    %v1286 = vperm.slane %v1281, 3
    %v1287 = vperm.slane %v1281, 4
    %v1288 = vperm.slane %v1281, 5
    %v1289 = vperm.slane %v1281, 6
    %v1290 = vperm.slane %v1281, 7
    %v1299 = vadd.f32 %v1273, %v1283
    %v1300 = vadd.f32 %v1274, %v1284
    %v1301 = vadd.f32 %v1275, %v1285
    %v1302 = vadd.f32 %v1276, %v1286
    %v1303 = vadd.f32 %v1277, %v1287
    %v1304 = vadd.f32 %v1278, %v1288
    %v1305 = vadd.f32 %v1279, %v1289
    %v1306 = vadd.f32 %v1280, %v1290
    %v1307 = vmax.f32 %v1299, 0.0
    %v1308 = vmax.f32 %v1300, 0.0
    %v1309 = vmax.f32 %v1301, 0.0
    %v1310 = vmax.f32 %v1302, 0.0
    %v1311 = vmax.f32 %v1303, 0.0
    %v1312 = vmax.f32 %v1304, 0.0
    %v1313 = vmax.f32 %v1305, 0.0
    %v1314 = vmax.f32 %v1306, 0.0
    %v1323 = vrot.slane %v1308, 6
    %v1324 = vrot.slane %v1309, 4
    %v1325 = vrot.slane %v1310, 2
    %v1326 = vrot.slane %v1312, 6
    %v1327 = vrot.slane %v1313, 4
    %v1328 = vrot.slane %v1314, 2
    %v1329 = vsel %vm234, %v1307, %v1323
    %v1330 = vsel %vm1234, %v1324, %v1325
    %v1331 = vsel %vm1236, %v1329, %v1330
    %v1332 = vsel %vm234, %v1311, %v1326
    %v1333 = vsel %vm1234, %v1327, %v1328
    %v1334 = vsel %vm1236, %v1332, %v1333
    %1337 = vst [vmem:[%s6] sm:$0xff] %v1331
    %1338 = vst [vmem:[%s6 + $0x8] sm:$0xff] %v1334
    // Predicated region
    $region34: #{lsun_decoder_forward.8} parent=1 // pred_check
      _
    $region35: #{lsun_decoder_forward.8} parent=1 // pred_check_branch
      %1340 = sbr.rel (0) target = $region37
    $region36: #{lsun_decoder_forward.8} parent=1 // pred_region
      _
    $region37: #{lsun_decoder_forward.8} parent=1 // pred_fallthru
      _
    // Predicated region
    $region38: #{lsun_decoder_forward.8} parent=1 // pred_check
      _
    $region39: #{lsun_decoder_forward.8} parent=1 // pred_check_branch
      %1342 = sbr.rel (0) target = $region41
    $region40: #{lsun_decoder_forward.8} parent=1 // pred_region
      _
    $region41: #{lsun_decoder_forward.8} parent=1 // pred_fallthru
      _
    %1343 = vsyncpa [#allocation3], 1
    %1344 = vsyncpa [#allocation5], 1

// kernel: lsun_decoder_forward.9
$region0: #{lsun_decoder_forward.9}
  #allocation0 [shape = 'u32[]', space=smem, size = 0x4, offset = 0x4, fixed_abs, tag = 'smem constant byte address 0x4 - core index']
  #allocation1 [shape = 'u32[72,128]{1,0:T(1,128)}', space=vmem, size = 0x9000, scoped, tag = 'internal scratch']
  %s0 = inlined_call_operand.vmem [shape: f32[4,32,256], index: 0, kind: input, shape index: {}]
  %s1 = inlined_call_operand.vmem [shape: f32[4,256,32], index: 1, kind: input, shape index: {}]
  %s2 = inlined_call_operand.vmem [shape: f32[4,32,32], index: 2, kind: output, shape index: {0}]
  %s3 = inlined_call_operand.vmem [shape: f32[4,32,1], index: 3, kind: output, shape index: {1}]
  %s4 = inlined_call_operand.vmem [shape: f32[4,32,1], index: 4, kind: output, shape index: {2}]
  %5 = xla_tuple %s2, %s3, %s4
  %s6 = sld [smem:[#allocation0]]
  $region61: #{lsun_decoder_forward.9} parent=0
    _
  %s8 = ssub.s32 1, %s6
  %s9 = scalar_select 0, %s8, %s6
  loop: start=0, step=1, limit=6
  $region2: #{lsun_decoder_forward.9} parent=0 // loop_pre_header
    _
  $region3: #{lsun_decoder_forward.9} parent=0 // loop_header
    %s11 = sphi 0, %s15
    %p12 = scmp.ge.s32.totalorder %s11, 6
    %s18 = sphi 0, %s30
    %s19 = sphi 0, %s26
    %s20 = sphi 0, %s18
    %s21 = sphi 0, %s19
    %s22 = sphi 0, %s20
    %s23 = sphi 0, %s21
    %s33 = sphi 0, %s35
    %s36 = sphi 0, %s33
    %s37 = sphi 0, %s36
    %s53 = sphi 0, %s37
    %s61 = sphi 0, %s63
    %s64 = sphi 0, %s61
    %s65 = sphi 0, %s64
    %s81 = sphi 0, %s65
    %s89 = sphi 0, %s91
    %s92 = sphi 0, %s89
    %s93 = sphi 0, %s92
    %s109 = sphi 0, %s93
    %s115 = sphi 0, %s117
    %s118 = sphi 0, %s115
    %s119 = sphi 0, %s118
    %s135 = sphi 0, %s119
    %s141 = sphi 0, %s143
    %s144 = sphi 0, %s141
    %s145 = sphi 0, %s144
    %s161 = sphi 0, %s145
  $region4: #{lsun_decoder_forward.9} parent=0 // loop_header_branch
    %14 = sbr.rel (%p12) target = $region8
  $region5: #{lsun_decoder_forward.9} parent=0 // loop_body
    %s16 = ssub.s32 %s11, 1
    %s17 = ssub.s32 %s11, 2
    %s24 = sadd.s32 1, %s19
    %p25 = scmp.ge.s32.totalorder %s24, 1
    %s26 = scalar_select %p25, 0, %s24
    %s27 = sadd.s32 1, %s18
    %s28 = scalar_select %p25, %s27, %s18
    %p29 = scmp.ge.s32.totalorder %s28, 4
    %s30 = scalar_select %p29, 0, %s28
    %s31 = ssub.s32 %s18, %s30
    %p32 = scmp.eq.s32.totalorder %s31, 0
    %s34 = sadd.s32 %s33, 1
    %s35 = scalar_select %p32, %s33, %s34
    %p38 = pneg %p32
    %p39 = scmp.eq.s32.totalorder %s11, 3
    %p40 = por %p38, %p39
    %p41 = scmp.ne.s32.totalorder %s33, %s36
    %p42 = scmp.eq.s32.totalorder %s11, 0
    %p43 = por %p41, %p42
    %p44 = scmp.ne.s32.totalorder %s33, %s36
    %p45 = scmp.eq.s32.totalorder %s16, 3
    %p46 = por %p44, %p45
    %p47 = scmp.ne.s32.totalorder %s36, %s37
    %p48 = scmp.eq.s32.totalorder %s16, 0
    %p49 = por %p47, %p48
    %p50 = scmp.ne.s32.totalorder %s36, %s37
    %p51 = scmp.eq.s32.totalorder %s17, 3
    %p52 = por %p50, %p51
    %p54 = scmp.ne.s32.totalorder %s37, %s53
    %p55 = scmp.eq.s32.totalorder %s17, 0
    %p56 = por %p54, %p55
    %s57 = ssub.s32 %s18, %s30
    %s58 = ssub.s32 %s19, %s26
    %s59 = sor.u32 %s57, %s58
    %p60 = scmp.eq.s32.totalorder %s59, 0
    %s62 = sadd.s32 %s61, 1
    %s63 = scalar_select %p60, %s61, %s62
    %p66 = pneg %p60
    %p67 = scmp.eq.s32.totalorder %s11, 3
    %p68 = por %p66, %p67
    %p69 = scmp.ne.s32.totalorder %s61, %s64
    %p70 = scmp.eq.s32.totalorder %s11, 0
    %p71 = por %p69, %p70
    %p72 = scmp.ne.s32.totalorder %s61, %s64
    %p73 = scmp.eq.s32.totalorder %s16, 3
    %p74 = por %p72, %p73
    %p75 = scmp.ne.s32.totalorder %s64, %s65
    %p76 = scmp.eq.s32.totalorder %s16, 0
    %p77 = por %p75, %p76
    %p78 = scmp.ne.s32.totalorder %s64, %s65
    %p79 = scmp.eq.s32.totalorder %s17, 3
    %p80 = por %p78, %p79
    %p82 = scmp.ne.s32.totalorder %s65, %s81
    %p83 = scmp.eq.s32.totalorder %s17, 0
    %p84 = por %p82, %p83
    %s85 = ssub.s32 %s18, %s30
    %s86 = ssub.s32 %s19, %s26
    %s87 = sor.u32 %s85, %s86
    %p88 = scmp.eq.s32.totalorder %s87, 0
    %s90 = sadd.s32 %s89, 1
    %s91 = scalar_select %p88, %s89, %s90
    %p94 = pneg %p88
    %p95 = scmp.eq.s32.totalorder %s11, 3
    %p96 = por %p94, %p95
    %p97 = scmp.ne.s32.totalorder %s89, %s92
    %p98 = scmp.eq.s32.totalorder %s11, 0
    %p99 = por %p97, %p98
    %p100 = scmp.ne.s32.totalorder %s89, %s92
    %p101 = scmp.eq.s32.totalorder %s16, 3
    %p102 = por %p100, %p101
    %p103 = scmp.ne.s32.totalorder %s92, %s93
    %p104 = scmp.eq.s32.totalorder %s16, 0
    %p105 = por %p103, %p104
    %p106 = scmp.ne.s32.totalorder %s92, %s93
    %p107 = scmp.eq.s32.totalorder %s17, 3
    %p108 = por %p106, %p107
    %p110 = scmp.ne.s32.totalorder %s93, %s109
    %p111 = scmp.eq.s32.totalorder %s17, 0
    %p112 = por %p110, %p111
    %s113 = ssub.s32 %s18, %s30
    %p114 = scmp.eq.s32.totalorder %s113, 0
    %s116 = sadd.s32 %s115, 1
    %s117 = scalar_select %p114, %s115, %s116
    %p120 = pneg %p114
    %p121 = scmp.eq.s32.totalorder %s11, 3
    %p122 = por %p120, %p121
    %p123 = scmp.ne.s32.totalorder %s115, %s118
    %p124 = scmp.eq.s32.totalorder %s11, 0
    %p125 = por %p123, %p124
    %p126 = scmp.ne.s32.totalorder %s115, %s118
    %p127 = scmp.eq.s32.totalorder %s16, 3
    %p128 = por %p126, %p127
    %p129 = scmp.ne.s32.totalorder %s118, %s119
    %p130 = scmp.eq.s32.totalorder %s16, 0
    %p131 = por %p129, %p130
    %p132 = scmp.ne.s32.totalorder %s118, %s119
    %p133 = scmp.eq.s32.totalorder %s17, 3
    %p134 = por %p132, %p133
    %p136 = scmp.ne.s32.totalorder %s119, %s135
    %p137 = scmp.eq.s32.totalorder %s17, 0
    %p138 = por %p136, %p137
    %s139 = ssub.s32 %s18, %s30
    %p140 = scmp.eq.s32.totalorder %s139, 0
    %s142 = sadd.s32 %s141, 1
    %s143 = scalar_select %p140, %s141, %s142
    %p146 = pneg %p140
    %p147 = scmp.eq.s32.totalorder %s11, 3
    %p148 = por %p146, %p147
    %p149 = scmp.ne.s32.totalorder %s141, %s144
    %p150 = scmp.eq.s32.totalorder %s11, 0
    %p151 = por %p149, %p150
    %p152 = scmp.ne.s32.totalorder %s141, %s144
    %p153 = scmp.eq.s32.totalorder %s16, 3
    %p154 = por %p152, %p153
    %p155 = scmp.ne.s32.totalorder %s144, %s145
    %p156 = scmp.eq.s32.totalorder %s16, 0
    %p157 = por %p155, %p156
    %p158 = scmp.ne.s32.totalorder %s144, %s145
    %p159 = scmp.eq.s32.totalorder %s17, 3
    %p160 = por %p158, %p159
    %p162 = scmp.ne.s32.totalorder %s145, %s161
    %p163 = scmp.eq.s32.totalorder %s17, 0
    %p164 = por %p162, %p163
    %p165 = scmp.le.s32.totalorder 1, %s11
    %p166 = scmp.lt.s32.totalorder %s11, 5
    %p167 = pnand %p165, %p166
    %p168 = pneg %p167
    // Predicated region
    $region9: #{lsun_decoder_forward.9} parent=5 // pred_check
      _
    $region10: #{lsun_decoder_forward.9} parent=5 // pred_check_branch
      %170 = sbr.rel (%p167) target = $region12
    $region11: #{lsun_decoder_forward.9} parent=5 // pred_region
      %s171 = ssub.s32 %s11, 1
    $region12: #{lsun_decoder_forward.9} parent=5 // pred_fallthru
      _
    %p172 = scmp.lt.s32.totalorder %s11, 4
    // Predicated region
    $region13: #{lsun_decoder_forward.9} parent=5 // pred_check
      %p173 = pneg %p172
    $region14: #{lsun_decoder_forward.9} parent=5 // pred_check_branch
      %175 = sbr.rel (%p173) target = $region16
    $region15: #{lsun_decoder_forward.9} parent=5 // pred_region
      // Predicated region
      $region17: #{lsun_decoder_forward.9} parent=15 // pred_check
        %p176 = pneg %p43
      $region18: #{lsun_decoder_forward.9} parent=15 // pred_check_branch
        %178 = sbr.rel (%p176) target = $region20
      $region19: #{lsun_decoder_forward.9} parent=15 // pred_region
        %p179 = scmp.lt.s32.totalorder %s18, 3
        %s180 = scalar_select %p179, %s18, 3
        %s181 = smul.addr %s180, 8
        %s182 = smul.addr %s181, 8
        %s183 = scalar_lea.vmem %s0, %s182
      $region20: #{lsun_decoder_forward.9} parent=15 // pred_fallthru
        _
      // Predicated region
      $region21: #{lsun_decoder_forward.9} parent=15 // pred_check
        %p184 = pneg %p71
      $region22: #{lsun_decoder_forward.9} parent=15 // pred_check_branch
        %186 = sbr.rel (%p184) target = $region24
      $region23: #{lsun_decoder_forward.9} parent=15 // pred_region
        %p187 = scmp.lt.s32.totalorder %s18, 3
        %s188 = scalar_select %p187, %s18, 3
        %p189 = scmp.lt.s32.totalorder %s19, 0
        %s190 = scalar_select %p189, %s19, 0
        %s191 = smul.addr %s188, 32
        %s192 = sadd.s32 %s190, %s191
        %s193 = smul.addr %s192, 8
        %s194 = scalar_lea.vmem %s1, %s193
      $region24: #{lsun_decoder_forward.9} parent=15 // pred_fallthru
        _
    $region16: #{lsun_decoder_forward.9} parent=5 // pred_fallthru
      _
    %p195 = scmp.le.s32.totalorder 1, %s11
    %p196 = scmp.lt.s32.totalorder %s11, 5
    %p197 = pnand %p195, %p196
    %p198 = pneg %p197
    // Predicated region
    $region25: #{lsun_decoder_forward.9} parent=5 // pred_check
      _
    $region26: #{lsun_decoder_forward.9} parent=5 // pred_check_branch
      %200 = sbr.rel (%p197) target = $region28
    $region27: #{lsun_decoder_forward.9} parent=5 // pred_region
      %s201 = ssub.s32 %s11, 1
      %p202 = scmp.lt.s32.totalorder %s20, 3
      %s203 = scalar_select %p202, %s20, 3
      %s204 = smul.addr %s203, 8
      %s205 = smul.addr %s204, 8
      %s206 = scalar_lea.vmem %s0, %s205
      %p207 = pneg %p49
      %p208 = pneg %p46
      %p209 = scmp.lt.s32.totalorder %s20, 3
      %s210 = scalar_select %p209, %s20, 3
      %p211 = scmp.lt.s32.totalorder %s21, 0
      %s212 = scalar_select %p211, %s21, 0
      %s213 = smul.addr %s210, 32
      %s214 = sadd.s32 %s212, %s213
      %s215 = smul.addr %s214, 8
      %s216 = scalar_lea.vmem %s1, %s215
      %p217 = pneg %p77
      %p218 = pneg %p74
      %p219 = pneg %p105
      %p220 = pneg %p102
      %p221 = scmp.lt.s32.totalorder %s20, 3
      %s222 = scalar_select %p221, %s20, 3
      %p223 = scmp.lt.s32.totalorder %s21, 0
      %s224 = scalar_select %p223, %s21, 0
      %s225 = smul.addr %s222, 4
      %s226 = sadd.s32 %s224, %s225
      %s227 = smul.addr %s226, 8
      %s228 = scalar_lea.vmem %s2, %s227
      %p229 = pneg %p131
      %p230 = pneg %p128
      %p231 = scmp.lt.s32.totalorder %s20, 3
      %s232 = scalar_select %p231, %s20, 3
      %s233 = smul.addr %s232, 4
      %s234 = smul.addr %s233, 8
      %s235 = scalar_lea.vmem %s3, %s234
      %p236 = pneg %p157
      %p237 = pneg %p154
      %p238 = scmp.lt.s32.totalorder %s20, 3
      %s239 = scalar_select %p238, %s20, 3
      %s240 = smul.addr %s239, 4
      %s241 = smul.addr %s240, 8
      %s242 = scalar_lea.vmem %s4, %s241
      %p243 = scmp.lt.s32.totalorder %s20, 3
      %s244 = scalar_select %p243, %s20, 3
      %s245 = smul.addr %s244, 8
      %s246 = smul.addr %s245, 8
      %s247 = scalar_lea.vmem %s0, %s246
      %p248 = scmp.lt.s32.totalorder %s20, 3
      %s249 = scalar_select %p248, %s20, 3
      %p250 = scmp.lt.s32.totalorder %s21, 0
      %s251 = scalar_select %p250, %s21, 0
      %s252 = smul.addr %s249, 32
      %s253 = sadd.s32 %s251, %s252
      %s254 = smul.addr %s253, 8
      %s255 = scalar_lea.vmem %s1, %s254
      %p256 = scmp.lt.s32.totalorder %s20, 3
      %s257 = scalar_select %p256, %s20, 3
      %p258 = scmp.lt.s32.totalorder %s21, 0
      %s259 = scalar_select %p258, %s21, 0
      %s260 = smul.addr %s257, 4
      %s261 = sadd.s32 %s259, %s260
      %s262 = smul.addr %s261, 8
      %s263 = scalar_lea.vmem %s2, %s262
      %p264 = scmp.lt.s32.totalorder %s20, 3
      %s265 = scalar_select %p264, %s20, 3
      %s266 = smul.addr %s265, 4
      %s267 = smul.addr %s266, 8
      %s268 = scalar_lea.vmem %s3, %s267
      %p269 = scmp.lt.s32.totalorder %s20, 3
      %s270 = scalar_select %p269, %s20, 3
      %s271 = smul.addr %s270, 4
      %s272 = smul.addr %s271, 8
      %s273 = scalar_lea.vmem %s4, %s272
      %v274 = vld [vmem:[%s247] sm:$0xff]
      %v275 = vld [vmem:[%s247 + $0x8] sm:$0xff]
      %v276 = vld [vmem:[%s247 + $0x10] sm:$0xff]
      %v277 = vld [vmem:[%s247 + $0x18] sm:$0xff]
      %v278 = vld [vmem:[%s247 + $0x20] sm:$0xff]
      %v279 = vld [vmem:[%s247 + $0x28] sm:$0xff]
      %v280 = vld [vmem:[%s247 + $0x30] sm:$0xff]
      %v281 = vld [vmem:[%s247 + $0x38] sm:$0xff]
      %v282 = vld [vmem:[%s255] sm:$0xff]
      %v283 = vld [vmem:[%s255 + $0x8] sm:$0xff]
      %v284 = vld [vmem:[%s255 + $0x10] sm:$0xff]
      %v285 = vld [vmem:[%s255 + $0x18] sm:$0xff]
      %v286 = vld [vmem:[%s255 + $0x20] sm:$0xff]
      %v287 = vld [vmem:[%s255 + $0x28] sm:$0xff]
      %v288 = vld [vmem:[%s255 + $0x30] sm:$0xff]
      %v289 = vld [vmem:[%s255 + $0x38] sm:$0xff]
      %v290 = vld [vmem:[%s255 + $0x40] sm:$0xff]
      %v291 = vld [vmem:[%s255 + $0x48] sm:$0xff]
      %v292 = vld [vmem:[%s255 + $0x50] sm:$0xff]
      %v293 = vld [vmem:[%s255 + $0x58] sm:$0xff]
      %v294 = vld [vmem:[%s255 + $0x60] sm:$0xff]
      %v295 = vld [vmem:[%s255 + $0x68] sm:$0xff]
      %v296 = vld [vmem:[%s255 + $0x70] sm:$0xff]
      %v297 = vld [vmem:[%s255 + $0x78] sm:$0xff]
      %v298 = vld [vmem:[%s255 + $0x80] sm:$0xff]
      %v299 = vld [vmem:[%s255 + $0x88] sm:$0xff]
      %v300 = vld [vmem:[%s255 + $0x90] sm:$0xff]
      %v301 = vld [vmem:[%s255 + $0x98] sm:$0xff]
      %v302 = vld [vmem:[%s255 + $0xa0] sm:$0xff]
      %v303 = vld [vmem:[%s255 + $0xa8] sm:$0xff]
      %v304 = vld [vmem:[%s255 + $0xb0] sm:$0xff]
      %v305 = vld [vmem:[%s255 + $0xb8] sm:$0xff]
      %v306 = vld [vmem:[%s255 + $0xc0] sm:$0xff]
      %v307 = vld [vmem:[%s255 + $0xc8] sm:$0xff]
      %v308 = vld [vmem:[%s255 + $0xd0] sm:$0xff]
      %v309 = vld [vmem:[%s255 + $0xd8] sm:$0xff]
      %v310 = vld [vmem:[%s255 + $0xe0] sm:$0xff]
      %v311 = vld [vmem:[%s255 + $0xe8] sm:$0xff]
      %v312 = vld [vmem:[%s255 + $0xf0] sm:$0xff]
      %v313 = vld [vmem:[%s255 + $0xf8] sm:$0xff]
      %314 = vmatpush.msra.mxu0 %v297
      %315 = vmatpush.msra.mxu0 %v296
      %316 = vmatpush.msra.mxu0 %v295
      %317 = vmatpush.msra.mxu0 %v294
      %318 = vmatpush.msra.mxu0 %v293
      %319 = vmatpush.msra.mxu0 %v292
      %320 = vmatpush.msra.mxu0 %v291
      %321 = vmatpush.msra.mxu0 %v290
      %322 = vmatpush.msra.mxu0 %v289
      %323 = vmatpush.msra.mxu0 %v288
      %324 = vmatpush.msra.mxu0 %v287
      %325 = vmatpush.msra.mxu0 %v286
      %326 = vmatpush.msra.mxu0 %v285
      %327 = vmatpush.msra.mxu0 %v284
      %328 = vmatpush.msra.mxu0 %v283
      %329 = vmatpush.msra.mxu0 %v282
      %330 = vmatmul.f32.gmra.mxu0 %v274
      %v331 = vpop.f32.mrf.mxu0
      %v332 = vadd.f32 0.0, %v331
      %333 = vmatmul.f32.gmra.mxu0 %v276
      %v334 = vpop.f32.mrf.mxu0
      %v335 = vadd.f32 0.0, %v334
      %336 = vmatmul.f32.gmra.mxu0 %v278
      %v337 = vpop.f32.mrf.mxu0
      %v338 = vadd.f32 0.0, %v337
      %339 = vmatmul.f32.gmra.mxu0 %v280
      %v340 = vpop.f32.mrf.mxu0
      %v341 = vadd.f32 0.0, %v340
      %342 = vdwg.mxu0
      %343 = vmatpush.msra.mxu0 %v313
      %344 = vmatpush.msra.mxu0 %v312
      %345 = vmatpush.msra.mxu0 %v311
      %346 = vmatpush.msra.mxu0 %v310
      %347 = vmatpush.msra.mxu0 %v309
      %348 = vmatpush.msra.mxu0 %v308
      %349 = vmatpush.msra.mxu0 %v307
      %350 = vmatpush.msra.mxu0 %v306
      %351 = vmatpush.msra.mxu0 %v305
      %352 = vmatpush.msra.mxu0 %v304
      %353 = vmatpush.msra.mxu0 %v303
      %354 = vmatpush.msra.mxu0 %v302
      %355 = vmatpush.msra.mxu0 %v301
      %356 = vmatpush.msra.mxu0 %v300
      %357 = vmatpush.msra.mxu0 %v299
      %358 = vmatpush.msra.mxu0 %v298
      %359 = vmatmul.f32.gmra.mxu0 %v275
      %v360 = vpop.f32.mrf.mxu0
      %v361 = vadd.f32 %v332, %v360
      %362 = vmatmul.f32.gmra.mxu0 %v277
      %v363 = vpop.f32.mrf.mxu0
      %v364 = vadd.f32 %v335, %v363
      %365 = vmatmul.f32.gmra.mxu0 %v279
      %v366 = vpop.f32.mrf.mxu0
      %v367 = vadd.f32 %v338, %v366
      %368 = vmatmul.f32.gmra.mxu0 %v281
      %v369 = vpop.f32.mrf.mxu0
      %v370 = vadd.f32 %v341, %v369
      %371 = vdwg.mxu0
      %vm372 = vcmask 261120
      %373 = vst.msk [vmem:[%s263] sm:$0xff] %vm372, %v361
      %374 = vst.msk [vmem:[%s263 + $0x8] sm:$0xff] %vm372, %v364
      %375 = vst.msk [vmem:[%s263 + $0x10] sm:$0xff] %vm372, %v367
      %376 = vst.msk [vmem:[%s263 + $0x18] sm:$0xff] %vm372, %v370
      %p377 = scmp.eq.s32.totalorder %s21, 0
      // Predicated region
      $region29: #{lsun_decoder_forward.9} parent=27 // pred_check
        %p378 = pneg %p377
      $region30: #{lsun_decoder_forward.9} parent=27 // pred_check_branch
        %380 = sbr.rel (%p378) target = $region32
      $region31: #{lsun_decoder_forward.9} parent=27 // pred_region
        %vm381 = vcmask 7168
        %382 = vst.msk [vmem:[%s268] sm:$0xff] %vm381, 0.0
        %383 = vst.msk [vmem:[%s268 + $0x8] sm:$0xff] %vm381, 0.0
        %384 = vst.msk [vmem:[%s268 + $0x10] sm:$0xff] %vm381, 0.0
        %385 = vst.msk [vmem:[%s268 + $0x18] sm:$0xff] %vm381, 0.0
        %386 = vst.msk [vmem:[%s273] sm:$0xff] %vm381, 0.0
        %387 = vst.msk [vmem:[%s273 + $0x8] sm:$0xff] %vm381, 0.0
        %388 = vst.msk [vmem:[%s273 + $0x10] sm:$0xff] %vm381, 0.0
        %389 = vst.msk [vmem:[%s273 + $0x18] sm:$0xff] %vm381, 0.0
      $region32: #{lsun_decoder_forward.9} parent=27 // pred_fallthru
        _
      %v390 = vld [vmem:[%s268] sm:$0xff]
      %v391 = vld [vmem:[%s268 + $0x8] sm:$0xff]
      %v392 = vld [vmem:[%s268 + $0x10] sm:$0xff]
      %v393 = vld [vmem:[%s268 + $0x18] sm:$0xff]
      %v394 = vsel %vm372, %v361, 0.0
      %395 = vadd.xlane.f32.xlu0 %v394
      %v396 = vpop.xlane.xlu0 %395
      %v397 = vsel %vm372, %v364, 0.0
      %398 = vadd.xlane.f32.xlu0 %v397
      %v399 = vpop.xlane.xlu0 %398
      %v400 = vsel %vm372, %v367, 0.0
      %401 = vadd.xlane.f32.xlu0 %v400
      %v402 = vpop.xlane.xlu0 %401
      %v403 = vsel %vm372, %v370, 0.0
      %404 = vadd.xlane.f32.xlu0 %v403
      %v405 = vpop.xlane.xlu0 %404
      %v406 = vadd.f32 %v390, %v396
      %v407 = vadd.f32 %v391, %v399
      %v408 = vadd.f32 %v392, %v402
      %v409 = vadd.f32 %v393, %v405
      %vm410 = vcmask 7168
      %411 = vst.msk [vmem:[%s268] sm:$0xff] %vm410, %v406
      %412 = vst.msk [vmem:[%s268 + $0x8] sm:$0xff] %vm410, %v407
      %413 = vst.msk [vmem:[%s268 + $0x10] sm:$0xff] %vm410, %v408
      %414 = vst.msk [vmem:[%s268 + $0x18] sm:$0xff] %vm410, %v409
      %v415 = vld [vmem:[%s273] sm:$0xff]
      %v416 = vld [vmem:[%s273 + $0x8] sm:$0xff]
      %v417 = vld [vmem:[%s273 + $0x10] sm:$0xff]
      %v418 = vld [vmem:[%s273 + $0x18] sm:$0xff]
      %v419 = vmul.f32 %v361, %v361
      %v420 = vmul.f32 %v364, %v364
      %v421 = vmul.f32 %v367, %v367
      %v422 = vmul.f32 %v370, %v370
      %v423 = vsel %vm372, %v419, 0.0
      %424 = vadd.xlane.f32.xlu0 %v423
      %v425 = vpop.xlane.xlu0 %424
      %v426 = vsel %vm372, %v420, 0.0
      %427 = vadd.xlane.f32.xlu0 %v426
      %v428 = vpop.xlane.xlu0 %427
      %v429 = vsel %vm372, %v421, 0.0
      %430 = vadd.xlane.f32.xlu0 %v429
      %v431 = vpop.xlane.xlu0 %430
      %v432 = vsel %vm372, %v422, 0.0
      %433 = vadd.xlane.f32.xlu0 %v432
      %v434 = vpop.xlane.xlu0 %433
      %v435 = vadd.f32 %v415, %v425
      %v436 = vadd.f32 %v416, %v428
      %v437 = vadd.f32 %v417, %v431
      %v438 = vadd.f32 %v418, %v434
      %439 = vst.msk [vmem:[%s273] sm:$0xff] %vm410, %v435
      %440 = vst.msk [vmem:[%s273 + $0x8] sm:$0xff] %vm410, %v436
      %441 = vst.msk [vmem:[%s273 + $0x10] sm:$0xff] %vm410, %v437
      %442 = vst.msk [vmem:[%s273 + $0x18] sm:$0xff] %vm410, %v438
      %p443 = scmp.lt.s32.totalorder %s20, 3
      %s444 = scalar_select %p443, %s20, 3
      %p445 = scmp.lt.s32.totalorder %s21, 0
      %s446 = scalar_select %p445, %s21, 0
      %s447 = smul.addr %s444, 4
      %s448 = sadd.s32 %s446, %s447
      %s449 = smul.addr %s448, 8
      %s450 = scalar_lea.vmem %s2, %s449
      %p451 = scmp.lt.s32.totalorder %s20, 3
      %s452 = scalar_select %p451, %s20, 3
      %s453 = smul.addr %s452, 4
      %s454 = smul.addr %s453, 8
      %s455 = scalar_lea.vmem %s3, %s454
      %p456 = scmp.lt.s32.totalorder %s20, 3
      %s457 = scalar_select %p456, %s20, 3
      %s458 = smul.addr %s457, 4
      %s459 = smul.addr %s458, 8
      %s460 = scalar_lea.vmem %s4, %s459
      // Predicated region
      $region33: #{lsun_decoder_forward.9} parent=27 // pred_check
        %p461 = pneg %p102
      $region34: #{lsun_decoder_forward.9} parent=27 // pred_check_branch
        %463 = sbr.rel (%p461) target = $region36
      $region35: #{lsun_decoder_forward.9} parent=27 // pred_region
        _
      $region36: #{lsun_decoder_forward.9} parent=27 // pred_fallthru
        _
      // Predicated region
      $region37: #{lsun_decoder_forward.9} parent=27 // pred_check
        %p464 = pneg %p128
      $region38: #{lsun_decoder_forward.9} parent=27 // pred_check_branch
        %466 = sbr.rel (%p464) target = $region40
      $region39: #{lsun_decoder_forward.9} parent=27 // pred_region
        _
      $region40: #{lsun_decoder_forward.9} parent=27 // pred_fallthru
        _
      // Predicated region
      $region41: #{lsun_decoder_forward.9} parent=27 // pred_check
        %p467 = pneg %p154
      $region42: #{lsun_decoder_forward.9} parent=27 // pred_check_branch
        %469 = sbr.rel (%p467) target = $region44
      $region43: #{lsun_decoder_forward.9} parent=27 // pred_region
        _
      $region44: #{lsun_decoder_forward.9} parent=27 // pred_fallthru
        _
    $region28: #{lsun_decoder_forward.9} parent=5 // pred_fallthru
      _
    %p470 = scmp.le.s32.totalorder 2, %s11
    // Predicated region
    $region45: #{lsun_decoder_forward.9} parent=5 // pred_check
      %p471 = pneg %p470
    $region46: #{lsun_decoder_forward.9} parent=5 // pred_check_branch
      %473 = sbr.rel (%p471) target = $region48
    $region47: #{lsun_decoder_forward.9} parent=5 // pred_region
      %s474 = ssub.s32 %s11, 2
      // Predicated region
      $region49: #{lsun_decoder_forward.9} parent=47 // pred_check
        %p475 = pneg %p108
      $region50: #{lsun_decoder_forward.9} parent=47 // pred_check_branch
        %477 = sbr.rel (%p475) target = $region52
      $region51: #{lsun_decoder_forward.9} parent=47 // pred_region
        %p478 = scmp.lt.s32.totalorder %s22, 3
        %s479 = scalar_select %p478, %s22, 3
        %p480 = scmp.lt.s32.totalorder %s23, 0
        %s481 = scalar_select %p480, %s23, 0
        %s482 = smul.addr %s479, 4
        %s483 = sadd.s32 %s481, %s482
        %s484 = smul.addr %s483, 8
        %s485 = scalar_lea.vmem %s2, %s484
      $region52: #{lsun_decoder_forward.9} parent=47 // pred_fallthru
        _
      // Predicated region
      $region53: #{lsun_decoder_forward.9} parent=47 // pred_check
        %p486 = pneg %p134
      $region54: #{lsun_decoder_forward.9} parent=47 // pred_check_branch
        %488 = sbr.rel (%p486) target = $region56
      $region55: #{lsun_decoder_forward.9} parent=47 // pred_region
        %p489 = scmp.lt.s32.totalorder %s22, 3
        %s490 = scalar_select %p489, %s22, 3
        %s491 = smul.addr %s490, 4
        %s492 = smul.addr %s491, 8
        %s493 = scalar_lea.vmem %s3, %s492
      $region56: #{lsun_decoder_forward.9} parent=47 // pred_fallthru
        _
      // Predicated region
      $region57: #{lsun_decoder_forward.9} parent=47 // pred_check
        %p494 = pneg %p160
      $region58: #{lsun_decoder_forward.9} parent=47 // pred_check_branch
        %496 = sbr.rel (%p494) target = $region60
      $region59: #{lsun_decoder_forward.9} parent=47 // pred_region
        %p497 = scmp.lt.s32.totalorder %s22, 3
        %s498 = scalar_select %p497, %s22, 3
        %s499 = smul.addr %s498, 4
        %s500 = smul.addr %s499, 8
        %s501 = scalar_lea.vmem %s4, %s500
      $region60: #{lsun_decoder_forward.9} parent=47 // pred_fallthru
        _
    $region48: #{lsun_decoder_forward.9} parent=5 // pred_fallthru
      _
  $region6: #{lsun_decoder_forward.9} parent=0 // loop_footer
    %s15 = sadd.s32 1, %s11
  $region7: #{lsun_decoder_forward.9} parent=0 // loop_footer_branch
    %10 = sbr.rel target = $region3
  $region8: #{lsun_decoder_forward.9} parent=0 // loop_exit
    _

// kernel: lsun_decoder_forward.10
$region0: #{lsun_decoder_forward.10}
  #allocation0 [shape = 'u32[]', space=smem, size = 0x4, offset = 0x4, fixed_abs, tag = 'smem constant byte address 0x4 - core index']
  #allocation1 [shape = 'u32[72,128]{1,0:T(1,128)}', space=vmem, size = 0x9000, scoped, tag = 'internal scratch']
  %s0 = inlined_call_operand.vmem [shape: f32[4,32,32], index: 0, kind: input, shape index: {}]
  %s1 = inlined_call_operand.vmem [shape: f32[32,1], index: 1, kind: input, shape index: {}]
  %s2 = inlined_call_operand.vmem [shape: f32[32,1], index: 2, kind: input, shape index: {}]
  %s3 = inlined_call_operand.vmem [shape: f32[4,32,32], index: 3, kind: output, shape index: {}]
  %s4 = sld [smem:[#allocation0]]
  $region45: #{lsun_decoder_forward.10} parent=0
    _
  %s6 = ssub.s32 1, %s4
  %s7 = scalar_select 0, %s6, %s4
  loop: start=0, step=1, limit=6
  $region2: #{lsun_decoder_forward.10} parent=0 // loop_pre_header
    _
  $region3: #{lsun_decoder_forward.10} parent=0 // loop_header
    %s9 = sphi 0, %s13
    %p10 = scmp.ge.s32.totalorder %s9, 6
    %s16 = sphi 0, %s28
    %s17 = sphi 0, %s24
    %s18 = sphi 0, %s16
    %s19 = sphi 0, %s17
    %s20 = sphi 0, %s18
    %s21 = sphi 0, %s19
    %s33 = sphi 0, %s35
    %s36 = sphi 0, %s33
    %s37 = sphi 0, %s36
    %s53 = sphi 0, %s37
    %s57 = sphi 0, %s57
    %s59 = sphi 0, %s57
    %s60 = sphi 0, %s59
    %s74 = sphi 0, %s60
    %s78 = sphi 0, %s78
    %s80 = sphi 0, %s78
    %s81 = sphi 0, %s80
    %s95 = sphi 0, %s81
    %s103 = sphi 0, %s105
    %s106 = sphi 0, %s103
    %s107 = sphi 0, %s106
    %s123 = sphi 0, %s107
  $region4: #{lsun_decoder_forward.10} parent=0 // loop_header_branch
    %12 = sbr.rel (%p10) target = $region8
  $region5: #{lsun_decoder_forward.10} parent=0 // loop_body
    %s14 = ssub.s32 %s9, 1
    %s15 = ssub.s32 %s9, 2
    %s22 = sadd.s32 1, %s17
    %p23 = scmp.ge.s32.totalorder %s22, 1
    %s24 = scalar_select %p23, 0, %s22
    %s25 = sadd.s32 1, %s16
    %s26 = scalar_select %p23, %s25, %s16
    %p27 = scmp.ge.s32.totalorder %s26, 4
    %s28 = scalar_select %p27, 0, %s26
    %s29 = ssub.s32 %s16, %s28
    %s30 = ssub.s32 %s17, %s24
    %s31 = sor.u32 %s29, %s30
    %p32 = scmp.eq.s32.totalorder %s31, 0
    %s34 = sadd.s32 %s33, 1
    %s35 = scalar_select %p32, %s33, %s34
    %p38 = pneg %p32
    %p39 = scmp.eq.s32.totalorder %s9, 3
    %p40 = por %p38, %p39
    %p41 = scmp.ne.s32.totalorder %s33, %s36
    %p42 = scmp.eq.s32.totalorder %s9, 0
    %p43 = por %p41, %p42
    %p44 = scmp.ne.s32.totalorder %s33, %s36
    %p45 = scmp.eq.s32.totalorder %s14, 3
    %p46 = por %p44, %p45
    %p47 = scmp.ne.s32.totalorder %s36, %s37
    %p48 = scmp.eq.s32.totalorder %s14, 0
    %p49 = por %p47, %p48
    %p50 = scmp.ne.s32.totalorder %s36, %s37
    %p51 = scmp.eq.s32.totalorder %s15, 3
    %p52 = por %p50, %p51
    %p54 = scmp.ne.s32.totalorder %s37, %s53
    %p55 = scmp.eq.s32.totalorder %s15, 0
    %p56 = por %p54, %p55
    %s58 = sadd.s32 %s57, 1
    %p61 = scmp.eq.s32.totalorder %s9, 3
    %p62 = scmp.ne.s32.totalorder %s57, %s59
    %p63 = scmp.eq.s32.totalorder %s9, 0
    %p64 = por %p62, %p63
    %p65 = scmp.ne.s32.totalorder %s57, %s59
    %p66 = scmp.eq.s32.totalorder %s14, 3
    %p67 = por %p65, %p66
    %p68 = scmp.ne.s32.totalorder %s59, %s60
    %p69 = scmp.eq.s32.totalorder %s14, 0
    %p70 = por %p68, %p69
    %p71 = scmp.ne.s32.totalorder %s59, %s60
    %p72 = scmp.eq.s32.totalorder %s15, 3
    %p73 = por %p71, %p72
    %p75 = scmp.ne.s32.totalorder %s60, %s74
    %p76 = scmp.eq.s32.totalorder %s15, 0
    %p77 = por %p75, %p76
    %s79 = sadd.s32 %s78, 1
    %p82 = scmp.eq.s32.totalorder %s9, 3
    %p83 = scmp.ne.s32.totalorder %s78, %s80
    %p84 = scmp.eq.s32.totalorder %s9, 0
    %p85 = por %p83, %p84
    %p86 = scmp.ne.s32.totalorder %s78, %s80
    %p87 = scmp.eq.s32.totalorder %s14, 3
    %p88 = por %p86, %p87
    %p89 = scmp.ne.s32.totalorder %s80, %s81
    %p90 = scmp.eq.s32.totalorder %s14, 0
    %p91 = por %p89, %p90
    %p92 = scmp.ne.s32.totalorder %s80, %s81
    %p93 = scmp.eq.s32.totalorder %s15, 3
    %p94 = por %p92, %p93
    %p96 = scmp.ne.s32.totalorder %s81, %s95
    %p97 = scmp.eq.s32.totalorder %s15, 0
    %p98 = por %p96, %p97
    %s99 = ssub.s32 %s16, %s28
    %s100 = ssub.s32 %s17, %s24
    %s101 = sor.u32 %s99, %s100
    %p102 = scmp.eq.s32.totalorder %s101, 0
    %s104 = sadd.s32 %s103, 1
    %s105 = scalar_select %p102, %s103, %s104
    %p108 = pneg %p102
    %p109 = scmp.eq.s32.totalorder %s9, 3
    %p110 = por %p108, %p109
    %p111 = scmp.ne.s32.totalorder %s103, %s106
    %p112 = scmp.eq.s32.totalorder %s9, 0
    %p113 = por %p111, %p112
    %p114 = scmp.ne.s32.totalorder %s103, %s106
    %p115 = scmp.eq.s32.totalorder %s14, 3
    %p116 = por %p114, %p115
    %p117 = scmp.ne.s32.totalorder %s106, %s107
    %p118 = scmp.eq.s32.totalorder %s14, 0
    %p119 = por %p117, %p118
    %p120 = scmp.ne.s32.totalorder %s106, %s107
    %p121 = scmp.eq.s32.totalorder %s15, 3
    %p122 = por %p120, %p121
    %p124 = scmp.ne.s32.totalorder %s107, %s123
    %p125 = scmp.eq.s32.totalorder %s15, 0
    %p126 = por %p124, %p125
    %p127 = scmp.le.s32.totalorder 1, %s9
    %p128 = scmp.lt.s32.totalorder %s9, 5
    %p129 = pnand %p127, %p128
    %p130 = pneg %p129
    // Predicated region
    $region9: #{lsun_decoder_forward.10} parent=5 // pred_check
      _
    $region10: #{lsun_decoder_forward.10} parent=5 // pred_check_branch
      %132 = sbr.rel (%p129) target = $region12
    $region11: #{lsun_decoder_forward.10} parent=5 // pred_region
      %s133 = ssub.s32 %s9, 1
      // Predicated region
      $region13: #{lsun_decoder_forward.10} parent=11 // pred_check
        %p134 = pneg %p70
      $region14: #{lsun_decoder_forward.10} parent=11 // pred_check_branch
        %136 = sbr.rel (%p134) target = $region16
      $region15: #{lsun_decoder_forward.10} parent=11 // pred_region
        _
      $region16: #{lsun_decoder_forward.10} parent=11 // pred_fallthru
        _
      // Predicated region
      $region17: #{lsun_decoder_forward.10} parent=11 // pred_check
        %p137 = pneg %p91
      $region18: #{lsun_decoder_forward.10} parent=11 // pred_check_branch
        %139 = sbr.rel (%p137) target = $region20
      $region19: #{lsun_decoder_forward.10} parent=11 // pred_region
        _
      $region20: #{lsun_decoder_forward.10} parent=11 // pred_fallthru
        _
    $region12: #{lsun_decoder_forward.10} parent=5 // pred_fallthru
      _
    %p140 = scmp.lt.s32.totalorder %s9, 4
    // Predicated region
    $region21: #{lsun_decoder_forward.10} parent=5 // pred_check
      %p141 = pneg %p140
    $region22: #{lsun_decoder_forward.10} parent=5 // pred_check_branch
      %143 = sbr.rel (%p141) target = $region24
    $region23: #{lsun_decoder_forward.10} parent=5 // pred_region
      // Predicated region
      $region25: #{lsun_decoder_forward.10} parent=23 // pred_check
        %p144 = pneg %p43
      $region26: #{lsun_decoder_forward.10} parent=23 // pred_check_branch
        %146 = sbr.rel (%p144) target = $region28
      $region27: #{lsun_decoder_forward.10} parent=23 // pred_region
        %p147 = scmp.lt.s32.totalorder %s16, 3
        %s148 = scalar_select %p147, %s16, 3
        %p149 = scmp.lt.s32.totalorder %s17, 0
        %s150 = scalar_select %p149, %s17, 0
        %s151 = smul.addr %s148, 4
        %s152 = sadd.s32 %s150, %s151
        %s153 = smul.addr %s152, 8
        %s154 = scalar_lea.vmem %s0, %s153
      $region28: #{lsun_decoder_forward.10} parent=23 // pred_fallthru
        _
    $region24: #{lsun_decoder_forward.10} parent=5 // pred_fallthru
      _
    %p155 = scmp.le.s32.totalorder 1, %s9
    %p156 = scmp.lt.s32.totalorder %s9, 5
    %p157 = pnand %p155, %p156
    %p158 = pneg %p157
    // Predicated region
    $region29: #{lsun_decoder_forward.10} parent=5 // pred_check
      _
    $region30: #{lsun_decoder_forward.10} parent=5 // pred_check_branch
      %160 = sbr.rel (%p157) target = $region32
    $region31: #{lsun_decoder_forward.10} parent=5 // pred_region
      %s161 = ssub.s32 %s9, 1
      %p162 = scmp.lt.s32.totalorder %s18, 3
      %s163 = scalar_select %p162, %s18, 3
      %p164 = scmp.lt.s32.totalorder %s19, 0
      %s165 = scalar_select %p164, %s19, 0
      %s166 = smul.addr %s163, 4
      %s167 = sadd.s32 %s165, %s166
      %s168 = smul.addr %s167, 8
      %s169 = scalar_lea.vmem %s0, %s168
      %p170 = pneg %p49
      %p171 = pneg %p46
      %p172 = pneg %p70
      %p173 = pneg %p67
      %p174 = pneg %p91
      %p175 = pneg %p88
      %p176 = pneg %p119
      %p177 = pneg %p116
      %p178 = scmp.lt.s32.totalorder %s18, 3
      %s179 = scalar_select %p178, %s18, 3
      %p180 = scmp.lt.s32.totalorder %s19, 0
      %s181 = scalar_select %p180, %s19, 0
      %s182 = smul.addr %s179, 4
      %s183 = sadd.s32 %s181, %s182
      %s184 = smul.addr %s183, 8
      %s185 = scalar_lea.vmem %s3, %s184
      %p186 = scmp.lt.s32.totalorder %s18, 3
      %s187 = scalar_select %p186, %s18, 3
      %p188 = scmp.lt.s32.totalorder %s19, 0
      %s189 = scalar_select %p188, %s19, 0
      %s190 = smul.addr %s187, 4
      %s191 = sadd.s32 %s189, %s190
      %s192 = smul.addr %s191, 8
      %s193 = scalar_lea.vmem %s0, %s192
      %p194 = scmp.lt.s32.totalorder %s18, 3
      %s195 = scalar_select %p194, %s18, 3
      %p196 = scmp.lt.s32.totalorder %s19, 0
      %s197 = scalar_select %p196, %s19, 0
      %s198 = smul.addr %s195, 4
      %s199 = sadd.s32 %s197, %s198
      %s200 = smul.addr %s199, 8
      %s201 = scalar_lea.vmem %s3, %s200
      %v202 = vld [vmem:[%s193] sm:$0xff]
      %v203 = vld [vmem:[%s193 + $0x8] sm:$0xff]
      %v204 = vld [vmem:[%s193 + $0x10] sm:$0xff]
      %v205 = vld [vmem:[%s193 + $0x18] sm:$0xff]
      %v206 = vld [vmem:[%s1] sm:$0xff]
      %v207 = vld [vmem:[%s1 + $0x8] sm:$0xff]
      %v208 = vld [vmem:[%s1 + $0x10] sm:$0xff]
      %v209 = vld [vmem:[%s1 + $0x18] sm:$0xff]
      %211 = vset.pattern.permute.xlu0 0
      %212 = vperm.xlu0 %211, %v206
      %v213 = vpop.permute.xlu0 %212
      %216 = vset.pattern.permute.xlu0 0
      %217 = vperm.xlu0 %216, %v207
      %v218 = vpop.permute.xlu0 %217
      %221 = vset.pattern.permute.xlu0 0
      %222 = vperm.xlu0 %221, %v208
      %v223 = vpop.permute.xlu0 %222
      %226 = vset.pattern.permute.xlu0 0
      %227 = vperm.xlu0 %226, %v209
      %v228 = vpop.permute.xlu0 %227
      %v230 = vmul.f32 %v202, %v213
      %v231 = vmul.f32 %v203, %v218
      %v232 = vmul.f32 %v204, %v223
      %v233 = vmul.f32 %v205, %v228
      %v234 = vld [vmem:[%s2] sm:$0xff]
      %v235 = vld [vmem:[%s2 + $0x8] sm:$0xff]
      %v236 = vld [vmem:[%s2 + $0x10] sm:$0xff]
      %v237 = vld [vmem:[%s2 + $0x18] sm:$0xff]
      %239 = vset.pattern.permute.xlu0 0
      %240 = vperm.xlu0 %239, %v234
      %v241 = vpop.permute.xlu0 %240
      %244 = vset.pattern.permute.xlu0 0
      %245 = vperm.xlu0 %244, %v235
      %v246 = vpop.permute.xlu0 %245
      %249 = vset.pattern.permute.xlu0 0
      %250 = vperm.xlu0 %249, %v236
      %v251 = vpop.permute.xlu0 %250
      %254 = vset.pattern.permute.xlu0 0
      %255 = vperm.xlu0 %254, %v237
      %v256 = vpop.permute.xlu0 %255
      %v258 = vadd.f32 %v230, %v241
      %v259 = vadd.f32 %v231, %v246
      %v260 = vadd.f32 %v232, %v251
      %v261 = vadd.f32 %v233, %v256
      %v262 = vmax.f32 %v258, 0.0
      %v263 = vmax.f32 %v259, 0.0
      %v264 = vmax.f32 %v260, 0.0
      %v265 = vmax.f32 %v261, 0.0
      %vm266 = vcmask 261120
      %267 = vst.msk [vmem:[%s201] sm:$0xff] %vm266, %v262
      %268 = vst.msk [vmem:[%s201 + $0x8] sm:$0xff] %vm266, %v263
      %269 = vst.msk [vmem:[%s201 + $0x10] sm:$0xff] %vm266, %v264
      %270 = vst.msk [vmem:[%s201 + $0x18] sm:$0xff] %vm266, %v265
      %p271 = scmp.lt.s32.totalorder %s18, 3
      %s272 = scalar_select %p271, %s18, 3
      %p273 = scmp.lt.s32.totalorder %s19, 0
      %s274 = scalar_select %p273, %s19, 0
      %s275 = smul.addr %s272, 4
      %s276 = sadd.s32 %s274, %s275
      %s277 = smul.addr %s276, 8
      %s278 = scalar_lea.vmem %s3, %s277
      // Predicated region
      $region33: #{lsun_decoder_forward.10} parent=31 // pred_check
        %p279 = pneg %p116
      $region34: #{lsun_decoder_forward.10} parent=31 // pred_check_branch
        %281 = sbr.rel (%p279) target = $region36
      $region35: #{lsun_decoder_forward.10} parent=31 // pred_region
        _
      $region36: #{lsun_decoder_forward.10} parent=31 // pred_fallthru
        _
    $region32: #{lsun_decoder_forward.10} parent=5 // pred_fallthru
      _
    %p282 = scmp.le.s32.totalorder 2, %s9
    // Predicated region
    $region37: #{lsun_decoder_forward.10} parent=5 // pred_check
      %p283 = pneg %p282
    $region38: #{lsun_decoder_forward.10} parent=5 // pred_check_branch
      %285 = sbr.rel (%p283) target = $region40
    $region39: #{lsun_decoder_forward.10} parent=5 // pred_region
      %s286 = ssub.s32 %s9, 2
      // Predicated region
      $region41: #{lsun_decoder_forward.10} parent=39 // pred_check
        %p287 = pneg %p122
      $region42: #{lsun_decoder_forward.10} parent=39 // pred_check_branch
        %289 = sbr.rel (%p287) target = $region44
      $region43: #{lsun_decoder_forward.10} parent=39 // pred_region
        %p290 = scmp.lt.s32.totalorder %s20, 3
        %s291 = scalar_select %p290, %s20, 3
        %p292 = scmp.lt.s32.totalorder %s21, 0
        %s293 = scalar_select %p292, %s21, 0
        %s294 = smul.addr %s291, 4
        %s295 = sadd.s32 %s293, %s294
        %s296 = smul.addr %s295, 8
        %s297 = scalar_lea.vmem %s3, %s296
      $region44: #{lsun_decoder_forward.10} parent=39 // pred_fallthru
        _
    $region40: #{lsun_decoder_forward.10} parent=5 // pred_fallthru
      _
  $region6: #{lsun_decoder_forward.10} parent=0 // loop_footer
    %s13 = sadd.s32 1, %s9
  $region7: #{lsun_decoder_forward.10} parent=0 // loop_footer_branch
    %8 = sbr.rel target = $region3
  $region8: #{lsun_decoder_forward.10} parent=0 // loop_exit
    _

// kernel: lsun_decoder_forward.11
$region0: #{lsun_decoder_forward.11}
  #allocation0 [shape = 'u32[]', space=smem, size = 0x4, offset = 0x4, fixed_abs, tag = 'smem constant byte address 0x4 - core index']
  #allocation1 [shape = 'u32[72,128]{1,0:T(1,128)}', space=vmem, size = 0x9000, scoped, tag = 'internal scratch']
  %s0 = inlined_call_operand.vmem [shape: f32[4,16,128], index: 0, kind: input, shape index: {}]
  %s1 = inlined_call_operand.vmem [shape: f32[4,128,128], index: 1, kind: input, shape index: {}]
  %s2 = inlined_call_operand.vmem [shape: f32[4,16,128], index: 2, kind: output, shape index: {0}]
  %s3 = inlined_call_operand.vmem [shape: f32[4,16,1], index: 3, kind: output, shape index: {1}]
  %s4 = inlined_call_operand.vmem [shape: f32[4,16,1], index: 4, kind: output, shape index: {2}]
  %5 = xla_tuple %s2, %s3, %s4
  %s6 = sld [smem:[#allocation0]]
  $region61: #{lsun_decoder_forward.11} parent=0
    _
  %s8 = ssub.s32 1, %s6
  %s9 = scalar_select 0, %s8, %s6
  loop: start=0, step=1, limit=6
  $region2: #{lsun_decoder_forward.11} parent=0 // loop_pre_header
    _
  $region3: #{lsun_decoder_forward.11} parent=0 // loop_header
    %s11 = sphi 0, %s15
    %p12 = scmp.ge.s32.totalorder %s11, 6
    %s18 = sphi 0, %s30
    %s19 = sphi 0, %s26
    %s20 = sphi 0, %s18
    %s21 = sphi 0, %s19
    %s22 = sphi 0, %s20
    %s23 = sphi 0, %s21
    %s33 = sphi 0, %s35
    %s36 = sphi 0, %s33
    %s37 = sphi 0, %s36
    %s53 = sphi 0, %s37
    %s61 = sphi 0, %s63
    %s64 = sphi 0, %s61
    %s65 = sphi 0, %s64
    %s81 = sphi 0, %s65
    %s89 = sphi 0, %s91
    %s92 = sphi 0, %s89
    %s93 = sphi 0, %s92
    %s109 = sphi 0, %s93
    %s115 = sphi 0, %s117
    %s118 = sphi 0, %s115
    %s119 = sphi 0, %s118
    %s135 = sphi 0, %s119
    %s141 = sphi 0, %s143
    %s144 = sphi 0, %s141
    %s145 = sphi 0, %s144
    %s161 = sphi 0, %s145
  $region4: #{lsun_decoder_forward.11} parent=0 // loop_header_branch
    %14 = sbr.rel (%p12) target = $region8
  $region5: #{lsun_decoder_forward.11} parent=0 // loop_body
    %s16 = ssub.s32 %s11, 1
    %s17 = ssub.s32 %s11, 2
    %s24 = sadd.s32 1, %s19
    %p25 = scmp.ge.s32.totalorder %s24, 1
    %s26 = scalar_select %p25, 0, %s24
    %s27 = sadd.s32 1, %s18
    %s28 = scalar_select %p25, %s27, %s18
    %p29 = scmp.ge.s32.totalorder %s28, 4
    %s30 = scalar_select %p29, 0, %s28
    %s31 = ssub.s32 %s18, %s30
    %p32 = scmp.eq.s32.totalorder %s31, 0
    %s34 = sadd.s32 %s33, 1
    %s35 = scalar_select %p32, %s33, %s34
    %p38 = pneg %p32
    %p39 = scmp.eq.s32.totalorder %s11, 3
    %p40 = por %p38, %p39
    %p41 = scmp.ne.s32.totalorder %s33, %s36
    %p42 = scmp.eq.s32.totalorder %s11, 0
    %p43 = por %p41, %p42
    %p44 = scmp.ne.s32.totalorder %s33, %s36
    %p45 = scmp.eq.s32.totalorder %s16, 3
    %p46 = por %p44, %p45
    %p47 = scmp.ne.s32.totalorder %s36, %s37
    %p48 = scmp.eq.s32.totalorder %s16, 0
    %p49 = por %p47, %p48
    %p50 = scmp.ne.s32.totalorder %s36, %s37
    %p51 = scmp.eq.s32.totalorder %s17, 3
    %p52 = por %p50, %p51
    %p54 = scmp.ne.s32.totalorder %s37, %s53
    %p55 = scmp.eq.s32.totalorder %s17, 0
    %p56 = por %p54, %p55
    %s57 = ssub.s32 %s18, %s30
    %s58 = ssub.s32 %s19, %s26
    %s59 = sor.u32 %s57, %s58
    %p60 = scmp.eq.s32.totalorder %s59, 0
    %s62 = sadd.s32 %s61, 1
    %s63 = scalar_select %p60, %s61, %s62
    %p66 = pneg %p60
    %p67 = scmp.eq.s32.totalorder %s11, 3
    %p68 = por %p66, %p67
    %p69 = scmp.ne.s32.totalorder %s61, %s64
    %p70 = scmp.eq.s32.totalorder %s11, 0
    %p71 = por %p69, %p70
    %p72 = scmp.ne.s32.totalorder %s61, %s64
    %p73 = scmp.eq.s32.totalorder %s16, 3
    %p74 = por %p72, %p73
    %p75 = scmp.ne.s32.totalorder %s64, %s65
    %p76 = scmp.eq.s32.totalorder %s16, 0
    %p77 = por %p75, %p76
    %p78 = scmp.ne.s32.totalorder %s64, %s65
    %p79 = scmp.eq.s32.totalorder %s17, 3
    %p80 = por %p78, %p79
    %p82 = scmp.ne.s32.totalorder %s65, %s81
    %p83 = scmp.eq.s32.totalorder %s17, 0
    %p84 = por %p82, %p83
    %s85 = ssub.s32 %s18, %s30
    %s86 = ssub.s32 %s19, %s26
    %s87 = sor.u32 %s85, %s86
    %p88 = scmp.eq.s32.totalorder %s87, 0
    %s90 = sadd.s32 %s89, 1
    %s91 = scalar_select %p88, %s89, %s90
    %p94 = pneg %p88
    %p95 = scmp.eq.s32.totalorder %s11, 3
    %p96 = por %p94, %p95
    %p97 = scmp.ne.s32.totalorder %s89, %s92
    %p98 = scmp.eq.s32.totalorder %s11, 0
    %p99 = por %p97, %p98
    %p100 = scmp.ne.s32.totalorder %s89, %s92
    %p101 = scmp.eq.s32.totalorder %s16, 3
    %p102 = por %p100, %p101
    %p103 = scmp.ne.s32.totalorder %s92, %s93
    %p104 = scmp.eq.s32.totalorder %s16, 0
    %p105 = por %p103, %p104
    %p106 = scmp.ne.s32.totalorder %s92, %s93
    %p107 = scmp.eq.s32.totalorder %s17, 3
    %p108 = por %p106, %p107
    %p110 = scmp.ne.s32.totalorder %s93, %s109
    %p111 = scmp.eq.s32.totalorder %s17, 0
    %p112 = por %p110, %p111
    %s113 = ssub.s32 %s18, %s30
    %p114 = scmp.eq.s32.totalorder %s113, 0
    %s116 = sadd.s32 %s115, 1
    %s117 = scalar_select %p114, %s115, %s116
    %p120 = pneg %p114
    %p121 = scmp.eq.s32.totalorder %s11, 3
    %p122 = por %p120, %p121
    %p123 = scmp.ne.s32.totalorder %s115, %s118
    %p124 = scmp.eq.s32.totalorder %s11, 0
    %p125 = por %p123, %p124
    %p126 = scmp.ne.s32.totalorder %s115, %s118
    %p127 = scmp.eq.s32.totalorder %s16, 3
    %p128 = por %p126, %p127
    %p129 = scmp.ne.s32.totalorder %s118, %s119
    %p130 = scmp.eq.s32.totalorder %s16, 0
    %p131 = por %p129, %p130
    %p132 = scmp.ne.s32.totalorder %s118, %s119
    %p133 = scmp.eq.s32.totalorder %s17, 3
    %p134 = por %p132, %p133
    %p136 = scmp.ne.s32.totalorder %s119, %s135
    %p137 = scmp.eq.s32.totalorder %s17, 0
    %p138 = por %p136, %p137
    %s139 = ssub.s32 %s18, %s30
    %p140 = scmp.eq.s32.totalorder %s139, 0
    %s142 = sadd.s32 %s141, 1
    %s143 = scalar_select %p140, %s141, %s142
    %p146 = pneg %p140
    %p147 = scmp.eq.s32.totalorder %s11, 3
    %p148 = por %p146, %p147
    %p149 = scmp.ne.s32.totalorder %s141, %s144
    %p150 = scmp.eq.s32.totalorder %s11, 0
    %p151 = por %p149, %p150
    %p152 = scmp.ne.s32.totalorder %s141, %s144
    %p153 = scmp.eq.s32.totalorder %s16, 3
    %p154 = por %p152, %p153
    %p155 = scmp.ne.s32.totalorder %s144, %s145
    %p156 = scmp.eq.s32.totalorder %s16, 0
    %p157 = por %p155, %p156
    %p158 = scmp.ne.s32.totalorder %s144, %s145
    %p159 = scmp.eq.s32.totalorder %s17, 3
    %p160 = por %p158, %p159
    %p162 = scmp.ne.s32.totalorder %s145, %s161
    %p163 = scmp.eq.s32.totalorder %s17, 0
    %p164 = por %p162, %p163
    %p165 = scmp.le.s32.totalorder 1, %s11
    %p166 = scmp.lt.s32.totalorder %s11, 5
    %p167 = pnand %p165, %p166
    %p168 = pneg %p167
    // Predicated region
    $region9: #{lsun_decoder_forward.11} parent=5 // pred_check
      _
    $region10: #{lsun_decoder_forward.11} parent=5 // pred_check_branch
      %170 = sbr.rel (%p167) target = $region12
    $region11: #{lsun_decoder_forward.11} parent=5 // pred_region
      %s171 = ssub.s32 %s11, 1
    $region12: #{lsun_decoder_forward.11} parent=5 // pred_fallthru
      _
    %p172 = scmp.lt.s32.totalorder %s11, 4
    // Predicated region
    $region13: #{lsun_decoder_forward.11} parent=5 // pred_check
      %p173 = pneg %p172
    $region14: #{lsun_decoder_forward.11} parent=5 // pred_check_branch
      %175 = sbr.rel (%p173) target = $region16
    $region15: #{lsun_decoder_forward.11} parent=5 // pred_region
      // Predicated region
      $region17: #{lsun_decoder_forward.11} parent=15 // pred_check
        %p176 = pneg %p43
      $region18: #{lsun_decoder_forward.11} parent=15 // pred_check_branch
        %178 = sbr.rel (%p176) target = $region20
      $region19: #{lsun_decoder_forward.11} parent=15 // pred_region
        %p179 = scmp.lt.s32.totalorder %s18, 3
        %s180 = scalar_select %p179, %s18, 3
        %s181 = smul.addr %s180, 2
        %s182 = smul.addr %s181, 8
        %s183 = scalar_lea.vmem %s0, %s182
      $region20: #{lsun_decoder_forward.11} parent=15 // pred_fallthru
        _
      // Predicated region
      $region21: #{lsun_decoder_forward.11} parent=15 // pred_check
        %p184 = pneg %p71
      $region22: #{lsun_decoder_forward.11} parent=15 // pred_check_branch
        %186 = sbr.rel (%p184) target = $region24
      $region23: #{lsun_decoder_forward.11} parent=15 // pred_region
        %p187 = scmp.lt.s32.totalorder %s18, 3
        %s188 = scalar_select %p187, %s18, 3
        %p189 = scmp.lt.s32.totalorder %s19, 0
        %s190 = scalar_select %p189, %s19, 0
        %s191 = smul.addr %s188, 16
        %s192 = sadd.s32 %s190, %s191
        %s193 = smul.addr %s192, 8
        %s194 = scalar_lea.vmem %s1, %s193
      $region24: #{lsun_decoder_forward.11} parent=15 // pred_fallthru
        _
    $region16: #{lsun_decoder_forward.11} parent=5 // pred_fallthru
      _
    %p195 = scmp.le.s32.totalorder 1, %s11
    %p196 = scmp.lt.s32.totalorder %s11, 5
    %p197 = pnand %p195, %p196
    %p198 = pneg %p197
    // Predicated region
    $region25: #{lsun_decoder_forward.11} parent=5 // pred_check
      _
    $region26: #{lsun_decoder_forward.11} parent=5 // pred_check_branch
      %200 = sbr.rel (%p197) target = $region28
    $region27: #{lsun_decoder_forward.11} parent=5 // pred_region
      %s201 = ssub.s32 %s11, 1
      %p202 = scmp.lt.s32.totalorder %s20, 3
      %s203 = scalar_select %p202, %s20, 3
      %s204 = smul.addr %s203, 2
      %s205 = smul.addr %s204, 8
      %s206 = scalar_lea.vmem %s0, %s205
      %p207 = pneg %p49
      %p208 = pneg %p46
      %p209 = scmp.lt.s32.totalorder %s20, 3
      %s210 = scalar_select %p209, %s20, 3
      %p211 = scmp.lt.s32.totalorder %s21, 0
      %s212 = scalar_select %p211, %s21, 0
      %s213 = smul.addr %s210, 16
      %s214 = sadd.s32 %s212, %s213
      %s215 = smul.addr %s214, 8
      %s216 = scalar_lea.vmem %s1, %s215
      %p217 = pneg %p77
      %p218 = pneg %p74
      %p219 = pneg %p105
      %p220 = pneg %p102
      %p221 = scmp.lt.s32.totalorder %s20, 3
      %s222 = scalar_select %p221, %s20, 3
      %p223 = scmp.lt.s32.totalorder %s21, 0
      %s224 = scalar_select %p223, %s21, 0
      %s225 = smul.addr %s222, 2
      %s226 = sadd.s32 %s224, %s225
      %s227 = smul.addr %s226, 8
      %s228 = scalar_lea.vmem %s2, %s227
      %p229 = pneg %p131
      %p230 = pneg %p128
      %p231 = scmp.lt.s32.totalorder %s20, 3
      %s232 = scalar_select %p231, %s20, 3
      %s233 = smul.addr %s232, 2
      %s234 = smul.addr %s233, 8
      %s235 = scalar_lea.vmem %s3, %s234
      %p236 = pneg %p157
      %p237 = pneg %p154
      %p238 = scmp.lt.s32.totalorder %s20, 3
      %s239 = scalar_select %p238, %s20, 3
      %s240 = smul.addr %s239, 2
      %s241 = smul.addr %s240, 8
      %s242 = scalar_lea.vmem %s4, %s241
      %p243 = scmp.lt.s32.totalorder %s20, 3
      %s244 = scalar_select %p243, %s20, 3
      %s245 = smul.addr %s244, 2
      %s246 = smul.addr %s245, 8
      %s247 = scalar_lea.vmem %s0, %s246
      %p248 = scmp.lt.s32.totalorder %s20, 3
      %s249 = scalar_select %p248, %s20, 3
      %p250 = scmp.lt.s32.totalorder %s21, 0
      %s251 = scalar_select %p250, %s21, 0
      %s252 = smul.addr %s249, 16
      %s253 = sadd.s32 %s251, %s252
      %s254 = smul.addr %s253, 8
      %s255 = scalar_lea.vmem %s1, %s254
      %p256 = scmp.lt.s32.totalorder %s20, 3
      %s257 = scalar_select %p256, %s20, 3
      %p258 = scmp.lt.s32.totalorder %s21, 0
      %s259 = scalar_select %p258, %s21, 0
      %s260 = smul.addr %s257, 2
      %s261 = sadd.s32 %s259, %s260
      %s262 = smul.addr %s261, 8
      %s263 = scalar_lea.vmem %s2, %s262
      %p264 = scmp.lt.s32.totalorder %s20, 3
      %s265 = scalar_select %p264, %s20, 3
      %s266 = smul.addr %s265, 2
      %s267 = smul.addr %s266, 8
      %s268 = scalar_lea.vmem %s3, %s267
      %p269 = scmp.lt.s32.totalorder %s20, 3
      %s270 = scalar_select %p269, %s20, 3
      %s271 = smul.addr %s270, 2
      %s272 = smul.addr %s271, 8
      %s273 = scalar_lea.vmem %s4, %s272
      %v274 = vld [vmem:[%s247] sm:$0xff]
      %v275 = vld [vmem:[%s247 + $0x8] sm:$0xff]
      %v276 = vld [vmem:[%s255] sm:$0xff]
      %v277 = vld [vmem:[%s255 + $0x8] sm:$0xff]
      %v278 = vld [vmem:[%s255 + $0x10] sm:$0xff]
      %v279 = vld [vmem:[%s255 + $0x18] sm:$0xff]
      %v280 = vld [vmem:[%s255 + $0x20] sm:$0xff]
      %v281 = vld [vmem:[%s255 + $0x28] sm:$0xff]
      %v282 = vld [vmem:[%s255 + $0x30] sm:$0xff]
      %v283 = vld [vmem:[%s255 + $0x38] sm:$0xff]
      %v284 = vld [vmem:[%s255 + $0x40] sm:$0xff]
      %v285 = vld [vmem:[%s255 + $0x48] sm:$0xff]
      %v286 = vld [vmem:[%s255 + $0x50] sm:$0xff]
      %v287 = vld [vmem:[%s255 + $0x58] sm:$0xff]
      %v288 = vld [vmem:[%s255 + $0x60] sm:$0xff]
      %v289 = vld [vmem:[%s255 + $0x68] sm:$0xff]
      %v290 = vld [vmem:[%s255 + $0x70] sm:$0xff]
      %v291 = vld [vmem:[%s255 + $0x78] sm:$0xff]
      %292 = vmatpush.msra.mxu0 %v291
      %293 = vmatpush.msra.mxu0 %v290
      %294 = vmatpush.msra.mxu0 %v289
      %295 = vmatpush.msra.mxu0 %v288
      %296 = vmatpush.msra.mxu0 %v287
      %297 = vmatpush.msra.mxu0 %v286
      %298 = vmatpush.msra.mxu0 %v285
      %299 = vmatpush.msra.mxu0 %v284
      %300 = vmatpush.msra.mxu0 %v283
      %301 = vmatpush.msra.mxu0 %v282
      %302 = vmatpush.msra.mxu0 %v281
      %303 = vmatpush.msra.mxu0 %v280
      %304 = vmatpush.msra.mxu0 %v279
      %305 = vmatpush.msra.mxu0 %v278
      %306 = vmatpush.msra.mxu0 %v277
      %307 = vmatpush.msra.mxu0 %v276
      %308 = vmatmul.f32.gmra.mxu0 %v274
      %v309 = vpop.f32.mrf.mxu0
      %v310 = vadd.f32 0.0, %v309
      %311 = vmatmul.f32.gmra.mxu0 %v275
      %v312 = vpop.f32.mrf.mxu0
      %v313 = vadd.f32 0.0, %v312
      %314 = vdwg.mxu0
      %315 = vst [vmem:[%s263] sm:$0xff] %v310
      %316 = vst [vmem:[%s263 + $0x8] sm:$0xff] %v313
      %p317 = scmp.eq.s32.totalorder %s21, 0
      // Predicated region
      $region29: #{lsun_decoder_forward.11} parent=27 // pred_check
        %p318 = pneg %p317
      $region30: #{lsun_decoder_forward.11} parent=27 // pred_check_branch
        %320 = sbr.rel (%p318) target = $region32
      $region31: #{lsun_decoder_forward.11} parent=27 // pred_region
        %vm321 = vcmask 7168
        %322 = vst.msk [vmem:[%s268] sm:$0xff] %vm321, 0.0
        %323 = vst.msk [vmem:[%s268 + $0x8] sm:$0xff] %vm321, 0.0
        %324 = vst.msk [vmem:[%s273] sm:$0xff] %vm321, 0.0
        %325 = vst.msk [vmem:[%s273 + $0x8] sm:$0xff] %vm321, 0.0
      $region32: #{lsun_decoder_forward.11} parent=27 // pred_fallthru
        _
      %v326 = vld [vmem:[%s268] sm:$0xff]
      %v327 = vld [vmem:[%s268 + $0x8] sm:$0xff]
      %328 = vadd.xlane.f32.xlu0 %v310
      %v329 = vpop.xlane.xlu0 %328
      %330 = vadd.xlane.f32.xlu0 %v313
      %v331 = vpop.xlane.xlu0 %330
      %v332 = vadd.f32 %v326, %v329
      %v333 = vadd.f32 %v327, %v331
      %vm334 = vcmask 7168
      %335 = vst.msk [vmem:[%s268] sm:$0xff] %vm334, %v332
      %336 = vst.msk [vmem:[%s268 + $0x8] sm:$0xff] %vm334, %v333
      %v337 = vld [vmem:[%s273] sm:$0xff]
      %v338 = vld [vmem:[%s273 + $0x8] sm:$0xff]
      %v339 = vmul.f32 %v310, %v310
      %v340 = vmul.f32 %v313, %v313
      %341 = vadd.xlane.f32.xlu0 %v339
      %v342 = vpop.xlane.xlu0 %341
      %343 = vadd.xlane.f32.xlu0 %v340
      %v344 = vpop.xlane.xlu0 %343
      %v345 = vadd.f32 %v337, %v342
      %v346 = vadd.f32 %v338, %v344
      %347 = vst.msk [vmem:[%s273] sm:$0xff] %vm334, %v345
      %348 = vst.msk [vmem:[%s273 + $0x8] sm:$0xff] %vm334, %v346
      %p349 = scmp.lt.s32.totalorder %s20, 3
      %s350 = scalar_select %p349, %s20, 3
      %p351 = scmp.lt.s32.totalorder %s21, 0
      %s352 = scalar_select %p351, %s21, 0
      %s353 = smul.addr %s350, 2
      %s354 = sadd.s32 %s352, %s353
      %s355 = smul.addr %s354, 8
      %s356 = scalar_lea.vmem %s2, %s355
      %p357 = scmp.lt.s32.totalorder %s20, 3
      %s358 = scalar_select %p357, %s20, 3
      %s359 = smul.addr %s358, 2
      %s360 = smul.addr %s359, 8
      %s361 = scalar_lea.vmem %s3, %s360
      %p362 = scmp.lt.s32.totalorder %s20, 3
      %s363 = scalar_select %p362, %s20, 3
      %s364 = smul.addr %s363, 2
      %s365 = smul.addr %s364, 8
      %s366 = scalar_lea.vmem %s4, %s365
      // Predicated region
      $region33: #{lsun_decoder_forward.11} parent=27 // pred_check
        %p367 = pneg %p102
      $region34: #{lsun_decoder_forward.11} parent=27 // pred_check_branch
        %369 = sbr.rel (%p367) target = $region36
      $region35: #{lsun_decoder_forward.11} parent=27 // pred_region
        _
      $region36: #{lsun_decoder_forward.11} parent=27 // pred_fallthru
        _
      // Predicated region
      $region37: #{lsun_decoder_forward.11} parent=27 // pred_check
        %p370 = pneg %p128
      $region38: #{lsun_decoder_forward.11} parent=27 // pred_check_branch
        %372 = sbr.rel (%p370) target = $region40
      $region39: #{lsun_decoder_forward.11} parent=27 // pred_region
        _
      $region40: #{lsun_decoder_forward.11} parent=27 // pred_fallthru
        _
      // Predicated region
      $region41: #{lsun_decoder_forward.11} parent=27 // pred_check
        %p373 = pneg %p154
      $region42: #{lsun_decoder_forward.11} parent=27 // pred_check_branch
        %375 = sbr.rel (%p373) target = $region44
      $region43: #{lsun_decoder_forward.11} parent=27 // pred_region
        _
      $region44: #{lsun_decoder_forward.11} parent=27 // pred_fallthru
        _
    $region28: #{lsun_decoder_forward.11} parent=5 // pred_fallthru
      _
    %p376 = scmp.le.s32.totalorder 2, %s11
    // Predicated region
    $region45: #{lsun_decoder_forward.11} parent=5 // pred_check
      %p377 = pneg %p376
    $region46: #{lsun_decoder_forward.11} parent=5 // pred_check_branch
      %379 = sbr.rel (%p377) target = $region48
    $region47: #{lsun_decoder_forward.11} parent=5 // pred_region
      %s380 = ssub.s32 %s11, 2
      // Predicated region
      $region49: #{lsun_decoder_forward.11} parent=47 // pred_check
        %p381 = pneg %p108
      $region50: #{lsun_decoder_forward.11} parent=47 // pred_check_branch
        %383 = sbr.rel (%p381) target = $region52
      $region51: #{lsun_decoder_forward.11} parent=47 // pred_region
        %p384 = scmp.lt.s32.totalorder %s22, 3
        %s385 = scalar_select %p384, %s22, 3
        %p386 = scmp.lt.s32.totalorder %s23, 0
        %s387 = scalar_select %p386, %s23, 0
        %s388 = smul.addr %s385, 2
        %s389 = sadd.s32 %s387, %s388
        %s390 = smul.addr %s389, 8
        %s391 = scalar_lea.vmem %s2, %s390
      $region52: #{lsun_decoder_forward.11} parent=47 // pred_fallthru
        _
      // Predicated region
      $region53: #{lsun_decoder_forward.11} parent=47 // pred_check
        %p392 = pneg %p134
      $region54: #{lsun_decoder_forward.11} parent=47 // pred_check_branch
        %394 = sbr.rel (%p392) target = $region56
      $region55: #{lsun_decoder_forward.11} parent=47 // pred_region
        %p395 = scmp.lt.s32.totalorder %s22, 3
        %s396 = scalar_select %p395, %s22, 3
        %s397 = smul.addr %s396, 2
        %s398 = smul.addr %s397, 8
        %s399 = scalar_lea.vmem %s3, %s398
      $region56: #{lsun_decoder_forward.11} parent=47 // pred_fallthru
        _
      // Predicated region
      $region57: #{lsun_decoder_forward.11} parent=47 // pred_check
        %p400 = pneg %p160
      $region58: #{lsun_decoder_forward.11} parent=47 // pred_check_branch
        %402 = sbr.rel (%p400) target = $region60
      $region59: #{lsun_decoder_forward.11} parent=47 // pred_region
        %p403 = scmp.lt.s32.totalorder %s22, 3
        %s404 = scalar_select %p403, %s22, 3
        %s405 = smul.addr %s404, 2
        %s406 = smul.addr %s405, 8
        %s407 = scalar_lea.vmem %s4, %s406
      $region60: #{lsun_decoder_forward.11} parent=47 // pred_fallthru
        _
    $region48: #{lsun_decoder_forward.11} parent=5 // pred_fallthru
      _
  $region6: #{lsun_decoder_forward.11} parent=0 // loop_footer
    %s15 = sadd.s32 1, %s11
  $region7: #{lsun_decoder_forward.11} parent=0 // loop_footer_branch
    %10 = sbr.rel target = $region3
  $region8: #{lsun_decoder_forward.11} parent=0 // loop_exit
    _

// kernel: lsun_decoder_forward.12
$region0: #{lsun_decoder_forward.12}
  #allocation0 [shape = 'u32[]', space=smem, size = 0x4, offset = 0x4, fixed_abs, tag = 'smem constant byte address 0x4 - core index']
  #allocation1 [shape = 'u32[72,128]{1,0:T(1,128)}', space=vmem, size = 0x9000, scoped, tag = 'internal scratch']
  %s0 = inlined_call_operand.vmem [shape: f32[4,16,128], index: 0, kind: input, shape index: {}]
  %s1 = inlined_call_operand.vmem [shape: f32[16,1], index: 1, kind: input, shape index: {}]
  %s2 = inlined_call_operand.vmem [shape: f32[16,1], index: 2, kind: input, shape index: {}]
  %s3 = inlined_call_operand.vmem [shape: f32[4,16,128], index: 3, kind: output, shape index: {}]
  %s4 = sld [smem:[#allocation0]]
  $region45: #{lsun_decoder_forward.12} parent=0
    _
  %s6 = ssub.s32 1, %s4
  %s7 = scalar_select 0, %s6, %s4
  loop: start=0, step=1, limit=6
  $region2: #{lsun_decoder_forward.12} parent=0 // loop_pre_header
    _
  $region3: #{lsun_decoder_forward.12} parent=0 // loop_header
    %s9 = sphi 0, %s13
    %p10 = scmp.ge.s32.totalorder %s9, 6
    %s16 = sphi 0, %s28
    %s17 = sphi 0, %s24
    %s18 = sphi 0, %s16
    %s19 = sphi 0, %s17
    %s20 = sphi 0, %s18
    %s21 = sphi 0, %s19
    %s33 = sphi 0, %s35
    %s36 = sphi 0, %s33
    %s37 = sphi 0, %s36
    %s53 = sphi 0, %s37
    %s57 = sphi 0, %s57
    %s59 = sphi 0, %s57
    %s60 = sphi 0, %s59
    %s74 = sphi 0, %s60
    %s78 = sphi 0, %s78
    %s80 = sphi 0, %s78
    %s81 = sphi 0, %s80
    %s95 = sphi 0, %s81
    %s103 = sphi 0, %s105
    %s106 = sphi 0, %s103
    %s107 = sphi 0, %s106
    %s123 = sphi 0, %s107
  $region4: #{lsun_decoder_forward.12} parent=0 // loop_header_branch
    %12 = sbr.rel (%p10) target = $region8
  $region5: #{lsun_decoder_forward.12} parent=0 // loop_body
    %s14 = ssub.s32 %s9, 1
    %s15 = ssub.s32 %s9, 2
    %s22 = sadd.s32 1, %s17
    %p23 = scmp.ge.s32.totalorder %s22, 1
    %s24 = scalar_select %p23, 0, %s22
    %s25 = sadd.s32 1, %s16
    %s26 = scalar_select %p23, %s25, %s16
    %p27 = scmp.ge.s32.totalorder %s26, 4
    %s28 = scalar_select %p27, 0, %s26
    %s29 = ssub.s32 %s16, %s28
    %s30 = ssub.s32 %s17, %s24
    %s31 = sor.u32 %s29, %s30
    %p32 = scmp.eq.s32.totalorder %s31, 0
    %s34 = sadd.s32 %s33, 1
    %s35 = scalar_select %p32, %s33, %s34
    %p38 = pneg %p32
    %p39 = scmp.eq.s32.totalorder %s9, 3
    %p40 = por %p38, %p39
    %p41 = scmp.ne.s32.totalorder %s33, %s36
    %p42 = scmp.eq.s32.totalorder %s9, 0
    %p43 = por %p41, %p42
    %p44 = scmp.ne.s32.totalorder %s33, %s36
    %p45 = scmp.eq.s32.totalorder %s14, 3
    %p46 = por %p44, %p45
    %p47 = scmp.ne.s32.totalorder %s36, %s37
    %p48 = scmp.eq.s32.totalorder %s14, 0
    %p49 = por %p47, %p48
    %p50 = scmp.ne.s32.totalorder %s36, %s37
    %p51 = scmp.eq.s32.totalorder %s15, 3
    %p52 = por %p50, %p51
    %p54 = scmp.ne.s32.totalorder %s37, %s53
    %p55 = scmp.eq.s32.totalorder %s15, 0
    %p56 = por %p54, %p55
    %s58 = sadd.s32 %s57, 1
    %p61 = scmp.eq.s32.totalorder %s9, 3
    %p62 = scmp.ne.s32.totalorder %s57, %s59
    %p63 = scmp.eq.s32.totalorder %s9, 0
    %p64 = por %p62, %p63
    %p65 = scmp.ne.s32.totalorder %s57, %s59
    %p66 = scmp.eq.s32.totalorder %s14, 3
    %p67 = por %p65, %p66
    %p68 = scmp.ne.s32.totalorder %s59, %s60
    %p69 = scmp.eq.s32.totalorder %s14, 0
    %p70 = por %p68, %p69
    %p71 = scmp.ne.s32.totalorder %s59, %s60
    %p72 = scmp.eq.s32.totalorder %s15, 3
    %p73 = por %p71, %p72
    %p75 = scmp.ne.s32.totalorder %s60, %s74
    %p76 = scmp.eq.s32.totalorder %s15, 0
    %p77 = por %p75, %p76
    %s79 = sadd.s32 %s78, 1
    %p82 = scmp.eq.s32.totalorder %s9, 3
    %p83 = scmp.ne.s32.totalorder %s78, %s80
    %p84 = scmp.eq.s32.totalorder %s9, 0
    %p85 = por %p83, %p84
    %p86 = scmp.ne.s32.totalorder %s78, %s80
    %p87 = scmp.eq.s32.totalorder %s14, 3
    %p88 = por %p86, %p87
    %p89 = scmp.ne.s32.totalorder %s80, %s81
    %p90 = scmp.eq.s32.totalorder %s14, 0
    %p91 = por %p89, %p90
    %p92 = scmp.ne.s32.totalorder %s80, %s81
    %p93 = scmp.eq.s32.totalorder %s15, 3
    %p94 = por %p92, %p93
    %p96 = scmp.ne.s32.totalorder %s81, %s95
    %p97 = scmp.eq.s32.totalorder %s15, 0
    %p98 = por %p96, %p97
    %s99 = ssub.s32 %s16, %s28
    %s100 = ssub.s32 %s17, %s24
    %s101 = sor.u32 %s99, %s100
    %p102 = scmp.eq.s32.totalorder %s101, 0
    %s104 = sadd.s32 %s103, 1
    %s105 = scalar_select %p102, %s103, %s104
    %p108 = pneg %p102
    %p109 = scmp.eq.s32.totalorder %s9, 3
    %p110 = por %p108, %p109
    %p111 = scmp.ne.s32.totalorder %s103, %s106
    %p112 = scmp.eq.s32.totalorder %s9, 0
    %p113 = por %p111, %p112
    %p114 = scmp.ne.s32.totalorder %s103, %s106
    %p115 = scmp.eq.s32.totalorder %s14, 3
    %p116 = por %p114, %p115
    %p117 = scmp.ne.s32.totalorder %s106, %s107
    %p118 = scmp.eq.s32.totalorder %s14, 0
    %p119 = por %p117, %p118
    %p120 = scmp.ne.s32.totalorder %s106, %s107
    %p121 = scmp.eq.s32.totalorder %s15, 3
    %p122 = por %p120, %p121
    %p124 = scmp.ne.s32.totalorder %s107, %s123
    %p125 = scmp.eq.s32.totalorder %s15, 0
    %p126 = por %p124, %p125
    %p127 = scmp.le.s32.totalorder 1, %s9
    %p128 = scmp.lt.s32.totalorder %s9, 5
    %p129 = pnand %p127, %p128
    %p130 = pneg %p129
    // Predicated region
    $region9: #{lsun_decoder_forward.12} parent=5 // pred_check
      _
    $region10: #{lsun_decoder_forward.12} parent=5 // pred_check_branch
      %132 = sbr.rel (%p129) target = $region12
    $region11: #{lsun_decoder_forward.12} parent=5 // pred_region
      %s133 = ssub.s32 %s9, 1
      // Predicated region
      $region13: #{lsun_decoder_forward.12} parent=11 // pred_check
        %p134 = pneg %p70
      $region14: #{lsun_decoder_forward.12} parent=11 // pred_check_branch
        %136 = sbr.rel (%p134) target = $region16
      $region15: #{lsun_decoder_forward.12} parent=11 // pred_region
        _
      $region16: #{lsun_decoder_forward.12} parent=11 // pred_fallthru
        _
      // Predicated region
      $region17: #{lsun_decoder_forward.12} parent=11 // pred_check
        %p137 = pneg %p91
      $region18: #{lsun_decoder_forward.12} parent=11 // pred_check_branch
        %139 = sbr.rel (%p137) target = $region20
      $region19: #{lsun_decoder_forward.12} parent=11 // pred_region
        _
      $region20: #{lsun_decoder_forward.12} parent=11 // pred_fallthru
        _
    $region12: #{lsun_decoder_forward.12} parent=5 // pred_fallthru
      _
    %p140 = scmp.lt.s32.totalorder %s9, 4
    // Predicated region
    $region21: #{lsun_decoder_forward.12} parent=5 // pred_check
      %p141 = pneg %p140
    $region22: #{lsun_decoder_forward.12} parent=5 // pred_check_branch
      %143 = sbr.rel (%p141) target = $region24
    $region23: #{lsun_decoder_forward.12} parent=5 // pred_region
      // Predicated region
      $region25: #{lsun_decoder_forward.12} parent=23 // pred_check
        %p144 = pneg %p43
      $region26: #{lsun_decoder_forward.12} parent=23 // pred_check_branch
        %146 = sbr.rel (%p144) target = $region28
      $region27: #{lsun_decoder_forward.12} parent=23 // pred_region
        %p147 = scmp.lt.s32.totalorder %s16, 3
        %s148 = scalar_select %p147, %s16, 3
        %p149 = scmp.lt.s32.totalorder %s17, 0
        %s150 = scalar_select %p149, %s17, 0
        %s151 = smul.addr %s148, 2
        %s152 = sadd.s32 %s150, %s151
        %s153 = smul.addr %s152, 8
        %s154 = scalar_lea.vmem %s0, %s153
      $region28: #{lsun_decoder_forward.12} parent=23 // pred_fallthru
        _
    $region24: #{lsun_decoder_forward.12} parent=5 // pred_fallthru
      _
    %p155 = scmp.le.s32.totalorder 1, %s9
    %p156 = scmp.lt.s32.totalorder %s9, 5
    %p157 = pnand %p155, %p156
    %p158 = pneg %p157
    // Predicated region
    $region29: #{lsun_decoder_forward.12} parent=5 // pred_check
      _
    $region30: #{lsun_decoder_forward.12} parent=5 // pred_check_branch
      %160 = sbr.rel (%p157) target = $region32
    $region31: #{lsun_decoder_forward.12} parent=5 // pred_region
      %s161 = ssub.s32 %s9, 1
      %p162 = scmp.lt.s32.totalorder %s18, 3
      %s163 = scalar_select %p162, %s18, 3
      %p164 = scmp.lt.s32.totalorder %s19, 0
      %s165 = scalar_select %p164, %s19, 0
      %s166 = smul.addr %s163, 2
      %s167 = sadd.s32 %s165, %s166
      %s168 = smul.addr %s167, 8
      %s169 = scalar_lea.vmem %s0, %s168
      %p170 = pneg %p49
      %p171 = pneg %p46
      %p172 = pneg %p70
      %p173 = pneg %p67
      %p174 = pneg %p91
      %p175 = pneg %p88
      %p176 = pneg %p119
      %p177 = pneg %p116
      %p178 = scmp.lt.s32.totalorder %s18, 3
      %s179 = scalar_select %p178, %s18, 3
      %p180 = scmp.lt.s32.totalorder %s19, 0
      %s181 = scalar_select %p180, %s19, 0
      %s182 = smul.addr %s179, 2
      %s183 = sadd.s32 %s181, %s182
      %s184 = smul.addr %s183, 8
      %s185 = scalar_lea.vmem %s3, %s184
      %p186 = scmp.lt.s32.totalorder %s18, 3
      %s187 = scalar_select %p186, %s18, 3
      %p188 = scmp.lt.s32.totalorder %s19, 0
      %s189 = scalar_select %p188, %s19, 0
      %s190 = smul.addr %s187, 2
      %s191 = sadd.s32 %s189, %s190
      %s192 = smul.addr %s191, 8
      %s193 = scalar_lea.vmem %s0, %s192
      %p194 = scmp.lt.s32.totalorder %s18, 3
      %s195 = scalar_select %p194, %s18, 3
      %p196 = scmp.lt.s32.totalorder %s19, 0
      %s197 = scalar_select %p196, %s19, 0
      %s198 = smul.addr %s195, 2
      %s199 = sadd.s32 %s197, %s198
      %s200 = smul.addr %s199, 8
      %s201 = scalar_lea.vmem %s3, %s200
      %v202 = vld [vmem:[%s193] sm:$0xff]
      %v203 = vld [vmem:[%s193 + $0x8] sm:$0xff]
      %v204 = vld [vmem:[%s1] sm:$0xff]
      %v205 = vld [vmem:[%s1 + $0x8] sm:$0xff]
      %207 = vset.pattern.permute.xlu0 0
      %208 = vperm.xlu0 %207, %v204
      %v209 = vpop.permute.xlu0 %208
      %212 = vset.pattern.permute.xlu0 0
      %213 = vperm.xlu0 %212, %v205
      %v214 = vpop.permute.xlu0 %213
      %v216 = vmul.f32 %v202, %v209
      %v217 = vmul.f32 %v203, %v214
      %v218 = vld [vmem:[%s2] sm:$0xff]
      %v219 = vld [vmem:[%s2 + $0x8] sm:$0xff]
      %221 = vset.pattern.permute.xlu0 0
      %222 = vperm.xlu0 %221, %v218
      %v223 = vpop.permute.xlu0 %222
      %226 = vset.pattern.permute.xlu0 0
      %227 = vperm.xlu0 %226, %v219
      %v228 = vpop.permute.xlu0 %227
      %v230 = vadd.f32 %v216, %v223
      %v231 = vadd.f32 %v217, %v228
      %v232 = vmax.f32 %v230, 0.0
      %v233 = vmax.f32 %v231, 0.0
      %234 = vst [vmem:[%s201] sm:$0xff] %v232
      %235 = vst [vmem:[%s201 + $0x8] sm:$0xff] %v233
      %p236 = scmp.lt.s32.totalorder %s18, 3
      %s237 = scalar_select %p236, %s18, 3
      %p238 = scmp.lt.s32.totalorder %s19, 0
      %s239 = scalar_select %p238, %s19, 0
      %s240 = smul.addr %s237, 2
      %s241 = sadd.s32 %s239, %s240
      %s242 = smul.addr %s241, 8
      %s243 = scalar_lea.vmem %s3, %s242
      // Predicated region
      $region33: #{lsun_decoder_forward.12} parent=31 // pred_check
        %p244 = pneg %p116
      $region34: #{lsun_decoder_forward.12} parent=31 // pred_check_branch
        %246 = sbr.rel (%p244) target = $region36
      $region35: #{lsun_decoder_forward.12} parent=31 // pred_region
        _
      $region36: #{lsun_decoder_forward.12} parent=31 // pred_fallthru
        _
    $region32: #{lsun_decoder_forward.12} parent=5 // pred_fallthru
      _
    %p247 = scmp.le.s32.totalorder 2, %s9
    // Predicated region
    $region37: #{lsun_decoder_forward.12} parent=5 // pred_check
      %p248 = pneg %p247
    $region38: #{lsun_decoder_forward.12} parent=5 // pred_check_branch
      %250 = sbr.rel (%p248) target = $region40
    $region39: #{lsun_decoder_forward.12} parent=5 // pred_region
      %s251 = ssub.s32 %s9, 2
      // Predicated region
      $region41: #{lsun_decoder_forward.12} parent=39 // pred_check
        %p252 = pneg %p122
      $region42: #{lsun_decoder_forward.12} parent=39 // pred_check_branch
        %254 = sbr.rel (%p252) target = $region44
      $region43: #{lsun_decoder_forward.12} parent=39 // pred_region
        %p255 = scmp.lt.s32.totalorder %s20, 3
        %s256 = scalar_select %p255, %s20, 3
        %p257 = scmp.lt.s32.totalorder %s21, 0
        %s258 = scalar_select %p257, %s21, 0
        %s259 = smul.addr %s256, 2
        %s260 = sadd.s32 %s258, %s259
        %s261 = smul.addr %s260, 8
        %s262 = scalar_lea.vmem %s3, %s261
      $region44: #{lsun_decoder_forward.12} parent=39 // pred_fallthru
        _
    $region40: #{lsun_decoder_forward.12} parent=5 // pred_fallthru
      _
  $region6: #{lsun_decoder_forward.12} parent=0 // loop_footer
    %s13 = sadd.s32 1, %s9
  $region7: #{lsun_decoder_forward.12} parent=0 // loop_footer_branch
    %8 = sbr.rel target = $region3
  $region8: #{lsun_decoder_forward.12} parent=0 // loop_exit
    _

// kernel: lsun_decoder_forward.13
$region0: #{lsun_decoder_forward.13}
  #allocation0 [shape = 'u32[]', space=smem, size = 0x4, offset = 0x4, fixed_abs, tag = 'smem constant byte address 0x4 - core index']
  #allocation1 [shape = 'u32[72,128]{1,0:T(1,128)}', space=vmem, size = 0x9000, scoped, tag = 'internal scratch']
  %s0 = inlined_call_operand.vmem [shape: f32[4,8,64], index: 0, kind: input, shape index: {}]
  %s1 = inlined_call_operand.vmem [shape: f32[4,64,512], index: 1, kind: input, shape index: {}]
  %s2 = inlined_call_operand.vmem [shape: f32[4,8,512], index: 2, kind: output, shape index: {0}]
  %s3 = inlined_call_operand.vmem [shape: f32[4,8,1], index: 3, kind: output, shape index: {1}]
  %s4 = inlined_call_operand.vmem [shape: f32[4,8,1], index: 4, kind: output, shape index: {2}]
  %5 = xla_tuple %s2, %s3, %s4
  %s6 = sld [smem:[#allocation0]]
  $region61: #{lsun_decoder_forward.13} parent=0
    _
  %s8 = ssub.s32 1, %s6
  %s9 = scalar_select 0, %s8, %s6
  loop: start=0, step=1, limit=6
  $region2: #{lsun_decoder_forward.13} parent=0 // loop_pre_header
    _
  $region3: #{lsun_decoder_forward.13} parent=0 // loop_header
    %s11 = sphi 0, %s15
    %p12 = scmp.ge.s32.totalorder %s11, 6
    %s18 = sphi 0, %s30
    %s19 = sphi 0, %s26
    %s20 = sphi 0, %s18
    %s21 = sphi 0, %s19
    %s22 = sphi 0, %s20
    %s23 = sphi 0, %s21
    %s33 = sphi 0, %s35
    %s36 = sphi 0, %s33
    %s37 = sphi 0, %s36
    %s53 = sphi 0, %s37
    %s61 = sphi 0, %s63
    %s64 = sphi 0, %s61
    %s65 = sphi 0, %s64
    %s81 = sphi 0, %s65
    %s89 = sphi 0, %s91
    %s92 = sphi 0, %s89
    %s93 = sphi 0, %s92
    %s109 = sphi 0, %s93
    %s115 = sphi 0, %s117
    %s118 = sphi 0, %s115
    %s119 = sphi 0, %s118
    %s135 = sphi 0, %s119
    %s141 = sphi 0, %s143
    %s144 = sphi 0, %s141
    %s145 = sphi 0, %s144
    %s161 = sphi 0, %s145
  $region4: #{lsun_decoder_forward.13} parent=0 // loop_header_branch
    %14 = sbr.rel (%p12) target = $region8
  $region5: #{lsun_decoder_forward.13} parent=0 // loop_body
    %s16 = ssub.s32 %s11, 1
    %s17 = ssub.s32 %s11, 2
    %s24 = sadd.s32 1, %s19
    %p25 = scmp.ge.s32.totalorder %s24, 1
    %s26 = scalar_select %p25, 0, %s24
    %s27 = sadd.s32 1, %s18
    %s28 = scalar_select %p25, %s27, %s18
    %p29 = scmp.ge.s32.totalorder %s28, 4
    %s30 = scalar_select %p29, 0, %s28
    %s31 = ssub.s32 %s18, %s30
    %p32 = scmp.eq.s32.totalorder %s31, 0
    %s34 = sadd.s32 %s33, 1
    %s35 = scalar_select %p32, %s33, %s34
    %p38 = pneg %p32
    %p39 = scmp.eq.s32.totalorder %s11, 3
    %p40 = por %p38, %p39
    %p41 = scmp.ne.s32.totalorder %s33, %s36
    %p42 = scmp.eq.s32.totalorder %s11, 0
    %p43 = por %p41, %p42
    %p44 = scmp.ne.s32.totalorder %s33, %s36
    %p45 = scmp.eq.s32.totalorder %s16, 3
    %p46 = por %p44, %p45
    %p47 = scmp.ne.s32.totalorder %s36, %s37
    %p48 = scmp.eq.s32.totalorder %s16, 0
    %p49 = por %p47, %p48
    %p50 = scmp.ne.s32.totalorder %s36, %s37
    %p51 = scmp.eq.s32.totalorder %s17, 3
    %p52 = por %p50, %p51
    %p54 = scmp.ne.s32.totalorder %s37, %s53
    %p55 = scmp.eq.s32.totalorder %s17, 0
    %p56 = por %p54, %p55
    %s57 = ssub.s32 %s18, %s30
    %s58 = ssub.s32 %s19, %s26
    %s59 = sor.u32 %s57, %s58
    %p60 = scmp.eq.s32.totalorder %s59, 0
    %s62 = sadd.s32 %s61, 1
    %s63 = scalar_select %p60, %s61, %s62
    %p66 = pneg %p60
    %p67 = scmp.eq.s32.totalorder %s11, 3
    %p68 = por %p66, %p67
    %p69 = scmp.ne.s32.totalorder %s61, %s64
    %p70 = scmp.eq.s32.totalorder %s11, 0
    %p71 = por %p69, %p70
    %p72 = scmp.ne.s32.totalorder %s61, %s64
    %p73 = scmp.eq.s32.totalorder %s16, 3
    %p74 = por %p72, %p73
    %p75 = scmp.ne.s32.totalorder %s64, %s65
    %p76 = scmp.eq.s32.totalorder %s16, 0
    %p77 = por %p75, %p76
    %p78 = scmp.ne.s32.totalorder %s64, %s65
    %p79 = scmp.eq.s32.totalorder %s17, 3
    %p80 = por %p78, %p79
    %p82 = scmp.ne.s32.totalorder %s65, %s81
    %p83 = scmp.eq.s32.totalorder %s17, 0
    %p84 = por %p82, %p83
    %s85 = ssub.s32 %s18, %s30
    %s86 = ssub.s32 %s19, %s26
    %s87 = sor.u32 %s85, %s86
    %p88 = scmp.eq.s32.totalorder %s87, 0
    %s90 = sadd.s32 %s89, 1
    %s91 = scalar_select %p88, %s89, %s90
    %p94 = pneg %p88
    %p95 = scmp.eq.s32.totalorder %s11, 3
    %p96 = por %p94, %p95
    %p97 = scmp.ne.s32.totalorder %s89, %s92
    %p98 = scmp.eq.s32.totalorder %s11, 0
    %p99 = por %p97, %p98
    %p100 = scmp.ne.s32.totalorder %s89, %s92
    %p101 = scmp.eq.s32.totalorder %s16, 3
    %p102 = por %p100, %p101
    %p103 = scmp.ne.s32.totalorder %s92, %s93
    %p104 = scmp.eq.s32.totalorder %s16, 0
    %p105 = por %p103, %p104
    %p106 = scmp.ne.s32.totalorder %s92, %s93
    %p107 = scmp.eq.s32.totalorder %s17, 3
    %p108 = por %p106, %p107
    %p110 = scmp.ne.s32.totalorder %s93, %s109
    %p111 = scmp.eq.s32.totalorder %s17, 0
    %p112 = por %p110, %p111
    %s113 = ssub.s32 %s18, %s30
    %p114 = scmp.eq.s32.totalorder %s113, 0
    %s116 = sadd.s32 %s115, 1
    %s117 = scalar_select %p114, %s115, %s116
    %p120 = pneg %p114
    %p121 = scmp.eq.s32.totalorder %s11, 3
    %p122 = por %p120, %p121
    %p123 = scmp.ne.s32.totalorder %s115, %s118
    %p124 = scmp.eq.s32.totalorder %s11, 0
    %p125 = por %p123, %p124
    %p126 = scmp.ne.s32.totalorder %s115, %s118
    %p127 = scmp.eq.s32.totalorder %s16, 3
    %p128 = por %p126, %p127
    %p129 = scmp.ne.s32.totalorder %s118, %s119
    %p130 = scmp.eq.s32.totalorder %s16, 0
    %p131 = por %p129, %p130
    %p132 = scmp.ne.s32.totalorder %s118, %s119
    %p133 = scmp.eq.s32.totalorder %s17, 3
    %p134 = por %p132, %p133
    %p136 = scmp.ne.s32.totalorder %s119, %s135
    %p137 = scmp.eq.s32.totalorder %s17, 0
    %p138 = por %p136, %p137
    %s139 = ssub.s32 %s18, %s30
    %p140 = scmp.eq.s32.totalorder %s139, 0
    %s142 = sadd.s32 %s141, 1
    %s143 = scalar_select %p140, %s141, %s142
    %p146 = pneg %p140
    %p147 = scmp.eq.s32.totalorder %s11, 3
    %p148 = por %p146, %p147
    %p149 = scmp.ne.s32.totalorder %s141, %s144
    %p150 = scmp.eq.s32.totalorder %s11, 0
    %p151 = por %p149, %p150
    %p152 = scmp.ne.s32.totalorder %s141, %s144
    %p153 = scmp.eq.s32.totalorder %s16, 3
    %p154 = por %p152, %p153
    %p155 = scmp.ne.s32.totalorder %s144, %s145
    %p156 = scmp.eq.s32.totalorder %s16, 0
    %p157 = por %p155, %p156
    %p158 = scmp.ne.s32.totalorder %s144, %s145
    %p159 = scmp.eq.s32.totalorder %s17, 3
    %p160 = por %p158, %p159
    %p162 = scmp.ne.s32.totalorder %s145, %s161
    %p163 = scmp.eq.s32.totalorder %s17, 0
    %p164 = por %p162, %p163
    %p165 = scmp.le.s32.totalorder 1, %s11
    %p166 = scmp.lt.s32.totalorder %s11, 5
    %p167 = pnand %p165, %p166
    %p168 = pneg %p167
    // Predicated region
    $region9: #{lsun_decoder_forward.13} parent=5 // pred_check
      _
    $region10: #{lsun_decoder_forward.13} parent=5 // pred_check_branch
      %170 = sbr.rel (%p167) target = $region12
    $region11: #{lsun_decoder_forward.13} parent=5 // pred_region
      %s171 = ssub.s32 %s11, 1
    $region12: #{lsun_decoder_forward.13} parent=5 // pred_fallthru
      _
    %p172 = scmp.lt.s32.totalorder %s11, 4
    // Predicated region
    $region13: #{lsun_decoder_forward.13} parent=5 // pred_check
      %p173 = pneg %p172
    $region14: #{lsun_decoder_forward.13} parent=5 // pred_check_branch
      %175 = sbr.rel (%p173) target = $region16
    $region15: #{lsun_decoder_forward.13} parent=5 // pred_region
      // Predicated region
      $region17: #{lsun_decoder_forward.13} parent=15 // pred_check
        %p176 = pneg %p43
      $region18: #{lsun_decoder_forward.13} parent=15 // pred_check_branch
        %178 = sbr.rel (%p176) target = $region20
      $region19: #{lsun_decoder_forward.13} parent=15 // pred_region
        %p179 = scmp.lt.s32.totalorder %s18, 3
        %s180 = scalar_select %p179, %s18, 3
        %s181 = smul.addr %s180, 8
        %s182 = scalar_lea.vmem %s0, %s181
      $region20: #{lsun_decoder_forward.13} parent=15 // pred_fallthru
        _
      // Predicated region
      $region21: #{lsun_decoder_forward.13} parent=15 // pred_check
        %p183 = pneg %p71
      $region22: #{lsun_decoder_forward.13} parent=15 // pred_check_branch
        %185 = sbr.rel (%p183) target = $region24
      $region23: #{lsun_decoder_forward.13} parent=15 // pred_region
        %s186 = smul.u32 4, %s19
        %p187 = scmp.lt.s32.totalorder %s18, 3
        %s188 = scalar_select %p187, %s18, 3
        %p189 = scmp.lt.s32.totalorder %s186, 3
        %s190 = scalar_select %p189, %s186, 3
        %s191 = smul.addr %s188, 32
        %s192 = sadd.s32 %s190, %s191
        %s193 = smul.addr %s192, 8
        %s194 = scalar_lea.vmem %s1, %s193
        %s195 = smul.u32 4, %s19
      $region24: #{lsun_decoder_forward.13} parent=15 // pred_fallthru
        _
    $region16: #{lsun_decoder_forward.13} parent=5 // pred_fallthru
      _
    %p196 = scmp.le.s32.totalorder 1, %s11
    %p197 = scmp.lt.s32.totalorder %s11, 5
    %p198 = pnand %p196, %p197
    %p199 = pneg %p198
    // Predicated region
    $region25: #{lsun_decoder_forward.13} parent=5 // pred_check
      _
    $region26: #{lsun_decoder_forward.13} parent=5 // pred_check_branch
      %201 = sbr.rel (%p198) target = $region28
    $region27: #{lsun_decoder_forward.13} parent=5 // pred_region
      %s202 = ssub.s32 %s11, 1
      %p203 = scmp.lt.s32.totalorder %s20, 3
      %s204 = scalar_select %p203, %s20, 3
      %s205 = smul.addr %s204, 8
      %s206 = scalar_lea.vmem %s0, %s205
      %p207 = pneg %p49
      %p208 = pneg %p46
      %s209 = smul.u32 4, %s21
      %p210 = scmp.lt.s32.totalorder %s20, 3
      %s211 = scalar_select %p210, %s20, 3
      %p212 = scmp.lt.s32.totalorder %s209, 3
      %s213 = scalar_select %p212, %s209, 3
      %s214 = smul.addr %s211, 32
      %s215 = sadd.s32 %s213, %s214
      %s216 = smul.addr %s215, 8
      %s217 = scalar_lea.vmem %s1, %s216
      %p218 = pneg %p77
      %p219 = pneg %p74
      %p220 = pneg %p105
      %p221 = pneg %p102
      %s222 = smul.u32 4, %s21
      %p223 = scmp.lt.s32.totalorder %s20, 3
      %s224 = scalar_select %p223, %s20, 3
      %p225 = scmp.lt.s32.totalorder %s222, 3
      %s226 = scalar_select %p225, %s222, 3
      %s227 = smul.addr %s224, 4
      %s228 = sadd.s32 %s226, %s227
      %s229 = smul.addr %s228, 8
      %s230 = scalar_lea.vmem %s2, %s229
      %p231 = pneg %p131
      %p232 = pneg %p128
      %p233 = scmp.lt.s32.totalorder %s20, 3
      %s234 = scalar_select %p233, %s20, 3
      %s235 = smul.addr %s234, 8
      %s236 = scalar_lea.vmem %s3, %s235
      %p237 = pneg %p157
      %p238 = pneg %p154
      %p239 = scmp.lt.s32.totalorder %s20, 3
      %s240 = scalar_select %p239, %s20, 3
      %s241 = smul.addr %s240, 8
      %s242 = scalar_lea.vmem %s4, %s241
      %p243 = scmp.lt.s32.totalorder %s20, 3
      %s244 = scalar_select %p243, %s20, 3
      %s245 = smul.addr %s244, 8
      %s246 = scalar_lea.vmem %s0, %s245
      %s247 = smul.u32 4, %s21
      %p248 = scmp.lt.s32.totalorder %s20, 3
      %s249 = scalar_select %p248, %s20, 3
      %p250 = scmp.lt.s32.totalorder %s247, 3
      %s251 = scalar_select %p250, %s247, 3
      %s252 = smul.addr %s249, 32
      %s253 = sadd.s32 %s251, %s252
      %s254 = smul.addr %s253, 8
      %s255 = scalar_lea.vmem %s1, %s254
      %s256 = smul.u32 4, %s21
      %s257 = smul.u32 4, %s21
      %p258 = scmp.lt.s32.totalorder %s20, 3
      %s259 = scalar_select %p258, %s20, 3
      %p260 = scmp.lt.s32.totalorder %s257, 3
      %s261 = scalar_select %p260, %s257, 3
      %s262 = smul.addr %s259, 4
      %s263 = sadd.s32 %s261, %s262
      %s264 = smul.addr %s263, 8
      %s265 = scalar_lea.vmem %s2, %s264
      %s266 = smul.u32 4, %s21
      %p267 = scmp.lt.s32.totalorder %s20, 3
      %s268 = scalar_select %p267, %s20, 3
      %s269 = smul.addr %s268, 8
      %s270 = scalar_lea.vmem %s3, %s269
      %p271 = scmp.lt.s32.totalorder %s20, 3
      %s272 = scalar_select %p271, %s20, 3
      %s273 = smul.addr %s272, 8
      %s274 = scalar_lea.vmem %s4, %s273
      %v275 = vld [vmem:[%s246] sm:$0xff]
      %v276 = vld [vmem:[%s255] sm:$0xff]
      %v277 = vld [vmem:[%s255 + $0x8] sm:$0xff]
      %v278 = vld [vmem:[%s255 + $0x10] sm:$0xff]
      %v279 = vld [vmem:[%s255 + $0x18] sm:$0xff]
      %v280 = vld [vmem:[%s255 + $0x20] sm:$0xff]
      %v281 = vld [vmem:[%s255 + $0x28] sm:$0xff]
      %v282 = vld [vmem:[%s255 + $0x30] sm:$0xff]
      %v283 = vld [vmem:[%s255 + $0x38] sm:$0xff]
      %v284 = vld [vmem:[%s255 + $0x40] sm:$0xff]
      %v285 = vld [vmem:[%s255 + $0x48] sm:$0xff]
      %v286 = vld [vmem:[%s255 + $0x50] sm:$0xff]
      %v287 = vld [vmem:[%s255 + $0x58] sm:$0xff]
      %v288 = vld [vmem:[%s255 + $0x60] sm:$0xff]
      %v289 = vld [vmem:[%s255 + $0x68] sm:$0xff]
      %v290 = vld [vmem:[%s255 + $0x70] sm:$0xff]
      %v291 = vld [vmem:[%s255 + $0x78] sm:$0xff]
      %v292 = vld [vmem:[%s255 + $0x80] sm:$0xff]
      %v293 = vld [vmem:[%s255 + $0x88] sm:$0xff]
      %v294 = vld [vmem:[%s255 + $0x90] sm:$0xff]
      %v295 = vld [vmem:[%s255 + $0x98] sm:$0xff]
      %v296 = vld [vmem:[%s255 + $0xa0] sm:$0xff]
      %v297 = vld [vmem:[%s255 + $0xa8] sm:$0xff]
      %v298 = vld [vmem:[%s255 + $0xb0] sm:$0xff]
      %v299 = vld [vmem:[%s255 + $0xb8] sm:$0xff]
      %v300 = vld [vmem:[%s255 + $0xc0] sm:$0xff]
      %v301 = vld [vmem:[%s255 + $0xc8] sm:$0xff]
      %v302 = vld [vmem:[%s255 + $0xd0] sm:$0xff]
      %v303 = vld [vmem:[%s255 + $0xd8] sm:$0xff]
      %v304 = vld [vmem:[%s255 + $0xe0] sm:$0xff]
      %v305 = vld [vmem:[%s255 + $0xe8] sm:$0xff]
      %v306 = vld [vmem:[%s255 + $0xf0] sm:$0xff]
      %v307 = vld [vmem:[%s255 + $0xf8] sm:$0xff]
      %vm308 = vcmask 523264
      %v310 = vsel %vm308, %v275, 0
      %312 = vmatpush.msra.mxu0 0.0
      %313 = vmatpush.msra.mxu0 0.0
      %314 = vmatpush.msra.mxu0 0.0
      %315 = vmatpush.msra.mxu0 0.0
      %316 = vmatpush.msra.mxu0 0.0
      %317 = vmatpush.msra.mxu0 0.0
      %318 = vmatpush.msra.mxu0 0.0
      %319 = vmatpush.msra.mxu0 0.0
      %320 = vmatpush.msra.mxu0 %v304
      %321 = vmatpush.msra.mxu0 %v300
      %322 = vmatpush.msra.mxu0 %v296
      %323 = vmatpush.msra.mxu0 %v292
      %324 = vmatpush.msra.mxu0 %v288
      %325 = vmatpush.msra.mxu0 %v284
      %326 = vmatpush.msra.mxu0 %v280
      %327 = vmatpush.msra.mxu0 %v276
      %328 = vmatmul.f32.gmra.mxu0 %v310
      %v329 = vpop.f32.mrf.mxu0
      %v330 = vadd.f32 0.0, %v329
      %331 = vdwg.mxu0
      %332 = vmatpush.msra.mxu0 0.0
      %333 = vmatpush.msra.mxu0 0.0
      %334 = vmatpush.msra.mxu0 0.0
      %335 = vmatpush.msra.mxu0 0.0
      %336 = vmatpush.msra.mxu0 0.0
      %337 = vmatpush.msra.mxu0 0.0
      %338 = vmatpush.msra.mxu0 0.0
      %339 = vmatpush.msra.mxu0 0.0
      %340 = vmatpush.msra.mxu0 %v305
      %341 = vmatpush.msra.mxu0 %v301
      %342 = vmatpush.msra.mxu0 %v297
      %343 = vmatpush.msra.mxu0 %v293
      %344 = vmatpush.msra.mxu0 %v289
      %345 = vmatpush.msra.mxu0 %v285
      %346 = vmatpush.msra.mxu0 %v281
      %347 = vmatpush.msra.mxu0 %v277
      %348 = vmatmul.f32.gmra.mxu0 %v310
      %v349 = vpop.f32.mrf.mxu0
      %v350 = vadd.f32 0.0, %v349
      %351 = vdwg.mxu0
      %352 = vmatpush.msra.mxu0 0.0
      %353 = vmatpush.msra.mxu0 0.0
      %354 = vmatpush.msra.mxu0 0.0
      %355 = vmatpush.msra.mxu0 0.0
      %356 = vmatpush.msra.mxu0 0.0
      %357 = vmatpush.msra.mxu0 0.0
      %358 = vmatpush.msra.mxu0 0.0
      %359 = vmatpush.msra.mxu0 0.0
      %360 = vmatpush.msra.mxu0 %v306
      %361 = vmatpush.msra.mxu0 %v302
      %362 = vmatpush.msra.mxu0 %v298
      %363 = vmatpush.msra.mxu0 %v294
      %364 = vmatpush.msra.mxu0 %v290
      %365 = vmatpush.msra.mxu0 %v286
      %366 = vmatpush.msra.mxu0 %v282
      %367 = vmatpush.msra.mxu0 %v278
      %368 = vmatmul.f32.gmra.mxu0 %v310
      %v369 = vpop.f32.mrf.mxu0
      %v370 = vadd.f32 0.0, %v369
      %371 = vdwg.mxu0
      %372 = vmatpush.msra.mxu0 0.0
      %373 = vmatpush.msra.mxu0 0.0
      %374 = vmatpush.msra.mxu0 0.0
      %375 = vmatpush.msra.mxu0 0.0
      %376 = vmatpush.msra.mxu0 0.0
      %377 = vmatpush.msra.mxu0 0.0
      %378 = vmatpush.msra.mxu0 0.0
      %379 = vmatpush.msra.mxu0 0.0
      %380 = vmatpush.msra.mxu0 %v307
      %381 = vmatpush.msra.mxu0 %v303
      %382 = vmatpush.msra.mxu0 %v299
      %383 = vmatpush.msra.mxu0 %v295
      %384 = vmatpush.msra.mxu0 %v291
      %385 = vmatpush.msra.mxu0 %v287
      %386 = vmatpush.msra.mxu0 %v283
      %387 = vmatpush.msra.mxu0 %v279
      %388 = vmatmul.f32.gmra.mxu0 %v310
      %v389 = vpop.f32.mrf.mxu0
      %v390 = vadd.f32 0.0, %v389
      %391 = vdwg.mxu0
      %392 = vst [vmem:[%s265] sm:$0xff] %v330
      %393 = vst [vmem:[%s265 + $0x8] sm:$0xff] %v350
      %394 = vst [vmem:[%s265 + $0x10] sm:$0xff] %v370
      %395 = vst [vmem:[%s265 + $0x18] sm:$0xff] %v390
      %p396 = scmp.eq.s32.totalorder %s21, 0
      // Predicated region
      $region29: #{lsun_decoder_forward.13} parent=27 // pred_check
        %p397 = pneg %p396
      $region30: #{lsun_decoder_forward.13} parent=27 // pred_check_branch
        %399 = sbr.rel (%p397) target = $region32
      $region31: #{lsun_decoder_forward.13} parent=27 // pred_region
        %vm400 = vcmask 7168
        %401 = vst.msk [vmem:[%s270] sm:$0xff] %vm400, 0.0
        %402 = vst.msk [vmem:[%s274] sm:$0xff] %vm400, 0.0
      $region32: #{lsun_decoder_forward.13} parent=27 // pred_fallthru
        _
      %v403 = vld [vmem:[%s270] sm:$0xff]
      %v404 = vadd.f32 %v330, %v350
      %v405 = vadd.f32 %v404, %v370
      %v406 = vadd.f32 %v405, %v390
      %407 = vadd.xlane.f32.xlu0 %v406
      %v408 = vpop.xlane.xlu0 %407
      %v409 = vadd.f32 %v403, %v408
      %vm410 = vcmask 7168
      %411 = vst.msk [vmem:[%s270] sm:$0xff] %vm410, %v409
      %v412 = vld [vmem:[%s274] sm:$0xff]
      %v413 = vmul.f32 %v330, %v330
      %v414 = vmul.f32 %v350, %v350
      %v415 = vmul.f32 %v370, %v370
      %v416 = vmul.f32 %v390, %v390
      %v417 = vadd.f32 %v413, %v414
      %v418 = vadd.f32 %v417, %v415
      %v419 = vadd.f32 %v418, %v416
      %420 = vadd.xlane.f32.xlu0 %v419
      %v421 = vpop.xlane.xlu0 %420
      %v422 = vadd.f32 %v412, %v421
      %423 = vst.msk [vmem:[%s274] sm:$0xff] %vm410, %v422
      %s424 = smul.u32 4, %s21
      %p425 = scmp.lt.s32.totalorder %s20, 3
      %s426 = scalar_select %p425, %s20, 3
      %p427 = scmp.lt.s32.totalorder %s424, 3
      %s428 = scalar_select %p427, %s424, 3
      %s429 = smul.addr %s426, 4
      %s430 = sadd.s32 %s428, %s429
      %s431 = smul.addr %s430, 8
      %s432 = scalar_lea.vmem %s2, %s431
      %p433 = scmp.lt.s32.totalorder %s20, 3
      %s434 = scalar_select %p433, %s20, 3
      %s435 = smul.addr %s434, 8
      %s436 = scalar_lea.vmem %s3, %s435
      %p437 = scmp.lt.s32.totalorder %s20, 3
      %s438 = scalar_select %p437, %s20, 3
      %s439 = smul.addr %s438, 8
      %s440 = scalar_lea.vmem %s4, %s439
      // Predicated region
      $region33: #{lsun_decoder_forward.13} parent=27 // pred_check
        %p441 = pneg %p102
      $region34: #{lsun_decoder_forward.13} parent=27 // pred_check_branch
        %443 = sbr.rel (%p441) target = $region36
      $region35: #{lsun_decoder_forward.13} parent=27 // pred_region
        %s444 = smul.u32 4, %s21
      $region36: #{lsun_decoder_forward.13} parent=27 // pred_fallthru
        _
      // Predicated region
      $region37: #{lsun_decoder_forward.13} parent=27 // pred_check
        %p445 = pneg %p128
      $region38: #{lsun_decoder_forward.13} parent=27 // pred_check_branch
        %447 = sbr.rel (%p445) target = $region40
      $region39: #{lsun_decoder_forward.13} parent=27 // pred_region
        _
      $region40: #{lsun_decoder_forward.13} parent=27 // pred_fallthru
        _
      // Predicated region
      $region41: #{lsun_decoder_forward.13} parent=27 // pred_check
        %p448 = pneg %p154
      $region42: #{lsun_decoder_forward.13} parent=27 // pred_check_branch
        %450 = sbr.rel (%p448) target = $region44
      $region43: #{lsun_decoder_forward.13} parent=27 // pred_region
        _
      $region44: #{lsun_decoder_forward.13} parent=27 // pred_fallthru
        _
    $region28: #{lsun_decoder_forward.13} parent=5 // pred_fallthru
      _
    %p451 = scmp.le.s32.totalorder 2, %s11
    // Predicated region
    $region45: #{lsun_decoder_forward.13} parent=5 // pred_check
      %p452 = pneg %p451
    $region46: #{lsun_decoder_forward.13} parent=5 // pred_check_branch
      %454 = sbr.rel (%p452) target = $region48
    $region47: #{lsun_decoder_forward.13} parent=5 // pred_region
      %s455 = ssub.s32 %s11, 2
      // Predicated region
      $region49: #{lsun_decoder_forward.13} parent=47 // pred_check
        %p456 = pneg %p108
      $region50: #{lsun_decoder_forward.13} parent=47 // pred_check_branch
        %458 = sbr.rel (%p456) target = $region52
      $region51: #{lsun_decoder_forward.13} parent=47 // pred_region
        %s459 = smul.u32 4, %s23
        %p460 = scmp.lt.s32.totalorder %s22, 3
        %s461 = scalar_select %p460, %s22, 3
        %p462 = scmp.lt.s32.totalorder %s459, 3
        %s463 = scalar_select %p462, %s459, 3
        %s464 = smul.addr %s461, 4
        %s465 = sadd.s32 %s463, %s464
        %s466 = smul.addr %s465, 8
        %s467 = scalar_lea.vmem %s2, %s466
      $region52: #{lsun_decoder_forward.13} parent=47 // pred_fallthru
        _
      // Predicated region
      $region53: #{lsun_decoder_forward.13} parent=47 // pred_check
        %p468 = pneg %p134
      $region54: #{lsun_decoder_forward.13} parent=47 // pred_check_branch
        %470 = sbr.rel (%p468) target = $region56
      $region55: #{lsun_decoder_forward.13} parent=47 // pred_region
        %p471 = scmp.lt.s32.totalorder %s22, 3
        %s472 = scalar_select %p471, %s22, 3
        %s473 = smul.addr %s472, 8
        %s474 = scalar_lea.vmem %s3, %s473
      $region56: #{lsun_decoder_forward.13} parent=47 // pred_fallthru
        _
      // Predicated region
      $region57: #{lsun_decoder_forward.13} parent=47 // pred_check
        %p475 = pneg %p160
      $region58: #{lsun_decoder_forward.13} parent=47 // pred_check_branch
        %477 = sbr.rel (%p475) target = $region60
      $region59: #{lsun_decoder_forward.13} parent=47 // pred_region
        %p478 = scmp.lt.s32.totalorder %s22, 3
        %s479 = scalar_select %p478, %s22, 3
        %s480 = smul.addr %s479, 8
        %s481 = scalar_lea.vmem %s4, %s480
      $region60: #{lsun_decoder_forward.13} parent=47 // pred_fallthru
        _
    $region48: #{lsun_decoder_forward.13} parent=5 // pred_fallthru
      _
  $region6: #{lsun_decoder_forward.13} parent=0 // loop_footer
    %s15 = sadd.s32 1, %s11
  $region7: #{lsun_decoder_forward.13} parent=0 // loop_footer_branch
    %10 = sbr.rel target = $region3
  $region8: #{lsun_decoder_forward.13} parent=0 // loop_exit
    _

// kernel: lsun_decoder_forward.14
$region0: #{lsun_decoder_forward.14}
  #allocation0 [shape = 'u32[]', space=smem, size = 0x4, offset = 0x4, fixed_abs, tag = 'smem constant byte address 0x4 - core index']
  #allocation1 [shape = 'u32[72,128]{1,0:T(1,128)}', space=vmem, size = 0x9000, scoped, tag = 'internal scratch']
  %s0 = inlined_call_operand.vmem [shape: f32[4,8,512], index: 0, kind: input, shape index: {}]
  %s1 = inlined_call_operand.vmem [shape: f32[8,1], index: 1, kind: input, shape index: {}]
  %s2 = inlined_call_operand.vmem [shape: f32[8,1], index: 2, kind: input, shape index: {}]
  %s3 = inlined_call_operand.vmem [shape: f32[4,8,512], index: 3, kind: output, shape index: {}]
  %s4 = sld [smem:[#allocation0]]
  $region45: #{lsun_decoder_forward.14} parent=0
    _
  %s6 = ssub.s32 1, %s4
  %s7 = scalar_select 0, %s6, %s4
  loop: start=0, step=1, limit=6
  $region2: #{lsun_decoder_forward.14} parent=0 // loop_pre_header
    _
  $region3: #{lsun_decoder_forward.14} parent=0 // loop_header
    %s9 = sphi 0, %s13
    %p10 = scmp.ge.s32.totalorder %s9, 6
    %s16 = sphi 0, %s28
    %s17 = sphi 0, %s24
    %s18 = sphi 0, %s16
    %s19 = sphi 0, %s17
    %s20 = sphi 0, %s18
    %s21 = sphi 0, %s19
    %s33 = sphi 0, %s35
    %s36 = sphi 0, %s33
    %s37 = sphi 0, %s36
    %s53 = sphi 0, %s37
    %s57 = sphi 0, %s57
    %s59 = sphi 0, %s57
    %s60 = sphi 0, %s59
    %s74 = sphi 0, %s60
    %s78 = sphi 0, %s78
    %s80 = sphi 0, %s78
    %s81 = sphi 0, %s80
    %s95 = sphi 0, %s81
    %s103 = sphi 0, %s105
    %s106 = sphi 0, %s103
    %s107 = sphi 0, %s106
    %s123 = sphi 0, %s107
  $region4: #{lsun_decoder_forward.14} parent=0 // loop_header_branch
    %12 = sbr.rel (%p10) target = $region8
  $region5: #{lsun_decoder_forward.14} parent=0 // loop_body
    %s14 = ssub.s32 %s9, 1
    %s15 = ssub.s32 %s9, 2
    %s22 = sadd.s32 1, %s17
    %p23 = scmp.ge.s32.totalorder %s22, 1
    %s24 = scalar_select %p23, 0, %s22
    %s25 = sadd.s32 1, %s16
    %s26 = scalar_select %p23, %s25, %s16
    %p27 = scmp.ge.s32.totalorder %s26, 4
    %s28 = scalar_select %p27, 0, %s26
    %s29 = ssub.s32 %s16, %s28
    %s30 = ssub.s32 %s17, %s24
    %s31 = sor.u32 %s29, %s30
    %p32 = scmp.eq.s32.totalorder %s31, 0
    %s34 = sadd.s32 %s33, 1
    %s35 = scalar_select %p32, %s33, %s34
    %p38 = pneg %p32
    %p39 = scmp.eq.s32.totalorder %s9, 3
    %p40 = por %p38, %p39
    %p41 = scmp.ne.s32.totalorder %s33, %s36
    %p42 = scmp.eq.s32.totalorder %s9, 0
    %p43 = por %p41, %p42
    %p44 = scmp.ne.s32.totalorder %s33, %s36
    %p45 = scmp.eq.s32.totalorder %s14, 3
    %p46 = por %p44, %p45
    %p47 = scmp.ne.s32.totalorder %s36, %s37
    %p48 = scmp.eq.s32.totalorder %s14, 0
    %p49 = por %p47, %p48
    %p50 = scmp.ne.s32.totalorder %s36, %s37
    %p51 = scmp.eq.s32.totalorder %s15, 3
    %p52 = por %p50, %p51
    %p54 = scmp.ne.s32.totalorder %s37, %s53
    %p55 = scmp.eq.s32.totalorder %s15, 0
    %p56 = por %p54, %p55
    %s58 = sadd.s32 %s57, 1
    %p61 = scmp.eq.s32.totalorder %s9, 3
    %p62 = scmp.ne.s32.totalorder %s57, %s59
    %p63 = scmp.eq.s32.totalorder %s9, 0
    %p64 = por %p62, %p63
    %p65 = scmp.ne.s32.totalorder %s57, %s59
    %p66 = scmp.eq.s32.totalorder %s14, 3
    %p67 = por %p65, %p66
    %p68 = scmp.ne.s32.totalorder %s59, %s60
    %p69 = scmp.eq.s32.totalorder %s14, 0
    %p70 = por %p68, %p69
    %p71 = scmp.ne.s32.totalorder %s59, %s60
    %p72 = scmp.eq.s32.totalorder %s15, 3
    %p73 = por %p71, %p72
    %p75 = scmp.ne.s32.totalorder %s60, %s74
    %p76 = scmp.eq.s32.totalorder %s15, 0
    %p77 = por %p75, %p76
    %s79 = sadd.s32 %s78, 1
    %p82 = scmp.eq.s32.totalorder %s9, 3
    %p83 = scmp.ne.s32.totalorder %s78, %s80
    %p84 = scmp.eq.s32.totalorder %s9, 0
    %p85 = por %p83, %p84
    %p86 = scmp.ne.s32.totalorder %s78, %s80
    %p87 = scmp.eq.s32.totalorder %s14, 3
    %p88 = por %p86, %p87
    %p89 = scmp.ne.s32.totalorder %s80, %s81
    %p90 = scmp.eq.s32.totalorder %s14, 0
    %p91 = por %p89, %p90
    %p92 = scmp.ne.s32.totalorder %s80, %s81
    %p93 = scmp.eq.s32.totalorder %s15, 3
    %p94 = por %p92, %p93
    %p96 = scmp.ne.s32.totalorder %s81, %s95
    %p97 = scmp.eq.s32.totalorder %s15, 0
    %p98 = por %p96, %p97
    %s99 = ssub.s32 %s16, %s28
    %s100 = ssub.s32 %s17, %s24
    %s101 = sor.u32 %s99, %s100
    %p102 = scmp.eq.s32.totalorder %s101, 0
    %s104 = sadd.s32 %s103, 1
    %s105 = scalar_select %p102, %s103, %s104
    %p108 = pneg %p102
    %p109 = scmp.eq.s32.totalorder %s9, 3
    %p110 = por %p108, %p109
    %p111 = scmp.ne.s32.totalorder %s103, %s106
    %p112 = scmp.eq.s32.totalorder %s9, 0
    %p113 = por %p111, %p112
    %p114 = scmp.ne.s32.totalorder %s103, %s106
    %p115 = scmp.eq.s32.totalorder %s14, 3
    %p116 = por %p114, %p115
    %p117 = scmp.ne.s32.totalorder %s106, %s107
    %p118 = scmp.eq.s32.totalorder %s14, 0
    %p119 = por %p117, %p118
    %p120 = scmp.ne.s32.totalorder %s106, %s107
    %p121 = scmp.eq.s32.totalorder %s15, 3
    %p122 = por %p120, %p121
    %p124 = scmp.ne.s32.totalorder %s107, %s123
    %p125 = scmp.eq.s32.totalorder %s15, 0
    %p126 = por %p124, %p125
    %p127 = scmp.le.s32.totalorder 1, %s9
    %p128 = scmp.lt.s32.totalorder %s9, 5
    %p129 = pnand %p127, %p128
    %p130 = pneg %p129
    // Predicated region
    $region9: #{lsun_decoder_forward.14} parent=5 // pred_check
      _
    $region10: #{lsun_decoder_forward.14} parent=5 // pred_check_branch
      %132 = sbr.rel (%p129) target = $region12
    $region11: #{lsun_decoder_forward.14} parent=5 // pred_region
      %s133 = ssub.s32 %s9, 1
      // Predicated region
      $region13: #{lsun_decoder_forward.14} parent=11 // pred_check
        %p134 = pneg %p70
      $region14: #{lsun_decoder_forward.14} parent=11 // pred_check_branch
        %136 = sbr.rel (%p134) target = $region16
      $region15: #{lsun_decoder_forward.14} parent=11 // pred_region
        _
      $region16: #{lsun_decoder_forward.14} parent=11 // pred_fallthru
        _
      // Predicated region
      $region17: #{lsun_decoder_forward.14} parent=11 // pred_check
        %p137 = pneg %p91
      $region18: #{lsun_decoder_forward.14} parent=11 // pred_check_branch
        %139 = sbr.rel (%p137) target = $region20
      $region19: #{lsun_decoder_forward.14} parent=11 // pred_region
        _
      $region20: #{lsun_decoder_forward.14} parent=11 // pred_fallthru
        _
    $region12: #{lsun_decoder_forward.14} parent=5 // pred_fallthru
      _
    %p140 = scmp.lt.s32.totalorder %s9, 4
    // Predicated region
    $region21: #{lsun_decoder_forward.14} parent=5 // pred_check
      %p141 = pneg %p140
    $region22: #{lsun_decoder_forward.14} parent=5 // pred_check_branch
      %143 = sbr.rel (%p141) target = $region24
    $region23: #{lsun_decoder_forward.14} parent=5 // pred_region
      // Predicated region
      $region25: #{lsun_decoder_forward.14} parent=23 // pred_check
        %p144 = pneg %p43
      $region26: #{lsun_decoder_forward.14} parent=23 // pred_check_branch
        %146 = sbr.rel (%p144) target = $region28
      $region27: #{lsun_decoder_forward.14} parent=23 // pred_region
        %s147 = smul.u32 4, %s17
        %p148 = scmp.lt.s32.totalorder %s16, 3
        %s149 = scalar_select %p148, %s16, 3
        %p150 = scmp.lt.s32.totalorder %s147, 3
        %s151 = scalar_select %p150, %s147, 3
        %s152 = smul.addr %s149, 4
        %s153 = sadd.s32 %s151, %s152
        %s154 = smul.addr %s153, 8
        %s155 = scalar_lea.vmem %s0, %s154
        %s156 = smul.u32 4, %s17
      $region28: #{lsun_decoder_forward.14} parent=23 // pred_fallthru
        _
    $region24: #{lsun_decoder_forward.14} parent=5 // pred_fallthru
      _
    %p157 = scmp.le.s32.totalorder 1, %s9
    %p158 = scmp.lt.s32.totalorder %s9, 5
    %p159 = pnand %p157, %p158
    %p160 = pneg %p159
    // Predicated region
    $region29: #{lsun_decoder_forward.14} parent=5 // pred_check
      _
    $region30: #{lsun_decoder_forward.14} parent=5 // pred_check_branch
      %162 = sbr.rel (%p159) target = $region32
    $region31: #{lsun_decoder_forward.14} parent=5 // pred_region
      %s163 = ssub.s32 %s9, 1
      %s164 = smul.u32 4, %s19
      %p165 = scmp.lt.s32.totalorder %s18, 3
      %s166 = scalar_select %p165, %s18, 3
      %p167 = scmp.lt.s32.totalorder %s164, 3
      %s168 = scalar_select %p167, %s164, 3
      %s169 = smul.addr %s166, 4
      %s170 = sadd.s32 %s168, %s169
      %s171 = smul.addr %s170, 8
      %s172 = scalar_lea.vmem %s0, %s171
      %p173 = pneg %p49
      %p174 = pneg %p46
      %p175 = pneg %p70
      %p176 = pneg %p67
      %p177 = pneg %p91
      %p178 = pneg %p88
      %p179 = pneg %p119
      %p180 = pneg %p116
      %s181 = smul.u32 4, %s19
      %p182 = scmp.lt.s32.totalorder %s18, 3
      %s183 = scalar_select %p182, %s18, 3
      %p184 = scmp.lt.s32.totalorder %s181, 3
      %s185 = scalar_select %p184, %s181, 3
      %s186 = smul.addr %s183, 4
      %s187 = sadd.s32 %s185, %s186
      %s188 = smul.addr %s187, 8
      %s189 = scalar_lea.vmem %s3, %s188
      %s190 = smul.u32 4, %s19
      %p191 = scmp.lt.s32.totalorder %s18, 3
      %s192 = scalar_select %p191, %s18, 3
      %p193 = scmp.lt.s32.totalorder %s190, 3
      %s194 = scalar_select %p193, %s190, 3
      %s195 = smul.addr %s192, 4
      %s196 = sadd.s32 %s194, %s195
      %s197 = smul.addr %s196, 8
      %s198 = scalar_lea.vmem %s0, %s197
      %s199 = smul.u32 4, %s19
      %s200 = smul.u32 4, %s19
      %p201 = scmp.lt.s32.totalorder %s18, 3
      %s202 = scalar_select %p201, %s18, 3
      %p203 = scmp.lt.s32.totalorder %s200, 3
      %s204 = scalar_select %p203, %s200, 3
      %s205 = smul.addr %s202, 4
      %s206 = sadd.s32 %s204, %s205
      %s207 = smul.addr %s206, 8
      %s208 = scalar_lea.vmem %s3, %s207
      %s209 = smul.u32 4, %s19
      %v210 = vld [vmem:[%s198] sm:$0xff]
      %v211 = vld [vmem:[%s198 + $0x8] sm:$0xff]
      %v212 = vld [vmem:[%s198 + $0x10] sm:$0xff]
      %v213 = vld [vmem:[%s198 + $0x18] sm:$0xff]
      %v214 = vld [vmem:[%s1] sm:$0xff]
      %216 = vset.pattern.permute.xlu0 0
      %217 = vperm.xlu0 %216, %v214
      %v218 = vpop.permute.xlu0 %217
      %v220 = vmul.f32 %v210, %v218
      %v221 = vmul.f32 %v211, %v218
      %v222 = vmul.f32 %v212, %v218
      %v223 = vmul.f32 %v213, %v218
      %v224 = vld [vmem:[%s2] sm:$0xff]
      %226 = vset.pattern.permute.xlu0 0
      %227 = vperm.xlu0 %226, %v224
      %v228 = vpop.permute.xlu0 %227
      %v230 = vadd.f32 %v220, %v228
      %v231 = vadd.f32 %v221, %v228
      %v232 = vadd.f32 %v222, %v228
      %v233 = vadd.f32 %v223, %v228
      %v234 = vmax.f32 %v230, 0.0
      %v235 = vmax.f32 %v231, 0.0
      %v236 = vmax.f32 %v232, 0.0
      %v237 = vmax.f32 %v233, 0.0
      %238 = vst [vmem:[%s208] sm:$0xff] %v234
      %239 = vst [vmem:[%s208 + $0x8] sm:$0xff] %v235
      %240 = vst [vmem:[%s208 + $0x10] sm:$0xff] %v236
      %241 = vst [vmem:[%s208 + $0x18] sm:$0xff] %v237
      %s242 = smul.u32 4, %s19
      %p243 = scmp.lt.s32.totalorder %s18, 3
      %s244 = scalar_select %p243, %s18, 3
      %p245 = scmp.lt.s32.totalorder %s242, 3
      %s246 = scalar_select %p245, %s242, 3
      %s247 = smul.addr %s244, 4
      %s248 = sadd.s32 %s246, %s247
      %s249 = smul.addr %s248, 8
      %s250 = scalar_lea.vmem %s3, %s249
      // Predicated region
      $region33: #{lsun_decoder_forward.14} parent=31 // pred_check
        %p251 = pneg %p116
      $region34: #{lsun_decoder_forward.14} parent=31 // pred_check_branch
        %253 = sbr.rel (%p251) target = $region36
      $region35: #{lsun_decoder_forward.14} parent=31 // pred_region
        %s254 = smul.u32 4, %s19
      $region36: #{lsun_decoder_forward.14} parent=31 // pred_fallthru
        _
    $region32: #{lsun_decoder_forward.14} parent=5 // pred_fallthru
      _
    %p255 = scmp.le.s32.totalorder 2, %s9
    // Predicated region
    $region37: #{lsun_decoder_forward.14} parent=5 // pred_check
      %p256 = pneg %p255
    $region38: #{lsun_decoder_forward.14} parent=5 // pred_check_branch
      %258 = sbr.rel (%p256) target = $region40
    $region39: #{lsun_decoder_forward.14} parent=5 // pred_region
      %s259 = ssub.s32 %s9, 2
      // Predicated region
      $region41: #{lsun_decoder_forward.14} parent=39 // pred_check
        %p260 = pneg %p122
      $region42: #{lsun_decoder_forward.14} parent=39 // pred_check_branch
        %262 = sbr.rel (%p260) target = $region44
      $region43: #{lsun_decoder_forward.14} parent=39 // pred_region
        %s263 = smul.u32 4, %s21
        %p264 = scmp.lt.s32.totalorder %s20, 3
        %s265 = scalar_select %p264, %s20, 3
        %p266 = scmp.lt.s32.totalorder %s263, 3
        %s267 = scalar_select %p266, %s263, 3
        %s268 = smul.addr %s265, 4
        %s269 = sadd.s32 %s267, %s268
        %s270 = smul.addr %s269, 8
        %s271 = scalar_lea.vmem %s3, %s270
      $region44: #{lsun_decoder_forward.14} parent=39 // pred_fallthru
        _
    $region40: #{lsun_decoder_forward.14} parent=5 // pred_fallthru
      _
  $region6: #{lsun_decoder_forward.14} parent=0 // loop_footer
    %s13 = sadd.s32 1, %s9
  $region7: #{lsun_decoder_forward.14} parent=0 // loop_footer_branch
    %8 = sbr.rel target = $region3
  $region8: #{lsun_decoder_forward.14} parent=0 // loop_exit
    _

// kernel: lsun_decoder_forward.15
$region0: #{lsun_decoder_forward.15}
  #allocation0 [shape = 'u32[]', space=smem, size = 0x4, offset = 0x4, fixed_abs, tag = 'smem constant byte address 0x4 - core index']
  #allocation1 [shape = 'u32[72,128]{1,0:T(1,128)}', space=vmem, size = 0x9000, scoped, tag = 'internal scratch']
  %s0 = inlined_call_operand.vmem [shape: f32[4,3,32], index: 0, kind: input, shape index: {}]
  %s1 = inlined_call_operand.vmem [shape: f32[3,1], index: 1, kind: input, shape index: {}]
  %s2 = inlined_call_operand.vmem [shape: f32[4,32,2048], index: 2, kind: input, shape index: {}]
  %s3 = inlined_call_operand.vmem [shape: f32[4,3,2048], index: 3, kind: output, shape index: {}]
  %s4 = sld [smem:[#allocation0]]
  $region45: #{lsun_decoder_forward.15} parent=0
    _
  %s6 = ssub.s32 1, %s4
  %s7 = scalar_select 0, %s6, %s4
  loop: start=0, step=1, limit=6
  $region2: #{lsun_decoder_forward.15} parent=0 // loop_pre_header
    _
  $region3: #{lsun_decoder_forward.15} parent=0 // loop_header
    %s9 = sphi 0, %s13
    %p10 = scmp.ge.s32.totalorder %s9, 6
    %s16 = sphi 0, %s28
    %s17 = sphi 0, %s24
    %s18 = sphi 0, %s16
    %s19 = sphi 0, %s17
    %s20 = sphi 0, %s18
    %s21 = sphi 0, %s19
    %s31 = sphi 0, %s33
    %s34 = sphi 0, %s31
    %s35 = sphi 0, %s34
    %s51 = sphi 0, %s35
    %s55 = sphi 0, %s55
    %s57 = sphi 0, %s55
    %s58 = sphi 0, %s57
    %s72 = sphi 0, %s58
    %s80 = sphi 0, %s82
    %s83 = sphi 0, %s80
    %s84 = sphi 0, %s83
    %s100 = sphi 0, %s84
    %s108 = sphi 0, %s110
    %s111 = sphi 0, %s108
    %s112 = sphi 0, %s111
    %s128 = sphi 0, %s112
  $region4: #{lsun_decoder_forward.15} parent=0 // loop_header_branch
    %12 = sbr.rel (%p10) target = $region8
  $region5: #{lsun_decoder_forward.15} parent=0 // loop_body
    %s14 = ssub.s32 %s9, 1
    %s15 = ssub.s32 %s9, 2
    %s22 = sadd.s32 1, %s17
    %p23 = scmp.ge.s32.totalorder %s22, 1
    %s24 = scalar_select %p23, 0, %s22
    %s25 = sadd.s32 1, %s16
    %s26 = scalar_select %p23, %s25, %s16
    %p27 = scmp.ge.s32.totalorder %s26, 4
    %s28 = scalar_select %p27, 0, %s26
    %s29 = ssub.s32 %s16, %s28
    %p30 = scmp.eq.s32.totalorder %s29, 0
    %s32 = sadd.s32 %s31, 1
    %s33 = scalar_select %p30, %s31, %s32
    %p36 = pneg %p30
    %p37 = scmp.eq.s32.totalorder %s9, 3
    %p38 = por %p36, %p37
    %p39 = scmp.ne.s32.totalorder %s31, %s34
    %p40 = scmp.eq.s32.totalorder %s9, 0
    %p41 = por %p39, %p40
    %p42 = scmp.ne.s32.totalorder %s31, %s34
    %p43 = scmp.eq.s32.totalorder %s14, 3
    %p44 = por %p42, %p43
    %p45 = scmp.ne.s32.totalorder %s34, %s35
    %p46 = scmp.eq.s32.totalorder %s14, 0
    %p47 = por %p45, %p46
    %p48 = scmp.ne.s32.totalorder %s34, %s35
    %p49 = scmp.eq.s32.totalorder %s15, 3
    %p50 = por %p48, %p49
    %p52 = scmp.ne.s32.totalorder %s35, %s51
    %p53 = scmp.eq.s32.totalorder %s15, 0
    %p54 = por %p52, %p53
    %s56 = sadd.s32 %s55, 1
    %p59 = scmp.eq.s32.totalorder %s9, 3
    %p60 = scmp.ne.s32.totalorder %s55, %s57
    %p61 = scmp.eq.s32.totalorder %s9, 0
    %p62 = por %p60, %p61
    %p63 = scmp.ne.s32.totalorder %s55, %s57
    %p64 = scmp.eq.s32.totalorder %s14, 3
    %p65 = por %p63, %p64
    %p66 = scmp.ne.s32.totalorder %s57, %s58
    %p67 = scmp.eq.s32.totalorder %s14, 0
    %p68 = por %p66, %p67
    %p69 = scmp.ne.s32.totalorder %s57, %s58
    %p70 = scmp.eq.s32.totalorder %s15, 3
    %p71 = por %p69, %p70
    %p73 = scmp.ne.s32.totalorder %s58, %s72
    %p74 = scmp.eq.s32.totalorder %s15, 0
    %p75 = por %p73, %p74
    %s76 = ssub.s32 %s16, %s28
    %s77 = ssub.s32 %s17, %s24
    %s78 = sor.u32 %s76, %s77
    %p79 = scmp.eq.s32.totalorder %s78, 0
    %s81 = sadd.s32 %s80, 1
    %s82 = scalar_select %p79, %s80, %s81
    %p85 = pneg %p79
    %p86 = scmp.eq.s32.totalorder %s9, 3
    %p87 = por %p85, %p86
    %p88 = scmp.ne.s32.totalorder %s80, %s83
    %p89 = scmp.eq.s32.totalorder %s9, 0
    %p90 = por %p88, %p89
    %p91 = scmp.ne.s32.totalorder %s80, %s83
    %p92 = scmp.eq.s32.totalorder %s14, 3
    %p93 = por %p91, %p92
    %p94 = scmp.ne.s32.totalorder %s83, %s84
    %p95 = scmp.eq.s32.totalorder %s14, 0
    %p96 = por %p94, %p95
    %p97 = scmp.ne.s32.totalorder %s83, %s84
    %p98 = scmp.eq.s32.totalorder %s15, 3
    %p99 = por %p97, %p98
    %p101 = scmp.ne.s32.totalorder %s84, %s100
    %p102 = scmp.eq.s32.totalorder %s15, 0
    %p103 = por %p101, %p102
    %s104 = ssub.s32 %s16, %s28
    %s105 = ssub.s32 %s17, %s24
    %s106 = sor.u32 %s104, %s105
    %p107 = scmp.eq.s32.totalorder %s106, 0
    %s109 = sadd.s32 %s108, 1
    %s110 = scalar_select %p107, %s108, %s109
    %p113 = pneg %p107
    %p114 = scmp.eq.s32.totalorder %s9, 3
    %p115 = por %p113, %p114
    %p116 = scmp.ne.s32.totalorder %s108, %s111
    %p117 = scmp.eq.s32.totalorder %s9, 0
    %p118 = por %p116, %p117
    %p119 = scmp.ne.s32.totalorder %s108, %s111
    %p120 = scmp.eq.s32.totalorder %s14, 3
    %p121 = por %p119, %p120
    %p122 = scmp.ne.s32.totalorder %s111, %s112
    %p123 = scmp.eq.s32.totalorder %s14, 0
    %p124 = por %p122, %p123
    %p125 = scmp.ne.s32.totalorder %s111, %s112
    %p126 = scmp.eq.s32.totalorder %s15, 3
    %p127 = por %p125, %p126
    %p129 = scmp.ne.s32.totalorder %s112, %s128
    %p130 = scmp.eq.s32.totalorder %s15, 0
    %p131 = por %p129, %p130
    %p132 = scmp.le.s32.totalorder 1, %s9
    %p133 = scmp.lt.s32.totalorder %s9, 5
    %p134 = pnand %p132, %p133
    %p135 = pneg %p134
    // Predicated region
    $region9: #{lsun_decoder_forward.15} parent=5 // pred_check
      _
    $region10: #{lsun_decoder_forward.15} parent=5 // pred_check_branch
      %137 = sbr.rel (%p134) target = $region12
    $region11: #{lsun_decoder_forward.15} parent=5 // pred_region
      %s138 = ssub.s32 %s9, 1
      // Predicated region
      $region13: #{lsun_decoder_forward.15} parent=11 // pred_check
        %p139 = pneg %p68
      $region14: #{lsun_decoder_forward.15} parent=11 // pred_check_branch
        %141 = sbr.rel (%p139) target = $region16
      $region15: #{lsun_decoder_forward.15} parent=11 // pred_region
        _
      $region16: #{lsun_decoder_forward.15} parent=11 // pred_fallthru
        _
    $region12: #{lsun_decoder_forward.15} parent=5 // pred_fallthru
      _
    %p142 = scmp.lt.s32.totalorder %s9, 4
    // Predicated region
    $region17: #{lsun_decoder_forward.15} parent=5 // pred_check
      %p143 = pneg %p142
    $region18: #{lsun_decoder_forward.15} parent=5 // pred_check_branch
      %145 = sbr.rel (%p143) target = $region20
    $region19: #{lsun_decoder_forward.15} parent=5 // pred_region
      // Predicated region
      $region21: #{lsun_decoder_forward.15} parent=19 // pred_check
        %p146 = pneg %p41
      $region22: #{lsun_decoder_forward.15} parent=19 // pred_check_branch
        %148 = sbr.rel (%p146) target = $region24
      $region23: #{lsun_decoder_forward.15} parent=19 // pred_region
        %p149 = scmp.lt.s32.totalorder %s16, 3
        %s150 = scalar_select %p149, %s16, 3
        %s151 = smul.addr %s150, 4
        %s152 = scalar_lea.vmem %s0, %s151
      $region24: #{lsun_decoder_forward.15} parent=19 // pred_fallthru
        _
      // Predicated region
      $region25: #{lsun_decoder_forward.15} parent=19 // pred_check
        %p153 = pneg %p90
      $region26: #{lsun_decoder_forward.15} parent=19 // pred_check_branch
        %155 = sbr.rel (%p153) target = $region28
      $region27: #{lsun_decoder_forward.15} parent=19 // pred_region
        %s156 = smul.u32 16, %s17
        %p157 = scmp.lt.s32.totalorder %s16, 3
        %s158 = scalar_select %p157, %s16, 3
        %p159 = scmp.lt.s32.totalorder %s156, 15
        %s160 = scalar_select %p159, %s156, 15
        %s161 = smul.addr %s158, 64
        %s162 = sadd.s32 %s160, %s161
        %s163 = smul.addr %s162, 8
        %s164 = scalar_lea.vmem %s2, %s163
        %s165 = smul.u32 16, %s17
      $region28: #{lsun_decoder_forward.15} parent=19 // pred_fallthru
        _
    $region20: #{lsun_decoder_forward.15} parent=5 // pred_fallthru
      _
    %p166 = scmp.le.s32.totalorder 1, %s9
    %p167 = scmp.lt.s32.totalorder %s9, 5
    %p168 = pnand %p166, %p167
    %p169 = pneg %p168
    // Predicated region
    $region29: #{lsun_decoder_forward.15} parent=5 // pred_check
      _
    $region30: #{lsun_decoder_forward.15} parent=5 // pred_check_branch
      %171 = sbr.rel (%p168) target = $region32
    $region31: #{lsun_decoder_forward.15} parent=5 // pred_region
      %s172 = ssub.s32 %s9, 1
      %p173 = scmp.lt.s32.totalorder %s18, 3
      %s174 = scalar_select %p173, %s18, 3
      %s175 = smul.addr %s174, 4
      %s176 = scalar_lea.vmem %s0, %s175
      %p177 = pneg %p47
      %p178 = pneg %p44
      %p179 = pneg %p68
      %p180 = pneg %p65
      %s181 = smul.u32 16, %s19
      %p182 = scmp.lt.s32.totalorder %s18, 3
      %s183 = scalar_select %p182, %s18, 3
      %p184 = scmp.lt.s32.totalorder %s181, 15
      %s185 = scalar_select %p184, %s181, 15
      %s186 = smul.addr %s183, 64
      %s187 = sadd.s32 %s185, %s186
      %s188 = smul.addr %s187, 8
      %s189 = scalar_lea.vmem %s2, %s188
      %p190 = pneg %p96
      %p191 = pneg %p93
      %p192 = pneg %p124
      %p193 = pneg %p121
      %s194 = smul.u32 16, %s19
      %p195 = scmp.lt.s32.totalorder %s18, 3
      %s196 = scalar_select %p195, %s18, 3
      %p197 = scmp.lt.s32.totalorder %s194, 15
      %s198 = scalar_select %p197, %s194, 15
      %s199 = smul.addr %s196, 16
      %s200 = sadd.s32 %s198, %s199
      %s201 = smul.addr %s200, 4
      %s202 = scalar_lea.vmem %s3, %s201
      %p203 = scmp.lt.s32.totalorder %s18, 3
      %s204 = scalar_select %p203, %s18, 3
      %s205 = smul.addr %s204, 4
      %s206 = scalar_lea.vmem %s0, %s205
      %s207 = smul.u32 16, %s19
      %p208 = scmp.lt.s32.totalorder %s18, 3
      %s209 = scalar_select %p208, %s18, 3
      %p210 = scmp.lt.s32.totalorder %s207, 15
      %s211 = scalar_select %p210, %s207, 15
      %s212 = smul.addr %s209, 64
      %s213 = sadd.s32 %s211, %s212
      %s214 = smul.addr %s213, 8
      %s215 = scalar_lea.vmem %s2, %s214
      %s216 = smul.u32 16, %s19
      %s217 = smul.u32 16, %s19
      %p218 = scmp.lt.s32.totalorder %s18, 3
      %s219 = scalar_select %p218, %s18, 3
      %p220 = scmp.lt.s32.totalorder %s217, 15
      %s221 = scalar_select %p220, %s217, 15
      %s222 = smul.addr %s219, 16
      %s223 = sadd.s32 %s221, %s222
      %s224 = smul.addr %s223, 4
      %s225 = scalar_lea.vmem %s3, %s224
      %s226 = smul.u32 16, %s19
      %v227 = vld [vmem:[%s206] sm:$0x7]
      %v228 = vld [vmem:[%s215] sm:$0xff]
      %v229 = vld [vmem:[%s215 + $0x8] sm:$0xff]
      %v230 = vld [vmem:[%s215 + $0x10] sm:$0xff]
      %v231 = vld [vmem:[%s215 + $0x18] sm:$0xff]
      %v232 = vld [vmem:[%s215 + $0x20] sm:$0xff]
      %v233 = vld [vmem:[%s215 + $0x28] sm:$0xff]
      %v234 = vld [vmem:[%s215 + $0x30] sm:$0xff]
      %v235 = vld [vmem:[%s215 + $0x38] sm:$0xff]
      %v236 = vld [vmem:[%s215 + $0x40] sm:$0xff]
      %v237 = vld [vmem:[%s215 + $0x48] sm:$0xff]
      %v238 = vld [vmem:[%s215 + $0x50] sm:$0xff]
      %v239 = vld [vmem:[%s215 + $0x58] sm:$0xff]
      %v240 = vld [vmem:[%s215 + $0x60] sm:$0xff]
      %v241 = vld [vmem:[%s215 + $0x68] sm:$0xff]
      %v242 = vld [vmem:[%s215 + $0x70] sm:$0xff]
      %v243 = vld [vmem:[%s215 + $0x78] sm:$0xff]
      %v244 = vld [vmem:[%s215 + $0x80] sm:$0xff]
      %v245 = vld [vmem:[%s215 + $0x88] sm:$0xff]
      %v246 = vld [vmem:[%s215 + $0x90] sm:$0xff]
      %v247 = vld [vmem:[%s215 + $0x98] sm:$0xff]
      %v248 = vld [vmem:[%s215 + $0xa0] sm:$0xff]
      %v249 = vld [vmem:[%s215 + $0xa8] sm:$0xff]
      %v250 = vld [vmem:[%s215 + $0xb0] sm:$0xff]
      %v251 = vld [vmem:[%s215 + $0xb8] sm:$0xff]
      %v252 = vld [vmem:[%s215 + $0xc0] sm:$0xff]
      %v253 = vld [vmem:[%s215 + $0xc8] sm:$0xff]
      %v254 = vld [vmem:[%s215 + $0xd0] sm:$0xff]
      %v255 = vld [vmem:[%s215 + $0xd8] sm:$0xff]
      %v256 = vld [vmem:[%s215 + $0xe0] sm:$0xff]
      %v257 = vld [vmem:[%s215 + $0xe8] sm:$0xff]
      %v258 = vld [vmem:[%s215 + $0xf0] sm:$0xff]
      %v259 = vld [vmem:[%s215 + $0xf8] sm:$0xff]
      %v260 = vld [vmem:[%s215 + $0x100] sm:$0xff]
      %v261 = vld [vmem:[%s215 + $0x108] sm:$0xff]
      %v262 = vld [vmem:[%s215 + $0x110] sm:$0xff]
      %v263 = vld [vmem:[%s215 + $0x118] sm:$0xff]
      %v264 = vld [vmem:[%s215 + $0x120] sm:$0xff]
      %v265 = vld [vmem:[%s215 + $0x128] sm:$0xff]
      %v266 = vld [vmem:[%s215 + $0x130] sm:$0xff]
      %v267 = vld [vmem:[%s215 + $0x138] sm:$0xff]
      %v268 = vld [vmem:[%s215 + $0x140] sm:$0xff]
      %v269 = vld [vmem:[%s215 + $0x148] sm:$0xff]
      %v270 = vld [vmem:[%s215 + $0x150] sm:$0xff]
      %v271 = vld [vmem:[%s215 + $0x158] sm:$0xff]
      %v272 = vld [vmem:[%s215 + $0x160] sm:$0xff]
      %v273 = vld [vmem:[%s215 + $0x168] sm:$0xff]
      %v274 = vld [vmem:[%s215 + $0x170] sm:$0xff]
      %v275 = vld [vmem:[%s215 + $0x178] sm:$0xff]
      %v276 = vld [vmem:[%s215 + $0x180] sm:$0xff]
      %v277 = vld [vmem:[%s215 + $0x188] sm:$0xff]
      %v278 = vld [vmem:[%s215 + $0x190] sm:$0xff]
      %v279 = vld [vmem:[%s215 + $0x198] sm:$0xff]
      %v280 = vld [vmem:[%s215 + $0x1a0] sm:$0xff]
      %v281 = vld [vmem:[%s215 + $0x1a8] sm:$0xff]
      %v282 = vld [vmem:[%s215 + $0x1b0] sm:$0xff]
      %v283 = vld [vmem:[%s215 + $0x1b8] sm:$0xff]
      %v284 = vld [vmem:[%s215 + $0x1c0] sm:$0xff]
      %v285 = vld [vmem:[%s215 + $0x1c8] sm:$0xff]
      %v286 = vld [vmem:[%s215 + $0x1d0] sm:$0xff]
      %v287 = vld [vmem:[%s215 + $0x1d8] sm:$0xff]
      %v288 = vld [vmem:[%s215 + $0x1e0] sm:$0xff]
      %v289 = vld [vmem:[%s215 + $0x1e8] sm:$0xff]
      %v290 = vld [vmem:[%s215 + $0x1f0] sm:$0xff]
      %v291 = vld [vmem:[%s215 + $0x1f8] sm:$0xff]
      %v292 = vld [vmem:[%s1] sm:$0x7]
      %294 = vset.pattern.permute.xlu0 0
      %295 = vperm.xlu0 %294, %v292
      %v296 = vpop.permute.xlu0 %295
      %vm298 = vcmask 261120
      %v300 = vsel %vm298, %v227, 0
      %302 = vmatpush.msra.mxu0 0.0
      %303 = vmatpush.msra.mxu0 0.0
      %304 = vmatpush.msra.mxu0 0.0
      %305 = vmatpush.msra.mxu0 0.0
      %306 = vmatpush.msra.mxu0 0.0
      %307 = vmatpush.msra.mxu0 0.0
      %308 = vmatpush.msra.mxu0 0.0
      %309 = vmatpush.msra.mxu0 0.0
      %310 = vmatpush.msra.mxu0 0.0
      %311 = vmatpush.msra.mxu0 0.0
      %312 = vmatpush.msra.mxu0 0.0
      %313 = vmatpush.msra.mxu0 0.0
      %314 = vmatpush.msra.mxu0 %v276
      %315 = vmatpush.msra.mxu0 %v260
      %316 = vmatpush.msra.mxu0 %v244
      %317 = vmatpush.msra.mxu0 %v228
      %318 = vmatmul.f32.gmra.mxu0 %v300
      %v319 = vpop.f32.mrf.mxu0
      %v320 = vadd.f32 %v296, %v319
      %321 = vdwg.mxu0
      %322 = vmatpush.msra.mxu0 0.0
      %323 = vmatpush.msra.mxu0 0.0
      %324 = vmatpush.msra.mxu0 0.0
      %325 = vmatpush.msra.mxu0 0.0
      %326 = vmatpush.msra.mxu0 0.0
      %327 = vmatpush.msra.mxu0 0.0
      %328 = vmatpush.msra.mxu0 0.0
      %329 = vmatpush.msra.mxu0 0.0
      %330 = vmatpush.msra.mxu0 0.0
      %331 = vmatpush.msra.mxu0 0.0
      %332 = vmatpush.msra.mxu0 0.0
      %333 = vmatpush.msra.mxu0 0.0
      %334 = vmatpush.msra.mxu0 %v277
      %335 = vmatpush.msra.mxu0 %v261
      %336 = vmatpush.msra.mxu0 %v245
      %337 = vmatpush.msra.mxu0 %v229
      %338 = vmatmul.f32.gmra.mxu0 %v300
      %v339 = vpop.f32.mrf.mxu0
      %v340 = vadd.f32 %v296, %v339
      %341 = vdwg.mxu0
      %342 = vmatpush.msra.mxu0 0.0
      %343 = vmatpush.msra.mxu0 0.0
      %344 = vmatpush.msra.mxu0 0.0
      %345 = vmatpush.msra.mxu0 0.0
      %346 = vmatpush.msra.mxu0 0.0
      %347 = vmatpush.msra.mxu0 0.0
      %348 = vmatpush.msra.mxu0 0.0
      %349 = vmatpush.msra.mxu0 0.0
      %350 = vmatpush.msra.mxu0 0.0
      %351 = vmatpush.msra.mxu0 0.0
      %352 = vmatpush.msra.mxu0 0.0
      %353 = vmatpush.msra.mxu0 0.0
      %354 = vmatpush.msra.mxu0 %v278
      %355 = vmatpush.msra.mxu0 %v262
      %356 = vmatpush.msra.mxu0 %v246
      %357 = vmatpush.msra.mxu0 %v230
      %358 = vmatmul.f32.gmra.mxu0 %v300
      %v359 = vpop.f32.mrf.mxu0
      %v360 = vadd.f32 %v296, %v359
      %361 = vdwg.mxu0
      %362 = vmatpush.msra.mxu0 0.0
      %363 = vmatpush.msra.mxu0 0.0
      %364 = vmatpush.msra.mxu0 0.0
      %365 = vmatpush.msra.mxu0 0.0
      %366 = vmatpush.msra.mxu0 0.0
      %367 = vmatpush.msra.mxu0 0.0
      %368 = vmatpush.msra.mxu0 0.0
      %369 = vmatpush.msra.mxu0 0.0
      %370 = vmatpush.msra.mxu0 0.0
      %371 = vmatpush.msra.mxu0 0.0
      %372 = vmatpush.msra.mxu0 0.0
      %373 = vmatpush.msra.mxu0 0.0
      %374 = vmatpush.msra.mxu0 %v279
      %375 = vmatpush.msra.mxu0 %v263
      %376 = vmatpush.msra.mxu0 %v247
      %377 = vmatpush.msra.mxu0 %v231
      %378 = vmatmul.f32.gmra.mxu0 %v300
      %v379 = vpop.f32.mrf.mxu0
      %v380 = vadd.f32 %v296, %v379
      %381 = vdwg.mxu0
      %382 = vmatpush.msra.mxu0 0.0
      %383 = vmatpush.msra.mxu0 0.0
      %384 = vmatpush.msra.mxu0 0.0
      %385 = vmatpush.msra.mxu0 0.0
      %386 = vmatpush.msra.mxu0 0.0
      %387 = vmatpush.msra.mxu0 0.0
      %388 = vmatpush.msra.mxu0 0.0
      %389 = vmatpush.msra.mxu0 0.0
      %390 = vmatpush.msra.mxu0 0.0
      %391 = vmatpush.msra.mxu0 0.0
      %392 = vmatpush.msra.mxu0 0.0
      %393 = vmatpush.msra.mxu0 0.0
      %394 = vmatpush.msra.mxu0 %v280
      %395 = vmatpush.msra.mxu0 %v264
      %396 = vmatpush.msra.mxu0 %v248
      %397 = vmatpush.msra.mxu0 %v232
      %398 = vmatmul.f32.gmra.mxu0 %v300
      %v399 = vpop.f32.mrf.mxu0
      %v400 = vadd.f32 %v296, %v399
      %401 = vdwg.mxu0
      %402 = vmatpush.msra.mxu0 0.0
      %403 = vmatpush.msra.mxu0 0.0
      %404 = vmatpush.msra.mxu0 0.0
      %405 = vmatpush.msra.mxu0 0.0
      %406 = vmatpush.msra.mxu0 0.0
      %407 = vmatpush.msra.mxu0 0.0
      %408 = vmatpush.msra.mxu0 0.0
      %409 = vmatpush.msra.mxu0 0.0
      %410 = vmatpush.msra.mxu0 0.0
      %411 = vmatpush.msra.mxu0 0.0
      %412 = vmatpush.msra.mxu0 0.0
      %413 = vmatpush.msra.mxu0 0.0
      %414 = vmatpush.msra.mxu0 %v281
      %415 = vmatpush.msra.mxu0 %v265
      %416 = vmatpush.msra.mxu0 %v249
      %417 = vmatpush.msra.mxu0 %v233
      %418 = vmatmul.f32.gmra.mxu0 %v300
      %v419 = vpop.f32.mrf.mxu0
      %v420 = vadd.f32 %v296, %v419
      %421 = vdwg.mxu0
      %422 = vmatpush.msra.mxu0 0.0
      %423 = vmatpush.msra.mxu0 0.0
      %424 = vmatpush.msra.mxu0 0.0
      %425 = vmatpush.msra.mxu0 0.0
      %426 = vmatpush.msra.mxu0 0.0
      %427 = vmatpush.msra.mxu0 0.0
      %428 = vmatpush.msra.mxu0 0.0
      %429 = vmatpush.msra.mxu0 0.0
      %430 = vmatpush.msra.mxu0 0.0
      %431 = vmatpush.msra.mxu0 0.0
      %432 = vmatpush.msra.mxu0 0.0
      %433 = vmatpush.msra.mxu0 0.0
      %434 = vmatpush.msra.mxu0 %v282
      %435 = vmatpush.msra.mxu0 %v266
      %436 = vmatpush.msra.mxu0 %v250
      %437 = vmatpush.msra.mxu0 %v234
      %438 = vmatmul.f32.gmra.mxu0 %v300
      %v439 = vpop.f32.mrf.mxu0
      %v440 = vadd.f32 %v296, %v439
      %441 = vdwg.mxu0
      %442 = vmatpush.msra.mxu0 0.0
      %443 = vmatpush.msra.mxu0 0.0
      %444 = vmatpush.msra.mxu0 0.0
      %445 = vmatpush.msra.mxu0 0.0
      %446 = vmatpush.msra.mxu0 0.0
      %447 = vmatpush.msra.mxu0 0.0
      %448 = vmatpush.msra.mxu0 0.0
      %449 = vmatpush.msra.mxu0 0.0
      %450 = vmatpush.msra.mxu0 0.0
      %451 = vmatpush.msra.mxu0 0.0
      %452 = vmatpush.msra.mxu0 0.0
      %453 = vmatpush.msra.mxu0 0.0
      %454 = vmatpush.msra.mxu0 %v283
      %455 = vmatpush.msra.mxu0 %v267
      %456 = vmatpush.msra.mxu0 %v251
      %457 = vmatpush.msra.mxu0 %v235
      %458 = vmatmul.f32.gmra.mxu0 %v300
      %v459 = vpop.f32.mrf.mxu0
      %v460 = vadd.f32 %v296, %v459
      %461 = vdwg.mxu0
      %462 = vmatpush.msra.mxu0 0.0
      %463 = vmatpush.msra.mxu0 0.0
      %464 = vmatpush.msra.mxu0 0.0
      %465 = vmatpush.msra.mxu0 0.0
      %466 = vmatpush.msra.mxu0 0.0
      %467 = vmatpush.msra.mxu0 0.0
      %468 = vmatpush.msra.mxu0 0.0
      %469 = vmatpush.msra.mxu0 0.0
      %470 = vmatpush.msra.mxu0 0.0
      %471 = vmatpush.msra.mxu0 0.0
      %472 = vmatpush.msra.mxu0 0.0
      %473 = vmatpush.msra.mxu0 0.0
      %474 = vmatpush.msra.mxu0 %v284
      %475 = vmatpush.msra.mxu0 %v268
      %476 = vmatpush.msra.mxu0 %v252
      %477 = vmatpush.msra.mxu0 %v236
      %478 = vmatmul.f32.gmra.mxu0 %v300
      %v479 = vpop.f32.mrf.mxu0
      %v480 = vadd.f32 %v296, %v479
      %481 = vdwg.mxu0
      %482 = vmatpush.msra.mxu0 0.0
      %483 = vmatpush.msra.mxu0 0.0
      %484 = vmatpush.msra.mxu0 0.0
      %485 = vmatpush.msra.mxu0 0.0
      %486 = vmatpush.msra.mxu0 0.0
      %487 = vmatpush.msra.mxu0 0.0
      %488 = vmatpush.msra.mxu0 0.0
      %489 = vmatpush.msra.mxu0 0.0
      %490 = vmatpush.msra.mxu0 0.0
      %491 = vmatpush.msra.mxu0 0.0
      %492 = vmatpush.msra.mxu0 0.0
      %493 = vmatpush.msra.mxu0 0.0
      %494 = vmatpush.msra.mxu0 %v285
      %495 = vmatpush.msra.mxu0 %v269
      %496 = vmatpush.msra.mxu0 %v253
      %497 = vmatpush.msra.mxu0 %v237
      %498 = vmatmul.f32.gmra.mxu0 %v300
      %v499 = vpop.f32.mrf.mxu0
      %v500 = vadd.f32 %v296, %v499
      %501 = vdwg.mxu0
      %502 = vmatpush.msra.mxu0 0.0
      %503 = vmatpush.msra.mxu0 0.0
      %504 = vmatpush.msra.mxu0 0.0
      %505 = vmatpush.msra.mxu0 0.0
      %506 = vmatpush.msra.mxu0 0.0
      %507 = vmatpush.msra.mxu0 0.0
      %508 = vmatpush.msra.mxu0 0.0
      %509 = vmatpush.msra.mxu0 0.0
      %510 = vmatpush.msra.mxu0 0.0
      %511 = vmatpush.msra.mxu0 0.0
      %512 = vmatpush.msra.mxu0 0.0
      %513 = vmatpush.msra.mxu0 0.0
      %514 = vmatpush.msra.mxu0 %v286
      %515 = vmatpush.msra.mxu0 %v270
      %516 = vmatpush.msra.mxu0 %v254
      %517 = vmatpush.msra.mxu0 %v238
      %518 = vmatmul.f32.gmra.mxu0 %v300
      %v519 = vpop.f32.mrf.mxu0
      %v520 = vadd.f32 %v296, %v519
      %521 = vdwg.mxu0
      %522 = vmatpush.msra.mxu0 0.0
      %523 = vmatpush.msra.mxu0 0.0
      %524 = vmatpush.msra.mxu0 0.0
      %525 = vmatpush.msra.mxu0 0.0
      %526 = vmatpush.msra.mxu0 0.0
      %527 = vmatpush.msra.mxu0 0.0
      %528 = vmatpush.msra.mxu0 0.0
      %529 = vmatpush.msra.mxu0 0.0
      %530 = vmatpush.msra.mxu0 0.0
      %531 = vmatpush.msra.mxu0 0.0
      %532 = vmatpush.msra.mxu0 0.0
      %533 = vmatpush.msra.mxu0 0.0
      %534 = vmatpush.msra.mxu0 %v287
      %535 = vmatpush.msra.mxu0 %v271
      %536 = vmatpush.msra.mxu0 %v255
      %537 = vmatpush.msra.mxu0 %v239
      %538 = vmatmul.f32.gmra.mxu0 %v300
      %v539 = vpop.f32.mrf.mxu0
      %v540 = vadd.f32 %v296, %v539
      %541 = vdwg.mxu0
      %542 = vmatpush.msra.mxu0 0.0
      %543 = vmatpush.msra.mxu0 0.0
      %544 = vmatpush.msra.mxu0 0.0
      %545 = vmatpush.msra.mxu0 0.0
      %546 = vmatpush.msra.mxu0 0.0
      %547 = vmatpush.msra.mxu0 0.0
      %548 = vmatpush.msra.mxu0 0.0
      %549 = vmatpush.msra.mxu0 0.0
      %550 = vmatpush.msra.mxu0 0.0
      %551 = vmatpush.msra.mxu0 0.0
      %552 = vmatpush.msra.mxu0 0.0
      %553 = vmatpush.msra.mxu0 0.0
      %554 = vmatpush.msra.mxu0 %v288
      %555 = vmatpush.msra.mxu0 %v272
      %556 = vmatpush.msra.mxu0 %v256
      %557 = vmatpush.msra.mxu0 %v240
      %558 = vmatmul.f32.gmra.mxu0 %v300
      %v559 = vpop.f32.mrf.mxu0
      %v560 = vadd.f32 %v296, %v559
      %561 = vdwg.mxu0
      %562 = vmatpush.msra.mxu0 0.0
      %563 = vmatpush.msra.mxu0 0.0
      %564 = vmatpush.msra.mxu0 0.0
      %565 = vmatpush.msra.mxu0 0.0
      %566 = vmatpush.msra.mxu0 0.0
      %567 = vmatpush.msra.mxu0 0.0
      %568 = vmatpush.msra.mxu0 0.0
      %569 = vmatpush.msra.mxu0 0.0
      %570 = vmatpush.msra.mxu0 0.0
      %571 = vmatpush.msra.mxu0 0.0
      %572 = vmatpush.msra.mxu0 0.0
      %573 = vmatpush.msra.mxu0 0.0
      %574 = vmatpush.msra.mxu0 %v289
      %575 = vmatpush.msra.mxu0 %v273
      %576 = vmatpush.msra.mxu0 %v257
      %577 = vmatpush.msra.mxu0 %v241
      %578 = vmatmul.f32.gmra.mxu0 %v300
      %v579 = vpop.f32.mrf.mxu0
      %v580 = vadd.f32 %v296, %v579
      %581 = vdwg.mxu0
      %582 = vmatpush.msra.mxu0 0.0
      %583 = vmatpush.msra.mxu0 0.0
      %584 = vmatpush.msra.mxu0 0.0
      %585 = vmatpush.msra.mxu0 0.0
      %586 = vmatpush.msra.mxu0 0.0
      %587 = vmatpush.msra.mxu0 0.0
      %588 = vmatpush.msra.mxu0 0.0
      %589 = vmatpush.msra.mxu0 0.0
      %590 = vmatpush.msra.mxu0 0.0
      %591 = vmatpush.msra.mxu0 0.0
      %592 = vmatpush.msra.mxu0 0.0
      %593 = vmatpush.msra.mxu0 0.0
      %594 = vmatpush.msra.mxu0 %v290
      %595 = vmatpush.msra.mxu0 %v274
      %596 = vmatpush.msra.mxu0 %v258
      %597 = vmatpush.msra.mxu0 %v242
      %598 = vmatmul.f32.gmra.mxu0 %v300
      %v599 = vpop.f32.mrf.mxu0
      %v600 = vadd.f32 %v296, %v599
      %601 = vdwg.mxu0
      %602 = vmatpush.msra.mxu0 0.0
      %603 = vmatpush.msra.mxu0 0.0
      %604 = vmatpush.msra.mxu0 0.0
      %605 = vmatpush.msra.mxu0 0.0
      %606 = vmatpush.msra.mxu0 0.0
      %607 = vmatpush.msra.mxu0 0.0
      %608 = vmatpush.msra.mxu0 0.0
      %609 = vmatpush.msra.mxu0 0.0
      %610 = vmatpush.msra.mxu0 0.0
      %611 = vmatpush.msra.mxu0 0.0
      %612 = vmatpush.msra.mxu0 0.0
      %613 = vmatpush.msra.mxu0 0.0
      %614 = vmatpush.msra.mxu0 %v291
      %615 = vmatpush.msra.mxu0 %v275
      %616 = vmatpush.msra.mxu0 %v259
      %617 = vmatpush.msra.mxu0 %v243
      %618 = vmatmul.f32.gmra.mxu0 %v300
      %v619 = vpop.f32.mrf.mxu0
      %v620 = vadd.f32 %v296, %v619
      %621 = vdwg.mxu0
      %v622 = vxor.u32 %v320, 2147483648
      %v623 = vxor.u32 %v340, 2147483648
      %v624 = vxor.u32 %v360, 2147483648
      %v625 = vxor.u32 %v380, 2147483648
      %v626 = vxor.u32 %v400, 2147483648
      %v627 = vxor.u32 %v420, 2147483648
      %v628 = vxor.u32 %v440, 2147483648
      %v629 = vxor.u32 %v460, 2147483648
      %v630 = vxor.u32 %v480, 2147483648
      %v631 = vxor.u32 %v500, 2147483648
      %v632 = vxor.u32 %v520, 2147483648
      %v633 = vxor.u32 %v540, 2147483648
      %v634 = vxor.u32 %v560, 2147483648
      %v635 = vxor.u32 %v580, 2147483648
      %v636 = vxor.u32 %v600, 2147483648
      %v637 = vxor.u32 %v620, 2147483648
      %v638 = vmul.f32 %v622, 1.442695
      %v639 = vpow.pop %v638
      %v640 = vmul.f32 %v623, 1.442695
      %v641 = vpow.pop %v640
      %v642 = vmul.f32 %v624, 1.442695
      %v643 = vpow.pop %v642
      %v644 = vmul.f32 %v625, 1.442695
      %v645 = vpow.pop %v644
      %v646 = vmul.f32 %v626, 1.442695
      %v647 = vpow.pop %v646
      %v648 = vmul.f32 %v627, 1.442695
      %v649 = vpow.pop %v648
      %v650 = vmul.f32 %v628, 1.442695
      %v651 = vpow.pop %v650
      %v652 = vmul.f32 %v629, 1.442695
      %v653 = vpow.pop %v652
      %v654 = vmul.f32 %v630, 1.442695
      %v655 = vpow.pop %v654
      %v656 = vmul.f32 %v631, 1.442695
      %v657 = vpow.pop %v656
      %v658 = vmul.f32 %v632, 1.442695
      %v659 = vpow.pop %v658
      %v660 = vmul.f32 %v633, 1.442695
      %v661 = vpow.pop %v660
      %v662 = vmul.f32 %v634, 1.442695
      %v663 = vpow.pop %v662
      %v664 = vmul.f32 %v635, 1.442695
      %v665 = vpow.pop %v664
      %v666 = vmul.f32 %v636, 1.442695
      %v667 = vpow.pop %v666
      %v668 = vmul.f32 %v637, 1.442695
      %v669 = vpow.pop %v668
      %v670 = vadd.f32 %v639, 1.0
      %v671 = vadd.f32 %v641, 1.0
      %v672 = vadd.f32 %v643, 1.0
      %v673 = vadd.f32 %v645, 1.0
      %v674 = vadd.f32 %v647, 1.0
      %v675 = vadd.f32 %v649, 1.0
      %v676 = vadd.f32 %v651, 1.0
      %v677 = vadd.f32 %v653, 1.0
      %v678 = vadd.f32 %v655, 1.0
      %v679 = vadd.f32 %v657, 1.0
      %v680 = vadd.f32 %v659, 1.0
      %v681 = vadd.f32 %v661, 1.0
      %v682 = vadd.f32 %v663, 1.0
      %v683 = vadd.f32 %v665, 1.0
      %v684 = vadd.f32 %v667, 1.0
      %v685 = vadd.f32 %v669, 1.0
      %v686 = vrcp.pop %v670
      %v687 = vmul.f32 %v670, %v686
      %v688 = vsub.f32 1.0, %v687
      %v689 = vmul.f32 %v686, %v688
      %v690 = vadd.f32 %v686, %v689
      %vm691 = vweird.f32 %v670
      %vm692 = vweird.f32 %v686
      %vm693 = vmor %vm691, %vm692
      %v694 = vsel %vm693, %v686, %v690
      %v695 = vand.u32 2147483647, %v670
      %vm696 = vcmp.eq.f32.partialorder %v695, 8.507059e+37
      %v697 = vand.u32 %v670, 2147483648
      %v698 = vor.u32 1.1754944e-38, %v697
      %v699 = vsel %vm696, %v698, %v694
      %v700 = vmul.f32 1.0, %v699
      %v701 = vrcp.pop %v671
      %v702 = vmul.f32 %v671, %v701
      %v703 = vsub.f32 1.0, %v702
      %v704 = vmul.f32 %v701, %v703
      %v705 = vadd.f32 %v701, %v704
      %vm706 = vweird.f32 %v671
      %vm707 = vweird.f32 %v701
      %vm708 = vmor %vm706, %vm707
      %v709 = vsel %vm708, %v701, %v705
      %v710 = vand.u32 2147483647, %v671
      %vm711 = vcmp.eq.f32.partialorder %v710, 8.507059e+37
      %v712 = vand.u32 %v671, 2147483648
      %v713 = vor.u32 1.1754944e-38, %v712
      %v714 = vsel %vm711, %v713, %v709
      %v715 = vmul.f32 1.0, %v714
      %v716 = vrcp.pop %v672
      %v717 = vmul.f32 %v672, %v716
      %v718 = vsub.f32 1.0, %v717
      %v719 = vmul.f32 %v716, %v718
      %v720 = vadd.f32 %v716, %v719
      %vm721 = vweird.f32 %v672
      %vm722 = vweird.f32 %v716
      %vm723 = vmor %vm721, %vm722
      %v724 = vsel %vm723, %v716, %v720
      %v725 = vand.u32 2147483647, %v672
      %vm726 = vcmp.eq.f32.partialorder %v725, 8.507059e+37
      %v727 = vand.u32 %v672, 2147483648
      %v728 = vor.u32 1.1754944e-38, %v727
      %v729 = vsel %vm726, %v728, %v724
      %v730 = vmul.f32 1.0, %v729
      %v731 = vrcp.pop %v673
      %v732 = vmul.f32 %v673, %v731
      %v733 = vsub.f32 1.0, %v732
      %v734 = vmul.f32 %v731, %v733
      %v735 = vadd.f32 %v731, %v734
      %vm736 = vweird.f32 %v673
      %vm737 = vweird.f32 %v731
      %vm738 = vmor %vm736, %vm737
      %v739 = vsel %vm738, %v731, %v735
      %v740 = vand.u32 2147483647, %v673
      %vm741 = vcmp.eq.f32.partialorder %v740, 8.507059e+37
      %v742 = vand.u32 %v673, 2147483648
      %v743 = vor.u32 1.1754944e-38, %v742
      %v744 = vsel %vm741, %v743, %v739
      %v745 = vmul.f32 1.0, %v744
      %v746 = vrcp.pop %v674
      %v747 = vmul.f32 %v674, %v746
      %v748 = vsub.f32 1.0, %v747
      %v749 = vmul.f32 %v746, %v748
      %v750 = vadd.f32 %v746, %v749
      %vm751 = vweird.f32 %v674
      %vm752 = vweird.f32 %v746
      %vm753 = vmor %vm751, %vm752
      %v754 = vsel %vm753, %v746, %v750
      %v755 = vand.u32 2147483647, %v674
      %vm756 = vcmp.eq.f32.partialorder %v755, 8.507059e+37
      %v757 = vand.u32 %v674, 2147483648
      %v758 = vor.u32 1.1754944e-38, %v757
      %v759 = vsel %vm756, %v758, %v754
      %v760 = vmul.f32 1.0, %v759
      %v761 = vrcp.pop %v675
      %v762 = vmul.f32 %v675, %v761
      %v763 = vsub.f32 1.0, %v762
      %v764 = vmul.f32 %v761, %v763
      %v765 = vadd.f32 %v761, %v764
      %vm766 = vweird.f32 %v675
      %vm767 = vweird.f32 %v761
      %vm768 = vmor %vm766, %vm767
      %v769 = vsel %vm768, %v761, %v765
      %v770 = vand.u32 2147483647, %v675
      %vm771 = vcmp.eq.f32.partialorder %v770, 8.507059e+37
      %v772 = vand.u32 %v675, 2147483648
      %v773 = vor.u32 1.1754944e-38, %v772
      %v774 = vsel %vm771, %v773, %v769
      %v775 = vmul.f32 1.0, %v774
      %v776 = vrcp.pop %v676
      %v777 = vmul.f32 %v676, %v776
      %v778 = vsub.f32 1.0, %v777
      %v779 = vmul.f32 %v776, %v778
      %v780 = vadd.f32 %v776, %v779
      %vm781 = vweird.f32 %v676
      %vm782 = vweird.f32 %v776
      %vm783 = vmor %vm781, %vm782
      %v784 = vsel %vm783, %v776, %v780
      %v785 = vand.u32 2147483647, %v676
      %vm786 = vcmp.eq.f32.partialorder %v785, 8.507059e+37
      %v787 = vand.u32 %v676, 2147483648
      %v788 = vor.u32 1.1754944e-38, %v787
      %v789 = vsel %vm786, %v788, %v784
      %v790 = vmul.f32 1.0, %v789
      %v791 = vrcp.pop %v677
      %v792 = vmul.f32 %v677, %v791
      %v793 = vsub.f32 1.0, %v792
      %v794 = vmul.f32 %v791, %v793
      %v795 = vadd.f32 %v791, %v794
      %vm796 = vweird.f32 %v677
      %vm797 = vweird.f32 %v791
      %vm798 = vmor %vm796, %vm797
      %v799 = vsel %vm798, %v791, %v795
      %v800 = vand.u32 2147483647, %v677
      %vm801 = vcmp.eq.f32.partialorder %v800, 8.507059e+37
      %v802 = vand.u32 %v677, 2147483648
      %v803 = vor.u32 1.1754944e-38, %v802
      %v804 = vsel %vm801, %v803, %v799
      %v805 = vmul.f32 1.0, %v804
      %v806 = vrcp.pop %v678
      %v807 = vmul.f32 %v678, %v806
      %v808 = vsub.f32 1.0, %v807
      %v809 = vmul.f32 %v806, %v808
      %v810 = vadd.f32 %v806, %v809
      %vm811 = vweird.f32 %v678
      %vm812 = vweird.f32 %v806
      %vm813 = vmor %vm811, %vm812
      %v814 = vsel %vm813, %v806, %v810
      %v815 = vand.u32 2147483647, %v678
      %vm816 = vcmp.eq.f32.partialorder %v815, 8.507059e+37
      %v817 = vand.u32 %v678, 2147483648
      %v818 = vor.u32 1.1754944e-38, %v817
      %v819 = vsel %vm816, %v818, %v814
      %v820 = vmul.f32 1.0, %v819
      %v821 = vrcp.pop %v679
      %v822 = vmul.f32 %v679, %v821
      %v823 = vsub.f32 1.0, %v822
      %v824 = vmul.f32 %v821, %v823
      %v825 = vadd.f32 %v821, %v824
      %vm826 = vweird.f32 %v679
      %vm827 = vweird.f32 %v821
      %vm828 = vmor %vm826, %vm827
      %v829 = vsel %vm828, %v821, %v825
      %v830 = vand.u32 2147483647, %v679
      %vm831 = vcmp.eq.f32.partialorder %v830, 8.507059e+37
      %v832 = vand.u32 %v679, 2147483648
      %v833 = vor.u32 1.1754944e-38, %v832
      %v834 = vsel %vm831, %v833, %v829
      %v835 = vmul.f32 1.0, %v834
      %v836 = vrcp.pop %v680
      %v837 = vmul.f32 %v680, %v836
      %v838 = vsub.f32 1.0, %v837
      %v839 = vmul.f32 %v836, %v838
      %v840 = vadd.f32 %v836, %v839
      %vm841 = vweird.f32 %v680
      %vm842 = vweird.f32 %v836
      %vm843 = vmor %vm841, %vm842
      %v844 = vsel %vm843, %v836, %v840
      %v845 = vand.u32 2147483647, %v680
      %vm846 = vcmp.eq.f32.partialorder %v845, 8.507059e+37
      %v847 = vand.u32 %v680, 2147483648
      %v848 = vor.u32 1.1754944e-38, %v847
      %v849 = vsel %vm846, %v848, %v844
      %v850 = vmul.f32 1.0, %v849
      %v851 = vrcp.pop %v681
      %v852 = vmul.f32 %v681, %v851
      %v853 = vsub.f32 1.0, %v852
      %v854 = vmul.f32 %v851, %v853
      %v855 = vadd.f32 %v851, %v854
      %vm856 = vweird.f32 %v681
      %vm857 = vweird.f32 %v851
      %vm858 = vmor %vm856, %vm857
      %v859 = vsel %vm858, %v851, %v855
      %v860 = vand.u32 2147483647, %v681
      %vm861 = vcmp.eq.f32.partialorder %v860, 8.507059e+37
      %v862 = vand.u32 %v681, 2147483648
      %v863 = vor.u32 1.1754944e-38, %v862
      %v864 = vsel %vm861, %v863, %v859
      %v865 = vmul.f32 1.0, %v864
      %v866 = vrcp.pop %v682
      %v867 = vmul.f32 %v682, %v866
      %v868 = vsub.f32 1.0, %v867
      %v869 = vmul.f32 %v866, %v868
      %v870 = vadd.f32 %v866, %v869
      %vm871 = vweird.f32 %v682
      %vm872 = vweird.f32 %v866
      %vm873 = vmor %vm871, %vm872
      %v874 = vsel %vm873, %v866, %v870
      %v875 = vand.u32 2147483647, %v682
      %vm876 = vcmp.eq.f32.partialorder %v875, 8.507059e+37
      %v877 = vand.u32 %v682, 2147483648
      %v878 = vor.u32 1.1754944e-38, %v877
      %v879 = vsel %vm876, %v878, %v874
      %v880 = vmul.f32 1.0, %v879
      %v881 = vrcp.pop %v683
      %v882 = vmul.f32 %v683, %v881
      %v883 = vsub.f32 1.0, %v882
      %v884 = vmul.f32 %v881, %v883
      %v885 = vadd.f32 %v881, %v884
      %vm886 = vweird.f32 %v683
      %vm887 = vweird.f32 %v881
      %vm888 = vmor %vm886, %vm887
      %v889 = vsel %vm888, %v881, %v885
      %v890 = vand.u32 2147483647, %v683
      %vm891 = vcmp.eq.f32.partialorder %v890, 8.507059e+37
      %v892 = vand.u32 %v683, 2147483648
      %v893 = vor.u32 1.1754944e-38, %v892
      %v894 = vsel %vm891, %v893, %v889
      %v895 = vmul.f32 1.0, %v894
      %v896 = vrcp.pop %v684
      %v897 = vmul.f32 %v684, %v896
      %v898 = vsub.f32 1.0, %v897
      %v899 = vmul.f32 %v896, %v898
      %v900 = vadd.f32 %v896, %v899
      %vm901 = vweird.f32 %v684
      %vm902 = vweird.f32 %v896
      %vm903 = vmor %vm901, %vm902
      %v904 = vsel %vm903, %v896, %v900
      %v905 = vand.u32 2147483647, %v684
      %vm906 = vcmp.eq.f32.partialorder %v905, 8.507059e+37
      %v907 = vand.u32 %v684, 2147483648
      %v908 = vor.u32 1.1754944e-38, %v907
      %v909 = vsel %vm906, %v908, %v904
      %v910 = vmul.f32 1.0, %v909
      %v911 = vrcp.pop %v685
      %v912 = vmul.f32 %v685, %v911
      %v913 = vsub.f32 1.0, %v912
      %v914 = vmul.f32 %v911, %v913
      %v915 = vadd.f32 %v911, %v914
      %vm916 = vweird.f32 %v685
      %vm917 = vweird.f32 %v911
      %vm918 = vmor %vm916, %vm917
      %v919 = vsel %vm918, %v911, %v915
      %v920 = vand.u32 2147483647, %v685
      %vm921 = vcmp.eq.f32.partialorder %v920, 8.507059e+37
      %v922 = vand.u32 %v685, 2147483648
      %v923 = vor.u32 1.1754944e-38, %v922
      %v924 = vsel %vm921, %v923, %v919
      %v925 = vmul.f32 1.0, %v924
      %v942 = vrot.slane %v715, 4
      %v943 = vrot.slane %v745, 4
      %v944 = vrot.slane %v775, 4
      %v945 = vrot.slane %v805, 4
      %v946 = vrot.slane %v835, 4
      %v947 = vrot.slane %v865, 4
      %v948 = vrot.slane %v895, 4
      %v949 = vrot.slane %v925, 4
      %vm950 = vcmask 1043456
      %v951 = vsel %vm950, %v700, %v942
      %v952 = vsel %vm950, %v730, %v943
      %v953 = vsel %vm950, %v760, %v944
      %v954 = vsel %vm950, %v790, %v945
      %v955 = vsel %vm950, %v820, %v946
      %v956 = vsel %vm950, %v850, %v947
      %v957 = vsel %vm950, %v880, %v948
      %v958 = vsel %vm950, %v910, %v949
      %967 = vst [vmem:[%s225] sm:$0x77] %v951
      %968 = vst [vmem:[%s225 + $0x8] sm:$0x77] %v952
      %969 = vst [vmem:[%s225 + $0x10] sm:$0x77] %v953
      %970 = vst [vmem:[%s225 + $0x18] sm:$0x77] %v954
      %971 = vst [vmem:[%s225 + $0x20] sm:$0x77] %v955
      %972 = vst [vmem:[%s225 + $0x28] sm:$0x77] %v956
      %973 = vst [vmem:[%s225 + $0x30] sm:$0x77] %v957
      %974 = vst [vmem:[%s225 + $0x38] sm:$0x77] %v958
      %s975 = smul.u32 16, %s19
      %p976 = scmp.lt.s32.totalorder %s18, 3
      %s977 = scalar_select %p976, %s18, 3
      %p978 = scmp.lt.s32.totalorder %s975, 15
      %s979 = scalar_select %p978, %s975, 15
      %s980 = smul.addr %s977, 16
      %s981 = sadd.s32 %s979, %s980
      %s982 = smul.addr %s981, 4
      %s983 = scalar_lea.vmem %s3, %s982
      // Predicated region
      $region33: #{lsun_decoder_forward.15} parent=31 // pred_check
        %p984 = pneg %p121
      $region34: #{lsun_decoder_forward.15} parent=31 // pred_check_branch
        %986 = sbr.rel (%p984) target = $region36
      $region35: #{lsun_decoder_forward.15} parent=31 // pred_region
        %s987 = smul.u32 16, %s19
      $region36: #{lsun_decoder_forward.15} parent=31 // pred_fallthru
        _
    $region32: #{lsun_decoder_forward.15} parent=5 // pred_fallthru
      _
    %p988 = scmp.le.s32.totalorder 2, %s9
    // Predicated region
    $region37: #{lsun_decoder_forward.15} parent=5 // pred_check
      %p989 = pneg %p988
    $region38: #{lsun_decoder_forward.15} parent=5 // pred_check_branch
      %991 = sbr.rel (%p989) target = $region40
    $region39: #{lsun_decoder_forward.15} parent=5 // pred_region
      %s992 = ssub.s32 %s9, 2
      // Predicated region
      $region41: #{lsun_decoder_forward.15} parent=39 // pred_check
        %p993 = pneg %p127
      $region42: #{lsun_decoder_forward.15} parent=39 // pred_check_branch
        %995 = sbr.rel (%p993) target = $region44
      $region43: #{lsun_decoder_forward.15} parent=39 // pred_region
        %s996 = smul.u32 16, %s21
        %p997 = scmp.lt.s32.totalorder %s20, 3
        %s998 = scalar_select %p997, %s20, 3
        %p999 = scmp.lt.s32.totalorder %s996, 15
        %s1000 = scalar_select %p999, %s996, 15
        %s1001 = smul.addr %s998, 16
        %s1002 = sadd.s32 %s1000, %s1001
        %s1003 = smul.addr %s1002, 4
        %s1004 = scalar_lea.vmem %s3, %s1003
      $region44: #{lsun_decoder_forward.15} parent=39 // pred_fallthru
        _
    $region40: #{lsun_decoder_forward.15} parent=5 // pred_fallthru
      _
  $region6: #{lsun_decoder_forward.15} parent=0 // loop_footer
    %s13 = sadd.s32 1, %s9
  $region7: #{lsun_decoder_forward.15} parent=0 // loop_footer_branch
    %8 = sbr.rel target = $region3
  $region8: #{lsun_decoder_forward.15} parent=0 // loop_exit
    _

</llo_original>
